<compile_context>
chip_gen: v7x
topology: tpu7x:2x2x1
jax: 0.10.0
libtpu: 0.0.40
codegen_flags: <defaults>
</compile_context>

<pallas_src>
import functools
import math

import jax
import jax.numpy as jnp
from jax.experimental import pallas as pl
from jax.experimental.pallas import tpu as pltpu


CHUNK = 8  # timesteps per scan chunk (sublane granularity)


def _round_up(v, m):
    return (v + m - 1) // m * m


def _pad_to(a, shape):
    return jnp.pad(a, [(0, t - s) for s, t in zip(a.shape, shape)])


# ----------------------------------------------------------------------------
# Kernel
# ----------------------------------------------------------------------------
def s6_kernel(d_model, x_ref, gamma_ref, beta_ref, win_ref, bin_ref,
              At_ref, D_ref, wout_ref, bout_ref, out_ref, xp_s, dt_s):
    Bt, Np, dm_p = x_ref.shape
    d_state, di_p = At_ref.shape

    x = x_ref[...].reshape(Bt * Np, dm_p)

    # LayerNorm over the *un-padded* feature lanes (eps matches torch 1e-5).
    # Input padding lanes are zero, so the un-masked sum is already the real sum.
    lane = jax.lax.broadcasted_iota(jnp.int32, (1, dm_p), 1)
    mask = (lane < d_model).astype(jnp.float32)
    inv_dm = 1.0 / d_model
    mu = jnp.sum(x, axis=-1, keepdims=True) * inv_dm
    xc = (x - mu) * mask
    var = jnp.sum(xc * xc, axis=-1, keepdims=True) * inv_dm
    xn = xc * jax.lax.rsqrt(var + 1e-5) * gamma_ref[...] + beta_ref[...]

    # Single fused in_proj matmul (x | z | dt-rank, dt_proj already folded in).
    # TODO(synk): at production d_model/d_inner cast xn / weights to bf16 (keep
    # f32 accumulation); kept f32 here to hold the 1e-4 reference tolerance.
    xzd = jnp.dot(xn, win_ref[...], preferred_element_type=jnp.float32) + bin_ref[...]
    xp = xzd[:, 0 * di_p:1 * di_p]
    z = xzd[:, 1 * di_p:2 * di_p]
    dt_pre = xzd[:, 2 * di_p:3 * di_p]
    xp = xp * jax.nn.sigmoid(xp)          # SiLU
    z = z * jax.nn.sigmoid(z)             # SiLU
    dt = jax.nn.softplus(dt_pre)          # dt_proj folded into win/bin (wrapper)

    # Stash sequences (batch-major, time on the sublane axis) for the scan.
    # TODO(synk): at very small block_b*N_p (v5e) keep xp/dt as traced values
    # instead of a VMEM round-trip (single vst slot is the first to saturate).
    xp_s[...] = xp.reshape(Bt, Np, di_p)
    dt_s[...] = dt.reshape(Bt, Np, di_p)

    a = At_ref[...].reshape(1, 1, d_state, di_p)   # A = -exp(A_log); padded lanes = 0

    # Chunked selective scan:  h <- h * exp(A*dt_i) + x_i ;  y_i = sum_state h
    def chunk_body(c, h):
        s0 = pl.multiple_of(c * CHUNK, CHUNK)
        xp_blk = xp_s[:, pl.ds(s0, CHUNK), :]                     # (Bt, C, di_p)
        dt_blk = dt_s[:, pl.ds(s0, CHUNK), :]
        # TODO(synk): on v6e/v7x compute dA in bf16 (bf16 EUP/VALU, ~2x exp
        # throughput) once the 1e-4 tolerance is relaxed; never on v5e.
        dA_blk = jnp.exp(a * dt_blk[:, :, None, :])               # (Bt, C, S, di_p)
        ys = []
        for j in range(CHUNK):                                    # static unroll
            h = h * dA_blk[:, j] + xp_blk[:, j][:, None, :]
            # Per-step sublane (state) reduce -> XLU slot, free during recurrence.
            ys.append(jnp.sum(h, axis=1, keepdims=True))          # (Bt, 1, di_p)
        # One lane/sublane-dense slab store per chunk; the dt chunk is dead once
        # read, so y overwrites it in-place (saves a whole scratch slab).
        dt_s[:, pl.ds(s0, CHUNK), :] = jnp.concatenate(ys, axis=1)
        return h

    h0 = jnp.zeros((Bt, d_state, di_p), jnp.float32)
    jax.lax.fori_loop(0, Np // CHUNK, chunk_body, h0, unroll=True)
    # TODO(synk): for long sequences replace the serial-within-chunk recurrence
    # with a blockwise scan built from cumulative exp(A*cumsum(dt)) factors.

    # Gate, skip (D), out_proj, residual.  dt_s now holds y.
    y = dt_s[...].reshape(Bt * Np, di_p)
    xp = xp_s[...].reshape(Bt * Np, di_p)
    y = y * z + xp * D_ref[...]
    out = jnp.dot(y, wout_ref[...], preferred_element_type=jnp.float32) + bout_ref[...]
    out_ref[...] = out.reshape(Bt, Np, dm_p) + x_ref[...]


# ----------------------------------------------------------------------------
# Wrapper
# ----------------------------------------------------------------------------
def _num_tensorcores():
    """Best-effort per-chip TensorCore count (only multi-TC chips benefit from
    a parallel grid axis; on 1-TC chips extra grid steps are pure overhead)."""
    try:
        kind = jax.devices()[0].device_kind.lower()
    except Exception:
        return 1
    if "v7" in kind or "v5p" in kind or "v4" in kind:
        return 2
    return 1


def _pick_block_b(B, n_cores):
    if n_cores <= 1:
        return B                      # single grid step on v5e / v6e
    best = 1
    for bb in range(1, B + 1):        # largest divisor keeping >= n_cores steps
        if B % bb == 0 and B // bb >= n_cores:
            best = bb
    return best
    # TODO(synk): at production B/N also cap block_b by the VMEM budget below
    # and grow it until block_b*N_p >= 128 (v5e) / 256 (v6e, v7x) matmul rows.


def s6_forward(x, params, *, block_b=None):
    B, N, d_model = x.shape
    d_inner = params["win"].shape[1] // 3
    d_state = params["A_t"].shape[0]

    dm_p = _round_up(d_model, 128)
    di_p = _round_up(d_inner, 128)
    N_p = _round_up(N, CHUNK)
    if block_b is None:
        block_b = _pick_block_b(B, _num_tensorcores())
    assert B % block_b == 0

    win, bin_ = params["win"], params["bin"]
    wx, wz, wdr = (win[:, :d_inner], win[:, d_inner:2 * d_inner],
                   win[:, 2 * d_inner:])
    bx, bz, bdr = (bin_[:, :d_inner], bin_[:, d_inner:2 * d_inner],
                   bin_[:, 2 * d_inner:])

    # Fold dt_proj into in_proj (no nonlinearity in between): exact up to f32
    # rounding, removes one matmul and the dr intermediate from the kernel.
    wdr_eff = wdr @ params["wdt"]
    bdt_eff = bdr @ params["wdt"] + params["bdt"]

    # Fused, lane-padded in_proj weight/bias: columns [0,di_p)=x, [di_p,2di_p)=z,
    # [2di_p,3di_p)=dt.  Padded columns stay exactly zero (see invariant above).
    w_in = jnp.zeros((dm_p, 3 * di_p), jnp.float32)
    w_in = w_in.at[:d_model, 0 * di_p:0 * di_p + d_inner].set(wx)
    w_in = w_in.at[:d_model, 1 * di_p:1 * di_p + d_inner].set(wz)
    w_in = w_in.at[:d_model, 2 * di_p:2 * di_p + d_inner].set(wdr_eff)
    b_in = jnp.zeros((1, 3 * di_p), jnp.float32)
    b_in = b_in.at[:, 0 * di_p:0 * di_p + d_inner].set(bx)
    b_in = b_in.at[:, 1 * di_p:1 * di_p + d_inner].set(bz)
    b_in = b_in.at[:, 2 * di_p:2 * di_p + d_inner].set(bdt_eff)

    padded = dict(
        gamma=_pad_to(params["gamma"], (1, dm_p)),
        beta=_pad_to(params["beta"], (1, dm_p)),
        w_in=w_in, b_in=b_in,
        A_t=_pad_to(params["A_t"], (d_state, di_p)),
        D=_pad_to(params["D"], (1, di_p)),
        wout=_pad_to(params["wout"], (di_p, dm_p)),
        bout=_pad_to(params["bout"], (1, dm_p)),
    )
    x_p = _pad_to(x, (B, N_p, dm_p))

    def full_spec(a):
        nd = a.ndim
        # TODO(synk): on v7x pass pipeline_mode=pl.Buffered(1) here — these
        # index_maps never change, so double buffering the weights only wastes
        # VMEM (matters at production d_inner on v7x's 64 MiB).
        return pl.BlockSpec(a.shape, lambda b, _n=nd: (0,) * _n)

    order = ("gamma", "beta", "w_in", "b_in", "A_t", "D", "wout", "bout")
    in_specs = [pl.BlockSpec((block_b, N_p, dm_p), lambda b: (b, 0, 0))]
    in_specs += [full_spec(padded[k]) for k in order]

    # Explicit VMEM budget: double-buffered x/out blocks + (conservatively
    # double-buffered) weights + 2 scratch slabs + margin for compiler temps.
    def _fbytes(shape):
        n = 1
        for s in shape:
            n *= int(s)
        return 4 * n
    weight_bytes = sum(_fbytes(padded[k].shape) for k in order)
    io_block_bytes = _fbytes((block_b, N_p, dm_p))
    scratch_bytes = 2 * _fbytes((block_b, N_p, di_p))
    vmem_budget = 2 * (2 * io_block_bytes + weight_bytes) + scratch_bytes + (2 << 20)
    vmem_limit = int(min(max(vmem_budget, 16 << 20), 64 << 20))

    out = pl.pallas_call(
        functools.partial(s6_kernel, d_model),
        out_shape=jax.ShapeDtypeStruct((B, N_p, dm_p), jnp.float32),
        grid=(B // block_b,),
        in_specs=in_specs,
        out_specs=pl.BlockSpec((block_b, N_p, dm_p), lambda b: (b, 0, 0)),
        scratch_shapes=[
            pltpu.VMEM((block_b, N_p, di_p), jnp.float32),   # x_proj (post-SiLU)
            pltpu.VMEM((block_b, N_p, di_p), jnp.float32),   # dt, then reused as y
        ],
        compiler_params=pltpu.CompilerParams(
            dimension_semantics=("parallel",),
            vmem_limit_bytes=vmem_limit),
    )(x_p, *[padded[k] for k in order])

    return out[:, :N, :d_model]


# ----------------------------------------------------------------------------
# Pure-JAX reference (matches the PyTorch forward for seq_len <= 64)
# ----------------------------------------------------------------------------
def s6_reference(x, params):
    gamma, beta = params["gamma"], params["beta"]
    win, bin_ = params["win"], params["bin"]
    wdt, bdt = params["wdt"], params["bdt"]
    A_t, D = params["A_t"], params["D"]
    wout, bout = params["wout"], params["bout"]

    B, N, _ = x.shape
    d_inner = win.shape[1] // 3

    mu = x.mean(-1, keepdims=True)
    var = ((x - mu) ** 2).mean(-1, keepdims=True)
    xn = (x - mu) / jnp.sqrt(var + 1e-5) * gamma + beta
    xz = xn @ win + bin_
    xp, z, dtr = xz[..., :d_inner], xz[..., d_inner:2 * d_inner], xz[..., 2 * d_inner:]
    xp = jax.nn.silu(xp)
    z = jax.nn.silu(z)
    dt = jax.nn.softplus(dtr @ wdt + bdt)

    A = A_t.T                                        # (d_inner, d_state)

    def step(h, inp):
        x_i, dt_i = inp                              # (B, d_inner)
        dA = jnp.exp(A[None] * dt_i[:, :, None])     # (B, d_inner, d_state)
        h = h * dA + x_i[:, :, None]
        return h, h.sum(-1)

    h0 = jnp.zeros((B, d_inner, A_t.shape[0]), jnp.float32)
    _, ys = jax.lax.scan(step, h0,
                         (jnp.swapaxes(xp, 0, 1), jnp.swapaxes(dt, 0, 1)))
    y = jnp.swapaxes(ys, 0, 1)
    y = y * z + xp * D
    return y @ wout + bout + x


# ----------------------------------------------------------------------------
# Deterministic parameter construction (mirrors S6Layer.__init__ shapes)
# ----------------------------------------------------------------------------
def make_params(key, d_model, d_state_in=16, expand=2):
    d_state = max(8, d_state_in // 2)                # 8
    expand_f = max(1.5, expand * 0.75)               # 1.5
    d_inner = int(expand_f * d_model)

    ks = jax.random.split(key, 10)

    def xavier(k, fan_in, fan_out):
        a = math.sqrt(6.0 / (fan_in + fan_out))
        return jax.random.uniform(k, (fan_in, fan_out), jnp.float32, -a, a)

    win = xavier(ks[0], d_model, 3 * d_inner)                      # in_proj.weight^T
    bin_ = jax.random.uniform(ks[1], (1, 3 * d_inner), jnp.float32, -0.05, 0.05)
    wdt = xavier(ks[2], d_inner, d_inner)                          # dt_proj.weight^T
    bdt = jax.random.uniform(ks[3], (1, d_inner), jnp.float32, -0.05, 0.05)
    wout = xavier(ks[4], d_inner, d_model)                         # out_proj.weight^T
    bout = jax.random.uniform(ks[5], (1, d_model), jnp.float32, -0.05, 0.05)

    A_log = 0.5 * jax.random.normal(ks[6], (d_inner, d_state), jnp.float32)
    A = -jnp.exp(A_log)                                            # A = -exp(A_log)
    A_t = A.T                                                      # (d_state, d_inner)
    D = jax.random.normal(ks[7], (1, d_inner), jnp.float32)

    gamma = jnp.ones((1, d_model), jnp.float32)                    # LayerNorm weight
    beta = jnp.zeros((1, d_model), jnp.float32)                    # LayerNorm bias

    # TODO(synk): the PyTorch __init__ also samples a `dt` tensor (dt_min/dt_max)
    # that is never used in forward; it is intentionally omitted here.
    return {"gamma": gamma, "beta": beta, "win": win, "bin": bin_,
            "wdt": wdt, "bdt": bdt, "A_t": A_t, "D": D,
            "wout": wout, "bout": bout}


if __name__ == "__main__":
    B, N, d_model = 4, 16, 32          # seq_len <= 64 branch of the scan
    key = jax.random.PRNGKey(0)
    kx, kp = jax.random.split(key)
    x = jax.random.normal(kx, (B, N, d_model), jnp.float32)
    params = make_params(kp, d_model)

    out = s6_forward(x, params)        # block_b = B on 1-TC chips, B/2 on 2-TC
    out = jax.block_until_ready(out)

    ref = s6_reference(x, params)
    assert out.shape == (B, N, d_model)
    assert jnp.allclose(out, ref, rtol=1e-4, atol=1e-4), (
        f"max abs err {jnp.max(jnp.abs(out - ref))}")
    print("KERNEL_OK")
</pallas_src>

<mosaic_0001>
module attributes {stable_mosaic.version = 11 : i64} {
  func.func @s6_kernel(%arg0: i32, %arg1: memref<4x16x128xf32, #tpu.memory_space<vmem>>, %arg2: memref<1x128xf32, #tpu.memory_space<vmem>>, %arg3: memref<1x128xf32, #tpu.memory_space<vmem>>, %arg4: memref<128x384xf32, #tpu.memory_space<vmem>>, %arg5: memref<1x384xf32, #tpu.memory_space<vmem>>, %arg6: memref<8x128xf32, #tpu.memory_space<vmem>>, %arg7: memref<1x128xf32, #tpu.memory_space<vmem>>, %arg8: memref<128x128xf32, #tpu.memory_space<vmem>>, %arg9: memref<1x128xf32, #tpu.memory_space<vmem>>, %arg10: memref<4x16x128xf32, #tpu.memory_space<vmem>>, %arg11: memref<4x16x128xf32, #tpu.memory_space<vmem>>, %arg12: memref<4x16x128xf32, #tpu.memory_space<vmem>>) attributes {dimension_semantics = [#tpu.dimension_semantics<parallel>], iteration_bounds = array<i64: 1>, scalar_prefetch = 0 : i64, scratch_operands = 2 : i64, tpu.core_type = #tpu.core_type<tc>, window_params = [{transform_indices = @transform_0, window_bounds = array<i64: 4, 16, 128>}, {pipeline_mode = #tpu.pipeline_mode<synchronous>, transform_indices = @transform_1, window_bounds = array<i64: 1, 128>}, {pipeline_mode = #tpu.pipeline_mode<synchronous>, transform_indices = @transform_2, window_bounds = array<i64: 1, 128>}, {pipeline_mode = #tpu.pipeline_mode<synchronous>, transform_indices = @transform_3, window_bounds = array<i64: 128, 384>}, {pipeline_mode = #tpu.pipeline_mode<synchronous>, transform_indices = @transform_4, window_bounds = array<i64: 1, 384>}, {pipeline_mode = #tpu.pipeline_mode<synchronous>, transform_indices = @transform_5, window_bounds = array<i64: 8, 128>}, {pipeline_mode = #tpu.pipeline_mode<synchronous>, transform_indices = @transform_6, window_bounds = array<i64: 1, 128>}, {pipeline_mode = #tpu.pipeline_mode<synchronous>, transform_indices = @transform_7, window_bounds = array<i64: 128, 128>}, {pipeline_mode = #tpu.pipeline_mode<synchronous>, transform_indices = @transform_8, window_bounds = array<i64: 1, 128>}, {transform_indices = @transform_9, window_bounds = array<i64: 4, 16, 128>}]} {
    %c0 = arith.constant 0 : index
    %c0_0 = arith.constant 0 : index
    %c0_1 = arith.constant 0 : index
    %0 = vector.load %arg1[%c0, %c0_0, %c0_1] : memref<4x16x128xf32, #tpu.memory_space<vmem>>, vector<4x16x128xf32>
    %1 = vector.shape_cast %0 : vector<4x16x128xf32> to vector<64x128xf32>
    %2 = tpu.iota {dimensions = array<i32: 1>} : vector<1x128xi32>
    %c32_i32 = arith.constant 32 : i32
    %3 = vector.broadcast %c32_i32 : i32 to vector<1x128xi32>
    %4 = arith.cmpi slt, %2, %3 : vector<1x128xi32>
    %5 = arith.extui %4 : vector<1x128xi1> to vector<1x128xi32>
    %6 = arith.sitofp %5 : vector<1x128xi32> to vector<1x128xf32>
    %cst = arith.constant dense<0.000000e+00> : vector<64xf32>
    %7 = vector.multi_reduction <add>, %1, %cst [1] : vector<64x128xf32> to vector<64xf32>
    %8 = vector.shape_cast %7 : vector<64xf32> to vector<64x1xf32>
    %cst_2 = arith.constant 3.125000e-02 : f32
    %9 = vector.broadcast %cst_2 : f32 to vector<64x1xf32>
    %10 = arith.mulf %8, %9 : vector<64x1xf32>
    %11 = vector.broadcast %10 : vector<64x1xf32> to vector<64x128xf32>
    %12 = arith.subf %1, %11 : vector<64x128xf32>
    %13 = vector.broadcast %6 : vector<1x128xf32> to vector<64x128xf32>
    %14 = arith.mulf %12, %13 : vector<64x128xf32>
    %15 = arith.mulf %14, %14 : vector<64x128xf32>
    %cst_3 = arith.constant dense<0.000000e+00> : vector<64xf32>
    %16 = vector.multi_reduction <add>, %15, %cst_3 [1] : vector<64x128xf32> to vector<64xf32>
    %17 = vector.shape_cast %16 : vector<64xf32> to vector<64x1xf32>
    %cst_4 = arith.constant 3.125000e-02 : f32
    %18 = vector.broadcast %cst_4 : f32 to vector<64x1xf32>
    %19 = arith.mulf %17, %18 : vector<64x1xf32>
    %cst_5 = arith.constant 9.99999974E-6 : f32
    %20 = vector.broadcast %cst_5 : f32 to vector<64x1xf32>
    %21 = arith.addf %19, %20 : vector<64x1xf32>
    %22 = math.rsqrt %21 : vector<64x1xf32>
    %23 = vector.broadcast %22 : vector<64x1xf32> to vector<64x128xf32>
    %24 = arith.mulf %14, %23 : vector<64x128xf32>
    %c0_6 = arith.constant 0 : index
    %c0_7 = arith.constant 0 : index
    %25 = vector.load %arg2[%c0_6, %c0_7] : memref<1x128xf32, #tpu.memory_space<vmem>>, vector<1x128xf32>
    %26 = vector.broadcast %25 : vector<1x128xf32> to vector<64x128xf32>
    %27 = arith.mulf %24, %26 : vector<64x128xf32>
    %c0_8 = arith.constant 0 : index
    %c0_9 = arith.constant 0 : index
    %28 = vector.load %arg3[%c0_8, %c0_9] : memref<1x128xf32, #tpu.memory_space<vmem>>, vector<1x128xf32>
    %29 = vector.broadcast %28 : vector<1x128xf32> to vector<64x128xf32>
    %30 = arith.addf %27, %29 : vector<64x128xf32>
    %c0_10 = arith.constant 0 : index
    %c0_11 = arith.constant 0 : index
    %31 = vector.load %arg4[%c0_10, %c0_11] : memref<128x384xf32, #tpu.memory_space<vmem>>, vector<128x384xf32>
    %cst_12 = arith.constant dense<0.000000e+00> : vector<64x384xf32>
    %32 = tpu.matmul %30, %31, %cst_12 {dimension_numbers = #tpu.dot_dimension_numbers<[1], [0], [0], [1], [0, 0, 1, 1], [], []>} : vector<64x128xf32>, vector<128x384xf32>, vector<64x384xf32> -> vector<64x384xf32>
    %c0_13 = arith.constant 0 : index
    %c0_14 = arith.constant 0 : index
    %33 = vector.load %arg5[%c0_13, %c0_14] : memref<1x384xf32, #tpu.memory_space<vmem>>, vector<1x384xf32>
    %34 = vector.broadcast %33 : vector<1x384xf32> to vector<64x384xf32>
    %35 = arith.addf %32, %34 : vector<64x384xf32>
    %36 = vector.extract_strided_slice %35 {offsets = [0, 0], sizes = [64, 128], strides = [1, 1]} : vector<64x384xf32> to vector<64x128xf32>
    %37 = vector.extract_strided_slice %35 {offsets = [0, 128], sizes = [64, 128], strides = [1, 1]} : vector<64x384xf32> to vector<64x128xf32>
    %38 = vector.extract_strided_slice %35 {offsets = [0, 256], sizes = [64, 128], strides = [1, 1]} : vector<64x384xf32> to vector<64x128xf32>
    %39 = arith.negf %36 : vector<64x128xf32>
    %40 = math.exp %39 : vector<64x128xf32>
    %cst_15 = arith.constant 1.000000e+00 : f32
    %41 = vector.broadcast %cst_15 : f32 to vector<64x128xf32>
    %42 = arith.addf %41, %40 : vector<64x128xf32>
    %43 = arith.divf %41, %42 : vector<64x128xf32>
    %44 = arith.mulf %36, %43 : vector<64x128xf32>
    %45 = arith.negf %37 : vector<64x128xf32>
    %46 = math.exp %45 : vector<64x128xf32>
    %cst_16 = arith.constant 1.000000e+00 : f32
    %47 = vector.broadcast %cst_16 : f32 to vector<64x128xf32>
    %48 = arith.addf %47, %46 : vector<64x128xf32>
    %49 = arith.divf %47, %48 : vector<64x128xf32>
    %50 = arith.mulf %37, %49 : vector<64x128xf32>
    %cst_17 = arith.constant 0.000000e+00 : f32
    %51 = vector.broadcast %cst_17 : f32 to vector<64x128xf32>
    %52 = arith.maximumf %38, %51 : vector<64x128xf32>
    %53 = vector.broadcast %cst_17 : f32 to vector<64x128xf32>
    %54 = arith.subf %38, %53 : vector<64x128xf32>
    %55 = arith.cmpf one, %54, %54 : vector<64x128xf32>
    %56 = vector.broadcast %cst_17 : f32 to vector<64x128xf32>
    %57 = arith.addf %38, %56 : vector<64x128xf32>
    %58 = math.absf %54 : vector<64x128xf32>
    %cst_18 = arith.constant 0.000000e+00 : f32
    %59 = vector.broadcast %cst_18 : f32 to vector<64x128xf32>
    %60 = arith.subf %59, %58 : vector<64x128xf32>
    %61 = math.exp %60 : vector<64x128xf32>
    %62 = math.log1p %61 : vector<64x128xf32>
    %63 = arith.addf %52, %62 : vector<64x128xf32>
    %64 = arith.select %55, %57, %63 : vector<64x128xi1>, vector<64x128xf32>
    %65 = vector.shape_cast %44 : vector<64x128xf32> to vector<4x16x128xf32>
    %c0_19 = arith.constant 0 : index
    %c0_20 = arith.constant 0 : index
    %c0_21 = arith.constant 0 : index
    %66 = vector.load %arg11[%c0_19, %c0_20, %c0_21] : memref<4x16x128xf32, #tpu.memory_space<vmem>>, vector<4x16x128xf32>
    tpu.vector_store %arg11[%c0_19, %c0_20, %c0_21], %65 {strides = array<i32>} : memref<4x16x128xf32, #tpu.memory_space<vmem>>, vector<4x16x128xf32>,
    %67 = vector.shape_cast %64 : vector<64x128xf32> to vector<4x16x128xf32>
    %c0_22 = arith.constant 0 : index
    %c0_23 = arith.constant 0 : index
    %c0_24 = arith.constant 0 : index
    %68 = vector.load %arg12[%c0_22, %c0_23, %c0_24] : memref<4x16x128xf32, #tpu.memory_space<vmem>>, vector<4x16x128xf32>
    tpu.vector_store %arg12[%c0_22, %c0_23, %c0_24], %67 {strides = array<i32>} : memref<4x16x128xf32, #tpu.memory_space<vmem>>, vector<4x16x128xf32>,
    %c0_25 = arith.constant 0 : index
    %c0_26 = arith.constant 0 : index
    %69 = vector.load %arg6[%c0_25, %c0_26] : memref<8x128xf32, #tpu.memory_space<vmem>>, vector<8x128xf32>
    %70 = vector.shape_cast %69 : vector<8x128xf32> to vector<1x1x8x128xf32>
    %cst_27 = arith.constant 0.000000e+00 : f32
    %71 = vector.broadcast %cst_27 : f32 to vector<4x8x128xf32>
    %c0_i32 = arith.constant 0 : i32
    %c8_i32 = arith.constant 8 : i32
    %72 = arith.muli %c0_i32, %c8_i32 : i32
    %73 = tpu.assume_multiple %72, 8 : i32
    %c0_28 = arith.constant 0 : index
    %74 = arith.index_cast %73 : i32 to index
    %c0_29 = arith.constant 0 : index
    %75 = vector.load %arg11[%c0_28, %74, %c0_29] : memref<4x16x128xf32, #tpu.memory_space<vmem>>, vector<4x8x128xf32>
    %c0_30 = arith.constant 0 : index
    %76 = arith.index_cast %73 : i32 to index
    %c0_31 = arith.constant 0 : index
    %77 = vector.load %arg12[%c0_30, %76, %c0_31] : memref<4x16x128xf32, #tpu.memory_space<vmem>>, vector<4x8x128xf32>
    %78 = vector.shape_cast %77 : vector<4x8x128xf32> to vector<4x8x1x128xf32>
    %79 = vector.broadcast %70 : vector<1x1x8x128xf32> to vector<4x8x8x128xf32>
    %80 = vector.broadcast %78 : vector<4x8x1x128xf32> to vector<4x8x8x128xf32>
    %81 = arith.mulf %79, %80 : vector<4x8x8x128xf32>
    %82 = math.exp %81 : vector<4x8x8x128xf32>
    %83 = vector.extract_strided_slice %82 {offsets = [0, 0, 0, 0], sizes = [4, 1, 8, 128], strides = [1, 1, 1, 1]} : vector<4x8x8x128xf32> to vector<4x1x8x128xf32>
    %84 = vector.shape_cast %83 : vector<4x1x8x128xf32> to vector<4x8x128xf32>
    %85 = arith.mulf %71, %84 : vector<4x8x128xf32>
    %86 = vector.extract_strided_slice %75 {offsets = [0, 0, 0], sizes = [4, 1, 128], strides = [1, 1, 1]} : vector<4x8x128xf32> to vector<4x1x128xf32>
    %87 = vector.shape_cast %86 : vector<4x1x128xf32> to vector<4x128xf32>
    %88 = vector.shape_cast %87 : vector<4x128xf32> to vector<4x1x128xf32>
    %89 = vector.broadcast %88 : vector<4x1x128xf32> to vector<4x8x128xf32>
    %90 = arith.addf %85, %89 : vector<4x8x128xf32>
    %cst_32 = arith.constant dense<0.000000e+00> : vector<4x128xf32>
    %91 = vector.multi_reduction <add>, %90, %cst_32 [1] : vector<4x8x128xf32> to vector<4x128xf32>
    %92 = vector.shape_cast %91 : vector<4x128xf32> to vector<4x1x128xf32>
    %93 = vector.extract_strided_slice %82 {offsets = [0, 1, 0, 0], sizes = [4, 1, 8, 128], strides = [1, 1, 1, 1]} : vector<4x8x8x128xf32> to vector<4x1x8x128xf32>
    %94 = vector.shape_cast %93 : vector<4x1x8x128xf32> to vector<4x8x128xf32>
    %95 = arith.mulf %90, %94 : vector<4x8x128xf32>
    %96 = vector.extract_strided_slice %75 {offsets = [0, 1, 0], sizes = [4, 1, 128], strides = [1, 1, 1]} : vector<4x8x128xf32> to vector<4x1x128xf32>
    %97 = vector.shape_cast %96 : vector<4x1x128xf32> to vector<4x128xf32>
    %98 = vector.shape_cast %97 : vector<4x128xf32> to vector<4x1x128xf32>
    %99 = vector.broadcast %98 : vector<4x1x128xf32> to vector<4x8x128xf32>
    %100 = arith.addf %95, %99 : vector<4x8x128xf32>
    %cst_33 = arith.constant dense<0.000000e+00> : vector<4x128xf32>
    %101 = vector.multi_reduction <add>, %100, %cst_33 [1] : vector<4x8x128xf32> to vector<4x128xf32>
    %102 = vector.shape_cast %101 : vector<4x128xf32> to vector<4x1x128xf32>
    %103 = vector.extract_strided_slice %82 {offsets = [0, 2, 0, 0], sizes = [4, 1, 8, 128], strides = [1, 1, 1, 1]} : vector<4x8x8x128xf32> to vector<4x1x8x128xf32>
    %104 = vector.shape_cast %103 : vector<4x1x8x128xf32> to vector<4x8x128xf32>
    %105 = arith.mulf %100, %104 : vector<4x8x128xf32>
    %106 = vector.extract_strided_slice %75 {offsets = [0, 2, 0], sizes = [4, 1, 128], strides = [1, 1, 1]} : vector<4x8x128xf32> to vector<4x1x128xf32>
    %107 = vector.shape_cast %106 : vector<4x1x128xf32> to vector<4x128xf32>
    %108 = vector.shape_cast %107 : vector<4x128xf32> to vector<4x1x128xf32>
    %109 = vector.broadcast %108 : vector<4x1x128xf32> to vector<4x8x128xf32>
    %110 = arith.addf %105, %109 : vector<4x8x128xf32>
    %cst_34 = arith.constant dense<0.000000e+00> : vector<4x128xf32>
    %111 = vector.multi_reduction <add>, %110, %cst_34 [1] : vector<4x8x128xf32> to vector<4x128xf32>
    %112 = vector.shape_cast %111 : vector<4x128xf32> to vector<4x1x128xf32>
    %113 = vector.extract_strided_slice %82 {offsets = [0, 3, 0, 0], sizes = [4, 1, 8, 128], strides = [1, 1, 1, 1]} : vector<4x8x8x128xf32> to vector<4x1x8x128xf32>
    %114 = vector.shape_cast %113 : vector<4x1x8x128xf32> to vector<4x8x128xf32>
    %115 = arith.mulf %110, %114 : vector<4x8x128xf32>
    %116 = vector.extract_strided_slice %75 {offsets = [0, 3, 0], sizes = [4, 1, 128], strides = [1, 1, 1]} : vector<4x8x128xf32> to vector<4x1x128xf32>
    %117 = vector.shape_cast %116 : vector<4x1x128xf32> to vector<4x128xf32>
    %118 = vector.shape_cast %117 : vector<4x128xf32> to vector<4x1x128xf32>
    %119 = vector.broadcast %118 : vector<4x1x128xf32> to vector<4x8x128xf32>
    %120 = arith.addf %115, %119 : vector<4x8x128xf32>
    %cst_35 = arith.constant dense<0.000000e+00> : vector<4x128xf32>
    %121 = vector.multi_reduction <add>, %120, %cst_35 [1] : vector<4x8x128xf32> to vector<4x128xf32>
    %122 = vector.shape_cast %121 : vector<4x128xf32> to vector<4x1x128xf32>
    %123 = vector.extract_strided_slice %82 {offsets = [0, 4, 0, 0], sizes = [4, 1, 8, 128], strides = [1, 1, 1, 1]} : vector<4x8x8x128xf32> to vector<4x1x8x128xf32>
    %124 = vector.shape_cast %123 : vector<4x1x8x128xf32> to vector<4x8x128xf32>
    %125 = arith.mulf %120, %124 : vector<4x8x128xf32>
    %126 = vector.extract_strided_slice %75 {offsets = [0, 4, 0], sizes = [4, 1, 128], strides = [1, 1, 1]} : vector<4x8x128xf32> to vector<4x1x128xf32>
    %127 = vector.shape_cast %126 : vector<4x1x128xf32> to vector<4x128xf32>
    %128 = vector.shape_cast %127 : vector<4x128xf32> to vector<4x1x128xf32>
    %129 = vector.broadcast %128 : vector<4x1x128xf32> to vector<4x8x128xf32>
    %130 = arith.addf %125, %129 : vector<4x8x128xf32>
    %cst_36 = arith.constant dense<0.000000e+00> : vector<4x128xf32>
    %131 = vector.multi_reduction <add>, %130, %cst_36 [1] : vector<4x8x128xf32> to vector<4x128xf32>
    %132 = vector.shape_cast %131 : vector<4x128xf32> to vector<4x1x128xf32>
    %133 = vector.extract_strided_slice %82 {offsets = [0, 5, 0, 0], sizes = [4, 1, 8, 128], strides = [1, 1, 1, 1]} : vector<4x8x8x128xf32> to vector<4x1x8x128xf32>
    %134 = vector.shape_cast %133 : vector<4x1x8x128xf32> to vector<4x8x128xf32>
    %135 = arith.mulf %130, %134 : vector<4x8x128xf32>
    %136 = vector.extract_strided_slice %75 {offsets = [0, 5, 0], sizes = [4, 1, 128], strides = [1, 1, 1]} : vector<4x8x128xf32> to vector<4x1x128xf32>
    %137 = vector.shape_cast %136 : vector<4x1x128xf32> to vector<4x128xf32>
    %138 = vector.shape_cast %137 : vector<4x128xf32> to vector<4x1x128xf32>
    %139 = vector.broadcast %138 : vector<4x1x128xf32> to vector<4x8x128xf32>
    %140 = arith.addf %135, %139 : vector<4x8x128xf32>
    %cst_37 = arith.constant dense<0.000000e+00> : vector<4x128xf32>
    %141 = vector.multi_reduction <add>, %140, %cst_37 [1] : vector<4x8x128xf32> to vector<4x128xf32>
    %142 = vector.shape_cast %141 : vector<4x128xf32> to vector<4x1x128xf32>
    %143 = vector.extract_strided_slice %82 {offsets = [0, 6, 0, 0], sizes = [4, 1, 8, 128], strides = [1, 1, 1, 1]} : vector<4x8x8x128xf32> to vector<4x1x8x128xf32>
    %144 = vector.shape_cast %143 : vector<4x1x8x128xf32> to vector<4x8x128xf32>
    %145 = arith.mulf %140, %144 : vector<4x8x128xf32>
    %146 = vector.extract_strided_slice %75 {offsets = [0, 6, 0], sizes = [4, 1, 128], strides = [1, 1, 1]} : vector<4x8x128xf32> to vector<4x1x128xf32>
    %147 = vector.shape_cast %146 : vector<4x1x128xf32> to vector<4x128xf32>
    %148 = vector.shape_cast %147 : vector<4x128xf32> to vector<4x1x128xf32>
    %149 = vector.broadcast %148 : vector<4x1x128xf32> to vector<4x8x128xf32>
    %150 = arith.addf %145, %149 : vector<4x8x128xf32>
    %cst_38 = arith.constant dense<0.000000e+00> : vector<4x128xf32>
    %151 = vector.multi_reduction <add>, %150, %cst_38 [1] : vector<4x8x128xf32> to vector<4x128xf32>
    %152 = vector.shape_cast %151 : vector<4x128xf32> to vector<4x1x128xf32>
    %153 = vector.extract_strided_slice %82 {offsets = [0, 7, 0, 0], sizes = [4, 1, 8, 128], strides = [1, 1, 1, 1]} : vector<4x8x8x128xf32> to vector<4x1x8x128xf32>
    %154 = vector.shape_cast %153 : vector<4x1x8x128xf32> to vector<4x8x128xf32>
    %155 = arith.mulf %150, %154 : vector<4x8x128xf32>
    %156 = vector.extract_strided_slice %75 {offsets = [0, 7, 0], sizes = [4, 1, 128], strides = [1, 1, 1]} : vector<4x8x128xf32> to vector<4x1x128xf32>
    %157 = vector.shape_cast %156 : vector<4x1x128xf32> to vector<4x128xf32>
    %158 = vector.shape_cast %157 : vector<4x128xf32> to vector<4x1x128xf32>
    %159 = vector.broadcast %158 : vector<4x1x128xf32> to vector<4x8x128xf32>
    %160 = arith.addf %155, %159 : vector<4x8x128xf32>
    %cst_39 = arith.constant dense<0.000000e+00> : vector<4x128xf32>
    %161 = vector.multi_reduction <add>, %160, %cst_39 [1] : vector<4x8x128xf32> to vector<4x128xf32>
    %162 = vector.shape_cast %161 : vector<4x128xf32> to vector<4x1x128xf32>
    %163 = tpu.concatenate %92, %102, %112, %122, %132, %142, %152, %162 in 1 : vector<4x1x128xf32>, vector<4x1x128xf32>, vector<4x1x128xf32>, vector<4x1x128xf32>, vector<4x1x128xf32>, vector<4x1x128xf32>, vector<4x1x128xf32>, vector<4x1x128xf32> -> vector<4x8x128xf32>
    %c0_40 = arith.constant 0 : index
    %164 = arith.index_cast %73 : i32 to index
    %c0_41 = arith.constant 0 : index
    %165 = vector.load %arg12[%c0_40, %164, %c0_41] : memref<4x16x128xf32, #tpu.memory_space<vmem>>, vector<4x8x128xf32>
    tpu.vector_store %arg12[%c0_40, %164, %c0_41], %163 {strides = array<i32>} : memref<4x16x128xf32, #tpu.memory_space<vmem>>, vector<4x8x128xf32>,
    %c1_i32 = arith.constant 1 : i32
    %c8_i32_42 = arith.constant 8 : i32
    %166 = arith.muli %c1_i32, %c8_i32_42 : i32
    %167 = tpu.assume_multiple %166, 8 : i32
    %c0_43 = arith.constant 0 : index
    %168 = arith.index_cast %167 : i32 to index
    %c0_44 = arith.constant 0 : index
    %169 = vector.load %arg11[%c0_43, %168, %c0_44] : memref<4x16x128xf32, #tpu.memory_space<vmem>>, vector<4x8x128xf32>
    %c0_45 = arith.constant 0 : index
    %170 = arith.index_cast %167 : i32 to index
    %c0_46 = arith.constant 0 : index
    %171 = vector.load %arg12[%c0_45, %170, %c0_46] : memref<4x16x128xf32, #tpu.memory_space<vmem>>, vector<4x8x128xf32>
    %172 = vector.shape_cast %171 : vector<4x8x128xf32> to vector<4x8x1x128xf32>
    %173 = vector.broadcast %70 : vector<1x1x8x128xf32> to vector<4x8x8x128xf32>
    %174 = vector.broadcast %172 : vector<4x8x1x128xf32> to vector<4x8x8x128xf32>
    %175 = arith.mulf %173, %174 : vector<4x8x8x128xf32>
    %176 = math.exp %175 : vector<4x8x8x128xf32>
    %177 = vector.extract_strided_slice %176 {offsets = [0, 0, 0, 0], sizes = [4, 1, 8, 128], strides = [1, 1, 1, 1]} : vector<4x8x8x128xf32> to vector<4x1x8x128xf32>
    %178 = vector.shape_cast %177 : vector<4x1x8x128xf32> to vector<4x8x128xf32>
    %179 = arith.mulf %160, %178 : vector<4x8x128xf32>
    %180 = vector.extract_strided_slice %169 {offsets = [0, 0, 0], sizes = [4, 1, 128], strides = [1, 1, 1]} : vector<4x8x128xf32> to vector<4x1x128xf32>
    %181 = vector.shape_cast %180 : vector<4x1x128xf32> to vector<4x128xf32>
    %182 = vector.shape_cast %181 : vector<4x128xf32> to vector<4x1x128xf32>
    %183 = vector.broadcast %182 : vector<4x1x128xf32> to vector<4x8x128xf32>
    %184 = arith.addf %179, %183 : vector<4x8x128xf32>
    %cst_47 = arith.constant dense<0.000000e+00> : vector<4x128xf32>
    %185 = vector.multi_reduction <add>, %184, %cst_47 [1] : vector<4x8x128xf32> to vector<4x128xf32>
    %186 = vector.shape_cast %185 : vector<4x128xf32> to vector<4x1x128xf32>
    %187 = vector.extract_strided_slice %176 {offsets = [0, 1, 0, 0], sizes = [4, 1, 8, 128], strides = [1, 1, 1, 1]} : vector<4x8x8x128xf32> to vector<4x1x8x128xf32>
    %188 = vector.shape_cast %187 : vector<4x1x8x128xf32> to vector<4x8x128xf32>
    %189 = arith.mulf %184, %188 : vector<4x8x128xf32>
    %190 = vector.extract_strided_slice %169 {offsets = [0, 1, 0], sizes = [4, 1, 128], strides = [1, 1, 1]} : vector<4x8x128xf32> to vector<4x1x128xf32>
    %191 = vector.shape_cast %190 : vector<4x1x128xf32> to vector<4x128xf32>
    %192 = vector.shape_cast %191 : vector<4x128xf32> to vector<4x1x128xf32>
    %193 = vector.broadcast %192 : vector<4x1x128xf32> to vector<4x8x128xf32>
    %194 = arith.addf %189, %193 : vector<4x8x128xf32>
    %cst_48 = arith.constant dense<0.000000e+00> : vector<4x128xf32>
    %195 = vector.multi_reduction <add>, %194, %cst_48 [1] : vector<4x8x128xf32> to vector<4x128xf32>
    %196 = vector.shape_cast %195 : vector<4x128xf32> to vector<4x1x128xf32>
    %197 = vector.extract_strided_slice %176 {offsets = [0, 2, 0, 0], sizes = [4, 1, 8, 128], strides = [1, 1, 1, 1]} : vector<4x8x8x128xf32> to vector<4x1x8x128xf32>
    %198 = vector.shape_cast %197 : vector<4x1x8x128xf32> to vector<4x8x128xf32>
    %199 = arith.mulf %194, %198 : vector<4x8x128xf32>
    %200 = vector.extract_strided_slice %169 {offsets = [0, 2, 0], sizes = [4, 1, 128], strides = [1, 1, 1]} : vector<4x8x128xf32> to vector<4x1x128xf32>
    %201 = vector.shape_cast %200 : vector<4x1x128xf32> to vector<4x128xf32>
    %202 = vector.shape_cast %201 : vector<4x128xf32> to vector<4x1x128xf32>
    %203 = vector.broadcast %202 : vector<4x1x128xf32> to vector<4x8x128xf32>
    %204 = arith.addf %199, %203 : vector<4x8x128xf32>
    %cst_49 = arith.constant dense<0.000000e+00> : vector<4x128xf32>
    %205 = vector.multi_reduction <add>, %204, %cst_49 [1] : vector<4x8x128xf32> to vector<4x128xf32>
    %206 = vector.shape_cast %205 : vector<4x128xf32> to vector<4x1x128xf32>
    %207 = vector.extract_strided_slice %176 {offsets = [0, 3, 0, 0], sizes = [4, 1, 8, 128], strides = [1, 1, 1, 1]} : vector<4x8x8x128xf32> to vector<4x1x8x128xf32>
    %208 = vector.shape_cast %207 : vector<4x1x8x128xf32> to vector<4x8x128xf32>
    %209 = arith.mulf %204, %208 : vector<4x8x128xf32>
    %210 = vector.extract_strided_slice %169 {offsets = [0, 3, 0], sizes = [4, 1, 128], strides = [1, 1, 1]} : vector<4x8x128xf32> to vector<4x1x128xf32>
    %211 = vector.shape_cast %210 : vector<4x1x128xf32> to vector<4x128xf32>
    %212 = vector.shape_cast %211 : vector<4x128xf32> to vector<4x1x128xf32>
    %213 = vector.broadcast %212 : vector<4x1x128xf32> to vector<4x8x128xf32>
    %214 = arith.addf %209, %213 : vector<4x8x128xf32>
    %cst_50 = arith.constant dense<0.000000e+00> : vector<4x128xf32>
    %215 = vector.multi_reduction <add>, %214, %cst_50 [1] : vector<4x8x128xf32> to vector<4x128xf32>
    %216 = vector.shape_cast %215 : vector<4x128xf32> to vector<4x1x128xf32>
    %217 = vector.extract_strided_slice %176 {offsets = [0, 4, 0, 0], sizes = [4, 1, 8, 128], strides = [1, 1, 1, 1]} : vector<4x8x8x128xf32> to vector<4x1x8x128xf32>
    %218 = vector.shape_cast %217 : vector<4x1x8x128xf32> to vector<4x8x128xf32>
    %219 = arith.mulf %214, %218 : vector<4x8x128xf32>
    %220 = vector.extract_strided_slice %169 {offsets = [0, 4, 0], sizes = [4, 1, 128], strides = [1, 1, 1]} : vector<4x8x128xf32> to vector<4x1x128xf32>
    %221 = vector.shape_cast %220 : vector<4x1x128xf32> to vector<4x128xf32>
    %222 = vector.shape_cast %221 : vector<4x128xf32> to vector<4x1x128xf32>
    %223 = vector.broadcast %222 : vector<4x1x128xf32> to vector<4x8x128xf32>
    %224 = arith.addf %219, %223 : vector<4x8x128xf32>
    %cst_51 = arith.constant dense<0.000000e+00> : vector<4x128xf32>
    %225 = vector.multi_reduction <add>, %224, %cst_51 [1] : vector<4x8x128xf32> to vector<4x128xf32>
    %226 = vector.shape_cast %225 : vector<4x128xf32> to vector<4x1x128xf32>
    %227 = vector.extract_strided_slice %176 {offsets = [0, 5, 0, 0], sizes = [4, 1, 8, 128], strides = [1, 1, 1, 1]} : vector<4x8x8x128xf32> to vector<4x1x8x128xf32>
    %228 = vector.shape_cast %227 : vector<4x1x8x128xf32> to vector<4x8x128xf32>
    %229 = arith.mulf %224, %228 : vector<4x8x128xf32>
    %230 = vector.extract_strided_slice %169 {offsets = [0, 5, 0], sizes = [4, 1, 128], strides = [1, 1, 1]} : vector<4x8x128xf32> to vector<4x1x128xf32>
    %231 = vector.shape_cast %230 : vector<4x1x128xf32> to vector<4x128xf32>
    %232 = vector.shape_cast %231 : vector<4x128xf32> to vector<4x1x128xf32>
    %233 = vector.broadcast %232 : vector<4x1x128xf32> to vector<4x8x128xf32>
    %234 = arith.addf %229, %233 : vector<4x8x128xf32>
    %cst_52 = arith.constant dense<0.000000e+00> : vector<4x128xf32>
    %235 = vector.multi_reduction <add>, %234, %cst_52 [1] : vector<4x8x128xf32> to vector<4x128xf32>
    %236 = vector.shape_cast %235 : vector<4x128xf32> to vector<4x1x128xf32>
    %237 = vector.extract_strided_slice %176 {offsets = [0, 6, 0, 0], sizes = [4, 1, 8, 128], strides = [1, 1, 1, 1]} : vector<4x8x8x128xf32> to vector<4x1x8x128xf32>
    %238 = vector.shape_cast %237 : vector<4x1x8x128xf32> to vector<4x8x128xf32>
    %239 = arith.mulf %234, %238 : vector<4x8x128xf32>
    %240 = vector.extract_strided_slice %169 {offsets = [0, 6, 0], sizes = [4, 1, 128], strides = [1, 1, 1]} : vector<4x8x128xf32> to vector<4x1x128xf32>
    %241 = vector.shape_cast %240 : vector<4x1x128xf32> to vector<4x128xf32>
    %242 = vector.shape_cast %241 : vector<4x128xf32> to vector<4x1x128xf32>
    %243 = vector.broadcast %242 : vector<4x1x128xf32> to vector<4x8x128xf32>
    %244 = arith.addf %239, %243 : vector<4x8x128xf32>
    %cst_53 = arith.constant dense<0.000000e+00> : vector<4x128xf32>
    %245 = vector.multi_reduction <add>, %244, %cst_53 [1] : vector<4x8x128xf32> to vector<4x128xf32>
    %246 = vector.shape_cast %245 : vector<4x128xf32> to vector<4x1x128xf32>
    %247 = vector.extract_strided_slice %176 {offsets = [0, 7, 0, 0], sizes = [4, 1, 8, 128], strides = [1, 1, 1, 1]} : vector<4x8x8x128xf32> to vector<4x1x8x128xf32>
    %248 = vector.shape_cast %247 : vector<4x1x8x128xf32> to vector<4x8x128xf32>
    %249 = arith.mulf %244, %248 : vector<4x8x128xf32>
    %250 = vector.extract_strided_slice %169 {offsets = [0, 7, 0], sizes = [4, 1, 128], strides = [1, 1, 1]} : vector<4x8x128xf32> to vector<4x1x128xf32>
    %251 = vector.shape_cast %250 : vector<4x1x128xf32> to vector<4x128xf32>
    %252 = vector.shape_cast %251 : vector<4x128xf32> to vector<4x1x128xf32>
    %253 = vector.broadcast %252 : vector<4x1x128xf32> to vector<4x8x128xf32>
    %254 = arith.addf %249, %253 : vector<4x8x128xf32>
    %cst_54 = arith.constant dense<0.000000e+00> : vector<4x128xf32>
    %255 = vector.multi_reduction <add>, %254, %cst_54 [1] : vector<4x8x128xf32> to vector<4x128xf32>
    %256 = vector.shape_cast %255 : vector<4x128xf32> to vector<4x1x128xf32>
    %257 = tpu.concatenate %186, %196, %206, %216, %226, %236, %246, %256 in 1 : vector<4x1x128xf32>, vector<4x1x128xf32>, vector<4x1x128xf32>, vector<4x1x128xf32>, vector<4x1x128xf32>, vector<4x1x128xf32>, vector<4x1x128xf32>, vector<4x1x128xf32> -> vector<4x8x128xf32>
    %c0_55 = arith.constant 0 : index
    %258 = arith.index_cast %167 : i32 to index
    %c0_56 = arith.constant 0 : index
    %259 = vector.load %arg12[%c0_55, %258, %c0_56] : memref<4x16x128xf32, #tpu.memory_space<vmem>>, vector<4x8x128xf32>
    tpu.vector_store %arg12[%c0_55, %258, %c0_56], %257 {strides = array<i32>} : memref<4x16x128xf32, #tpu.memory_space<vmem>>, vector<4x8x128xf32>,
    %c2_i32 = arith.constant 2 : i32
    %c0_57 = arith.constant 0 : index
    %c0_58 = arith.constant 0 : index
    %c0_59 = arith.constant 0 : index
    %260 = vector.load %arg12[%c0_57, %c0_58, %c0_59] : memref<4x16x128xf32, #tpu.memory_space<vmem>>, vector<4x16x128xf32>
    %261 = vector.shape_cast %260 : vector<4x16x128xf32> to vector<64x128xf32>
    %c0_60 = arith.constant 0 : index
    %c0_61 = arith.constant 0 : index
    %c0_62 = arith.constant 0 : index
    %262 = vector.load %arg11[%c0_60, %c0_61, %c0_62] : memref<4x16x128xf32, #tpu.memory_space<vmem>>, vector<4x16x128xf32>
    %263 = vector.shape_cast %262 : vector<4x16x128xf32> to vector<64x128xf32>
    %264 = arith.mulf %261, %50 : vector<64x128xf32>
    %c0_63 = arith.constant 0 : index
    %c0_64 = arith.constant 0 : index
    %265 = vector.load %arg7[%c0_63, %c0_64] : memref<1x128xf32, #tpu.memory_space<vmem>>, vector<1x128xf32>
    %266 = vector.broadcast %265 : vector<1x128xf32> to vector<64x128xf32>
    %267 = arith.mulf %263, %266 : vector<64x128xf32>
    %268 = arith.addf %264, %267 : vector<64x128xf32>
    %c0_65 = arith.constant 0 : index
    %c0_66 = arith.constant 0 : index
    %269 = vector.load %arg8[%c0_65, %c0_66] : memref<128x128xf32, #tpu.memory_space<vmem>>, vector<128x128xf32>
    %cst_67 = arith.constant dense<0.000000e+00> : vector<64x128xf32>
    %270 = tpu.matmul %268, %269, %cst_67 {dimension_numbers = #tpu.dot_dimension_numbers<[1], [0], [0], [1], [0, 0, 1, 1], [], []>} : vector<64x128xf32>, vector<128x128xf32>, vector<64x128xf32> -> vector<64x128xf32>
    %c0_68 = arith.constant 0 : index
    %c0_69 = arith.constant 0 : index
    %271 = vector.load %arg9[%c0_68, %c0_69] : memref<1x128xf32, #tpu.memory_space<vmem>>, vector<1x128xf32>
    %272 = vector.broadcast %271 : vector<1x128xf32> to vector<64x128xf32>
    %273 = arith.addf %270, %272 : vector<64x128xf32>
    %274 = vector.shape_cast %273 : vector<64x128xf32> to vector<4x16x128xf32>
    %c0_70 = arith.constant 0 : index
    %c0_71 = arith.constant 0 : index
    %c0_72 = arith.constant 0 : index
    %275 = vector.load %arg1[%c0_70, %c0_71, %c0_72] : memref<4x16x128xf32, #tpu.memory_space<vmem>>, vector<4x16x128xf32>
    %276 = arith.addf %274, %275 : vector<4x16x128xf32>
    %c0_73 = arith.constant 0 : index
    %c0_74 = arith.constant 0 : index
    %c0_75 = arith.constant 0 : index
    %277 = vector.load %arg10[%c0_73, %c0_74, %c0_75] : memref<4x16x128xf32, #tpu.memory_space<vmem>>, vector<4x16x128xf32>
    tpu.vector_store %arg10[%c0_73, %c0_74, %c0_75], %276 {strides = array<i32>} : memref<4x16x128xf32, #tpu.memory_space<vmem>>, vector<4x16x128xf32>,
    return
  }
  func.func @transform_0(%arg0: i32) -> (i32, i32, i32) {
    %c0_i32 = arith.constant 0 : i32
    %c0_i32_0 = arith.constant 0 : i32
    %c0_i32_1 = arith.constant 0 : i32
    return %arg0, %c0_i32, %c0_i32_0 : i32, i32, i32
  }
  func.func @transform_1(%arg0: i32) -> (i32, i32) {
    %c0_i32 = arith.constant 0 : i32
    %c0_i32_0 = arith.constant 0 : i32
    %c0_i32_1 = arith.constant 0 : i32
    return %c0_i32, %c0_i32_0 : i32, i32
  }
  func.func @transform_2(%arg0: i32) -> (i32, i32) {
    %c0_i32 = arith.constant 0 : i32
    %c0_i32_0 = arith.constant 0 : i32
    %c0_i32_1 = arith.constant 0 : i32
    return %c0_i32, %c0_i32_0 : i32, i32
  }
  func.func @transform_3(%arg0: i32) -> (i32, i32) {
    %c0_i32 = arith.constant 0 : i32
    %c0_i32_0 = arith.constant 0 : i32
    %c0_i32_1 = arith.constant 0 : i32
    return %c0_i32, %c0_i32_0 : i32, i32
  }
  func.func @transform_4(%arg0: i32) -> (i32, i32) {
    %c0_i32 = arith.constant 0 : i32
    %c0_i32_0 = arith.constant 0 : i32
    %c0_i32_1 = arith.constant 0 : i32
    return %c0_i32, %c0_i32_0 : i32, i32
  }
  func.func @transform_5(%arg0: i32) -> (i32, i32) {
    %c0_i32 = arith.constant 0 : i32
    %c0_i32_0 = arith.constant 0 : i32
    %c0_i32_1 = arith.constant 0 : i32
    return %c0_i32, %c0_i32_0 : i32, i32
  }
  func.func @transform_6(%arg0: i32) -> (i32, i32) {
    %c0_i32 = arith.constant 0 : i32
    %c0_i32_0 = arith.constant 0 : i32
    %c0_i32_1 = arith.constant 0 : i32
    return %c0_i32, %c0_i32_0 : i32, i32
  }
  func.func @transform_7(%arg0: i32) -> (i32, i32) {
    %c0_i32 = arith.constant 0 : i32
    %c0_i32_0 = arith.constant 0 : i32
    %c0_i32_1 = arith.constant 0 : i32
    return %c0_i32, %c0_i32_0 : i32, i32
  }
  func.func @transform_8(%arg0: i32) -> (i32, i32) {
    %c0_i32 = arith.constant 0 : i32
    %c0_i32_0 = arith.constant 0 : i32
    %c0_i32_1 = arith.constant 0 : i32
    return %c0_i32, %c0_i32_0 : i32, i32
  }
  func.func @transform_9(%arg0: i32) -> (i32, i32, i32) {
    %c0_i32 = arith.constant 0 : i32
    %c0_i32_0 = arith.constant 0 : i32
    %c0_i32_1 = arith.constant 0 : i32
    return %arg0, %c0_i32, %c0_i32_0 : i32, i32, i32
  }
}

</mosaic_0001>

<llo_original>
// kernel: tpu_custom_call.1
$region0: #{tpu_custom_call.1}
  #allocation0 [shape = 'u32[]', space=smem, size = 0x4, offset = 0x4, fixed_abs, tag = 'smem constant byte address 0x4 - core index']
  #allocation1 [shape = 'u32[144,128]{1,0:T(1,128)}', space=vmem, size = 0x12000, scoped, tag = 'internal scratch']
  #allocation2 [shape = 'f32[4,16,128]{2,1,0:T(8,128)}', space=vmem, size = 0x8000, scoped, tag = 'scratch operand']
  #allocation3 [shape = 'f32[4,16,128]{2,1,0:T(8,128)}', space=vmem, size = 0x8000, scoped, tag = 'scratch operand']
  %s0 = inlined_call_operand.hbm [shape: f32[4,16,128], index: 0, kind: input, shape index: {}]
  %s1 = inlined_call_operand.vmem [shape: f32[1,128], index: 1, kind: input, shape index: {}]
  %s2 = inlined_call_operand.vmem [shape: f32[1,128], index: 2, kind: input, shape index: {}]
  %s3 = inlined_call_operand.hbm [shape: f32[128,384], index: 3, kind: input, shape index: {}]
  %s4 = inlined_call_operand.vmem [shape: f32[1,384], index: 4, kind: input, shape index: {}]
  %s5 = inlined_call_operand.vmem [shape: f32[8,128], index: 5, kind: input, shape index: {}]
  %s6 = inlined_call_operand.vmem [shape: f32[1,128], index: 6, kind: input, shape index: {}]
  %s7 = inlined_call_operand.hbm [shape: f32[128,128], index: 7, kind: input, shape index: {}]
  %s8 = inlined_call_operand.vmem [shape: f32[1,128], index: 8, kind: input, shape index: {}]
  %s9 = inlined_call_operand.hbm [shape: f32[4,16,128], index: 9, kind: output, shape index: {}]
  %s10 = sld [smem:[#allocation0]]
  $region58: #{tpu_custom_call.1} parent=0
    _
  %s12 = ssub.s32 1, %s10
  %s13 = scalar_select 0, %s12, %s10
  $region1: #{tpu_custom_call.1} parent=0
    #allocation4 [shape = 'u8[32768]{0}', space=vmem, size = 0x8000, scoped, tag = 'input window, operand 0, single buffered']
    #allocation5 [shape = 's32[1]{0}', space=sflag, size = 0x4, scoped, tag = 'scoped memory for tpu_custom_call.1']
    #allocation6 [shape = 's32[1]{0}', space=sflag, size = 0x4, scoped, tag = 'scoped memory for tpu_custom_call.1']
    #allocation7 [shape = 'u8[196608]{0}', space=vmem, size = 0x30000, scoped, tag = 'input window, operand 3, single buffered']
    #allocation8 [shape = 's32[1]{0}', space=sflag, size = 0x4, scoped, tag = 'scoped memory for tpu_custom_call.1']
    #allocation9 [shape = 'u8[65536]{0}', space=vmem, size = 0x10000, scoped, tag = 'input window, operand 7, single buffered']
    #allocation10 [shape = 'u8[32768]{0}', space=vmem, size = 0x8000, scoped, tag = 'output window, operand 0, single buffered']
    %14 = vsyncpa [#allocation5], 0
    %15 = vsyncpa [#allocation8], 0
    %16 = vsyncpa [#allocation6], 0
    // Predicated region
    $region2: #{tpu_custom_call.1} parent=1 // pred_check
      _
    $region3: #{tpu_custom_call.1} parent=1 // pred_check_branch
      %18 = sbr.rel (0) target = $region5
    $region4: #{tpu_custom_call.1} parent=1 // pred_region
      %s20 = ssub.s32 1024, 1024
      %21 = vsyncadd [#allocation5], %s20
      %s22 = sshll.u32 [#allocation4], 4
      %s23 = int_to_ptr.vmem [resolvable:$true] %s22
      %28 = dma.hbm_to_vmem [thread:$0]  %s0, 1024, %s23, [#allocation5], 128, 128, 8
    $region5: #{tpu_custom_call.1} parent=1 // pred_fallthru
      _
    // Predicated region
    $region6: #{tpu_custom_call.1} parent=1 // pred_check
      _
    $region7: #{tpu_custom_call.1} parent=1 // pred_check_branch
      %30 = sbr.rel (0) target = $region9
    $region8: #{tpu_custom_call.1} parent=1 // pred_region
      _
    $region9: #{tpu_custom_call.1} parent=1 // pred_fallthru
      _
    // Predicated region
    $region10: #{tpu_custom_call.1} parent=1 // pred_check
      _
    $region11: #{tpu_custom_call.1} parent=1 // pred_check_branch
      %32 = sbr.rel (0) target = $region13
    $region12: #{tpu_custom_call.1} parent=1 // pred_region
      _
    $region13: #{tpu_custom_call.1} parent=1 // pred_fallthru
      _
    // Predicated region
    $region14: #{tpu_custom_call.1} parent=1 // pred_check
      _
    $region15: #{tpu_custom_call.1} parent=1 // pred_check_branch
      %34 = sbr.rel (0) target = $region17
    $region16: #{tpu_custom_call.1} parent=1 // pred_region
      %s36 = ssub.s32 6144, 6144
      %37 = vsyncadd [#allocation8], %s36
      %s38 = sshll.u32 [#allocation7], 4
      %s39 = int_to_ptr.vmem [resolvable:$true] %s38
      %44 = dma.hbm_to_vmem [thread:$0]  %s3, 6144, %s39, [#allocation8], 384, 384, 24
    $region17: #{tpu_custom_call.1} parent=1 // pred_fallthru
      _
    // Predicated region
    $region18: #{tpu_custom_call.1} parent=1 // pred_check
      _
    $region19: #{tpu_custom_call.1} parent=1 // pred_check_branch
      %46 = sbr.rel (0) target = $region21
    $region20: #{tpu_custom_call.1} parent=1 // pred_region
      _
    $region21: #{tpu_custom_call.1} parent=1 // pred_fallthru
      _
    // Predicated region
    $region22: #{tpu_custom_call.1} parent=1 // pred_check
      _
    $region23: #{tpu_custom_call.1} parent=1 // pred_check_branch
      %48 = sbr.rel (0) target = $region25
    $region24: #{tpu_custom_call.1} parent=1 // pred_region
      _
    $region25: #{tpu_custom_call.1} parent=1 // pred_fallthru
      _
    // Predicated region
    $region26: #{tpu_custom_call.1} parent=1 // pred_check
      _
    $region27: #{tpu_custom_call.1} parent=1 // pred_check_branch
      %50 = sbr.rel (0) target = $region29
    $region28: #{tpu_custom_call.1} parent=1 // pred_region
      _
    $region29: #{tpu_custom_call.1} parent=1 // pred_fallthru
      _
    // Predicated region
    $region30: #{tpu_custom_call.1} parent=1 // pred_check
      _
    $region31: #{tpu_custom_call.1} parent=1 // pred_check_branch
      %52 = sbr.rel (0) target = $region33
    $region32: #{tpu_custom_call.1} parent=1 // pred_region
      %s54 = ssub.s32 2048, 2048
      %55 = vsyncadd [#allocation8], %s54
      %s56 = sshll.u32 [#allocation9], 4
      %s57 = int_to_ptr.vmem [resolvable:$true] %s56
      %62 = dma.hbm_to_vmem [thread:$0]  %s7, 2048, %s57, [#allocation8], 128, 128, 8
    $region33: #{tpu_custom_call.1} parent=1 // pred_fallthru
      _
    // Predicated region
    $region34: #{tpu_custom_call.1} parent=1 // pred_check
      _
    $region35: #{tpu_custom_call.1} parent=1 // pred_check_branch
      %64 = sbr.rel (0) target = $region37
    $region36: #{tpu_custom_call.1} parent=1 // pred_region
      _
    $region37: #{tpu_custom_call.1} parent=1 // pred_fallthru
      _
    // Predicated region
    $region38: #{tpu_custom_call.1} parent=1 // pred_check
      _
    $region39: #{tpu_custom_call.1} parent=1 // pred_check_branch
      %66 = sbr.rel (0) target = $region41
    $region40: #{tpu_custom_call.1} parent=1 // pred_region
      %67 = dma.done [#allocation5], 1024
    $region41: #{tpu_custom_call.1} parent=1 // pred_fallthru
      _
    // Predicated region
    $region42: #{tpu_custom_call.1} parent=1 // pred_check
      _
    $region43: #{tpu_custom_call.1} parent=1 // pred_check_branch
      %69 = sbr.rel (0) target = $region45
    $region44: #{tpu_custom_call.1} parent=1 // pred_region
      %70 = dma.done [#allocation8], 6144
    $region45: #{tpu_custom_call.1} parent=1 // pred_fallthru
      _
    // Predicated region
    $region46: #{tpu_custom_call.1} parent=1 // pred_check
      _
    $region47: #{tpu_custom_call.1} parent=1 // pred_check_branch
      %72 = sbr.rel (0) target = $region49
    $region48: #{tpu_custom_call.1} parent=1 // pred_region
      %73 = dma.done [#allocation8], 2048
    $region49: #{tpu_custom_call.1} parent=1 // pred_fallthru
      _
    %v74 = vld [vmem:[#allocation4] sm:$0xff]
    %v75 = vld [vmem:[#allocation4 + $0x8] sm:$0xff]
    %v76 = vld [vmem:[#allocation4 + $0x10] sm:$0xff]
    %v77 = vld [vmem:[#allocation4 + $0x18] sm:$0xff]
    %v78 = vld [vmem:[#allocation4 + $0x20] sm:$0xff]
    %v79 = vld [vmem:[#allocation4 + $0x28] sm:$0xff]
    %v80 = vld [vmem:[#allocation4 + $0x30] sm:$0xff]
    %v81 = vld [vmem:[#allocation4 + $0x38] sm:$0xff]
    %v82 = vlaneseq
    %v83 = vand.u32 %v82, 127
    %vm84 = vcmp.lt.s32.totalorder %v83, 32
    %v85 = vsel %vm84, 1, 0
    %v86 = vcvt.s32.f32 %v85
    %87 = vadd.xlane.f32.xlu0 %v74
    %v88 = vpop.xlane.xlu0 %87
    %89 = vadd.xlane.f32.xlu0 %v75
    %v90 = vpop.xlane.xlu0 %89
    %91 = vadd.xlane.f32.xlu0 %v76
    %v92 = vpop.xlane.xlu0 %91
    %93 = vadd.xlane.f32.xlu0 %v77
    %v94 = vpop.xlane.xlu0 %93
    %95 = vadd.xlane.f32.xlu0 %v78
    %v96 = vpop.xlane.xlu0 %95
    %97 = vadd.xlane.f32.xlu0 %v79
    %v98 = vpop.xlane.xlu0 %97
    %99 = vadd.xlane.f32.xlu0 %v80
    %v100 = vpop.xlane.xlu0 %99
    %101 = vadd.xlane.f32.xlu0 %v81
    %v102 = vpop.xlane.xlu0 %101
    %v103 = vmul.f32 %v88, 0.03125
    %v104 = vmul.f32 %v90, 0.03125
    %v105 = vmul.f32 %v92, 0.03125
    %v106 = vmul.f32 %v94, 0.03125
    %v107 = vmul.f32 %v96, 0.03125
    %v108 = vmul.f32 %v98, 0.03125
    %v109 = vmul.f32 %v100, 0.03125
    %v110 = vmul.f32 %v102, 0.03125
    %v111 = vsub.f32 %v74, %v103
    %v112 = vsub.f32 %v75, %v104
    %v113 = vsub.f32 %v76, %v105
    %v114 = vsub.f32 %v77, %v106
    %v115 = vsub.f32 %v78, %v107
    %v116 = vsub.f32 %v79, %v108
    %v117 = vsub.f32 %v80, %v109
    %v118 = vsub.f32 %v81, %v110
    %v119 = vmul.f32 %v111, %v86
    %v120 = vmul.f32 %v112, %v86
    %v121 = vmul.f32 %v113, %v86
    %v122 = vmul.f32 %v114, %v86
    %v123 = vmul.f32 %v115, %v86
    %v124 = vmul.f32 %v116, %v86
    %v125 = vmul.f32 %v117, %v86
    %v126 = vmul.f32 %v118, %v86
    %v127 = vmul.f32 %v119, %v119
    %v128 = vmul.f32 %v120, %v120
    %v129 = vmul.f32 %v121, %v121
    %v130 = vmul.f32 %v122, %v122
    %v131 = vmul.f32 %v123, %v123
    %v132 = vmul.f32 %v124, %v124
    %v133 = vmul.f32 %v125, %v125
    %v134 = vmul.f32 %v126, %v126
    %135 = vadd.xlane.f32.xlu0 %v127
    %v136 = vpop.xlane.xlu0 %135
    %137 = vadd.xlane.f32.xlu0 %v128
    %v138 = vpop.xlane.xlu0 %137
    %139 = vadd.xlane.f32.xlu0 %v129
    %v140 = vpop.xlane.xlu0 %139
    %141 = vadd.xlane.f32.xlu0 %v130
    %v142 = vpop.xlane.xlu0 %141
    %143 = vadd.xlane.f32.xlu0 %v131
    %v144 = vpop.xlane.xlu0 %143
    %145 = vadd.xlane.f32.xlu0 %v132
    %v146 = vpop.xlane.xlu0 %145
    %147 = vadd.xlane.f32.xlu0 %v133
    %v148 = vpop.xlane.xlu0 %147
    %149 = vadd.xlane.f32.xlu0 %v134
    %v150 = vpop.xlane.xlu0 %149
    %v151 = vmul.f32 %v136, 0.03125
    %v152 = vmul.f32 %v138, 0.03125
    %v153 = vmul.f32 %v140, 0.03125
    %v154 = vmul.f32 %v142, 0.03125
    %v155 = vmul.f32 %v144, 0.03125
    %v156 = vmul.f32 %v146, 0.03125
    %v157 = vmul.f32 %v148, 0.03125
    %v158 = vmul.f32 %v150, 0.03125
    %v159 = vadd.f32 %v151, 1e-05
    %v160 = vadd.f32 %v152, 1e-05
    %v161 = vadd.f32 %v153, 1e-05
    %v162 = vadd.f32 %v154, 1e-05
    %v163 = vadd.f32 %v155, 1e-05
    %v164 = vadd.f32 %v156, 1e-05
    %v165 = vadd.f32 %v157, 1e-05
    %v166 = vadd.f32 %v158, 1e-05
    %v167 = vrsqrt.pop %v159
    %v168 = vrsqrt.pop %v160
    %v169 = vrsqrt.pop %v161
    %v170 = vrsqrt.pop %v162
    %v171 = vrsqrt.pop %v163
    %v172 = vrsqrt.pop %v164
    %v173 = vrsqrt.pop %v165
    %v174 = vrsqrt.pop %v166
    %v175 = vmul.f32 %v119, %v167
    %v176 = vmul.f32 %v120, %v168
    %v177 = vmul.f32 %v121, %v169
    %v178 = vmul.f32 %v122, %v170
    %v179 = vmul.f32 %v123, %v171
    %v180 = vmul.f32 %v124, %v172
    %v181 = vmul.f32 %v125, %v173
    %v182 = vmul.f32 %v126, %v174
    %v183 = vld [vmem:[%s1] sm:$0x1]
    %v185 = vlaneseq
    %v186 = vshrl.u32 %v185, 7
    %v187 = vsub.s32 0, %v186
    %v188 = vrot.slane %v183, %v187
    %v190 = vmul.f32 %v175, %v188
    %v191 = vmul.f32 %v176, %v188
    %v192 = vmul.f32 %v177, %v188
    %v193 = vmul.f32 %v178, %v188
    %v194 = vmul.f32 %v179, %v188
    %v195 = vmul.f32 %v180, %v188
    %v196 = vmul.f32 %v181, %v188
    %v197 = vmul.f32 %v182, %v188
    %v198 = vld [vmem:[%s2] sm:$0x1]
    %v200 = vlaneseq
    %v201 = vshrl.u32 %v200, 7
    %v202 = vsub.s32 0, %v201
    %v203 = vrot.slane %v198, %v202
    %v205 = vadd.f32 %v190, %v203
    %v206 = vadd.f32 %v191, %v203
    %v207 = vadd.f32 %v192, %v203
    %v208 = vadd.f32 %v193, %v203
    %v209 = vadd.f32 %v194, %v203
    %v210 = vadd.f32 %v195, %v203
    %v211 = vadd.f32 %v196, %v203
    %v212 = vadd.f32 %v197, %v203
    %v213 = vld [vmem:[#allocation7] sm:$0xff]
    %v214 = vld [vmem:[#allocation7 + $0x8] sm:$0xff]
    %v215 = vld [vmem:[#allocation7 + $0x10] sm:$0xff]
    %v216 = vld [vmem:[#allocation7 + $0x18] sm:$0xff]
    %v217 = vld [vmem:[#allocation7 + $0x20] sm:$0xff]
    %v218 = vld [vmem:[#allocation7 + $0x28] sm:$0xff]
    %v219 = vld [vmem:[#allocation7 + $0x30] sm:$0xff]
    %v220 = vld [vmem:[#allocation7 + $0x38] sm:$0xff]
    %v221 = vld [vmem:[#allocation7 + $0x40] sm:$0xff]
    %v222 = vld [vmem:[#allocation7 + $0x48] sm:$0xff]
    %v223 = vld [vmem:[#allocation7 + $0x50] sm:$0xff]
    %v224 = vld [vmem:[#allocation7 + $0x58] sm:$0xff]
    %v225 = vld [vmem:[#allocation7 + $0x60] sm:$0xff]
    %v226 = vld [vmem:[#allocation7 + $0x68] sm:$0xff]
    %v227 = vld [vmem:[#allocation7 + $0x70] sm:$0xff]
    %v228 = vld [vmem:[#allocation7 + $0x78] sm:$0xff]
    %v229 = vld [vmem:[#allocation7 + $0x80] sm:$0xff]
    %v230 = vld [vmem:[#allocation7 + $0x88] sm:$0xff]
    %v231 = vld [vmem:[#allocation7 + $0x90] sm:$0xff]
    %v232 = vld [vmem:[#allocation7 + $0x98] sm:$0xff]
    %v233 = vld [vmem:[#allocation7 + $0xa0] sm:$0xff]
    %v234 = vld [vmem:[#allocation7 + $0xa8] sm:$0xff]
    %v235 = vld [vmem:[#allocation7 + $0xb0] sm:$0xff]
    %v236 = vld [vmem:[#allocation7 + $0xb8] sm:$0xff]
    %v237 = vld [vmem:[#allocation7 + $0xc0] sm:$0xff]
    %v238 = vld [vmem:[#allocation7 + $0xc8] sm:$0xff]
    %v239 = vld [vmem:[#allocation7 + $0xd0] sm:$0xff]
    %v240 = vld [vmem:[#allocation7 + $0xd8] sm:$0xff]
    %v241 = vld [vmem:[#allocation7 + $0xe0] sm:$0xff]
    %v242 = vld [vmem:[#allocation7 + $0xe8] sm:$0xff]
    %v243 = vld [vmem:[#allocation7 + $0xf0] sm:$0xff]
    %v244 = vld [vmem:[#allocation7 + $0xf8] sm:$0xff]
    %v245 = vld [vmem:[#allocation7 + $0x100] sm:$0xff]
    %v246 = vld [vmem:[#allocation7 + $0x108] sm:$0xff]
    %v247 = vld [vmem:[#allocation7 + $0x110] sm:$0xff]
    %v248 = vld [vmem:[#allocation7 + $0x118] sm:$0xff]
    %v249 = vld [vmem:[#allocation7 + $0x120] sm:$0xff]
    %v250 = vld [vmem:[#allocation7 + $0x128] sm:$0xff]
    %v251 = vld [vmem:[#allocation7 + $0x130] sm:$0xff]
    %v252 = vld [vmem:[#allocation7 + $0x138] sm:$0xff]
    %v253 = vld [vmem:[#allocation7 + $0x140] sm:$0xff]
    %v254 = vld [vmem:[#allocation7 + $0x148] sm:$0xff]
    %v255 = vld [vmem:[#allocation7 + $0x150] sm:$0xff]
    %v256 = vld [vmem:[#allocation7 + $0x158] sm:$0xff]
    %v257 = vld [vmem:[#allocation7 + $0x160] sm:$0xff]
    %v258 = vld [vmem:[#allocation7 + $0x168] sm:$0xff]
    %v259 = vld [vmem:[#allocation7 + $0x170] sm:$0xff]
    %v260 = vld [vmem:[#allocation7 + $0x178] sm:$0xff]
    %v261 = vld [vmem:[%s4] sm:$0x7]
    %v263 = vlaneseq
    %v264 = vshrl.u32 %v263, 7
    %v265 = vsub.s32 0, %v264
    %v266 = vrot.slane %v261, %v265
    %v267 = vlaneseq
    %v268 = vshrl.u32 %v267, 7
    %v269 = vsub.s32 1, %v268
    %v270 = vrot.slane %v261, %v269
    %v271 = vlaneseq
    %v272 = vshrl.u32 %v271, 7
    %v273 = vsub.s32 2, %v272
    %v274 = vrot.slane %v261, %v273
    %278 = vmatprep.subr.mxu0 %v214
    %279 = vmatpush1.msra.mxu0 %v213
    %280 = vmatprep.subr.mxu0 %v217
    %281 = vmatpush1.msra.mxu0 %v216
    %282 = vmatprep.subr.mxu0 %v220
    %283 = vmatpush1.msra.mxu0 %v219
    %284 = vmatprep.subr.mxu0 %v223
    %285 = vmatpush1.msra.mxu0 %v222
    %286 = vmatprep.subr.mxu0 %v226
    %287 = vmatpush1.msra.mxu0 %v225
    %288 = vmatprep.subr.mxu0 %v229
    %289 = vmatpush1.msra.mxu0 %v228
    %290 = vmatprep.subr.mxu0 %v232
    %291 = vmatpush1.msra.mxu0 %v231
    %292 = vmatprep.subr.mxu0 %v235
    %293 = vmatpush1.msra.mxu0 %v234
    %294 = vmatprep.subr.mxu0 %v238
    %295 = vmatpush1.msra.mxu0 %v237
    %296 = vmatprep.subr.mxu0 %v241
    %297 = vmatpush1.msra.mxu0 %v240
    %298 = vmatprep.subr.mxu0 %v244
    %299 = vmatpush1.msra.mxu0 %v243
    %300 = vmatprep.subr.mxu0 %v247
    %301 = vmatpush1.msra.mxu0 %v246
    %302 = vmatprep.subr.mxu0 %v250
    %303 = vmatpush1.msra.mxu0 %v249
    %304 = vmatprep.subr.mxu0 %v253
    %305 = vmatpush1.msra.mxu0 %v252
    %306 = vmatprep.subr.mxu0 %v256
    %307 = vmatpush1.msra.mxu0 %v255
    %308 = vmatprep.subr.mxu0 %v259
    %309 = vmatpush1.msra.mxu0 %v258
    %310 = vmatprep.subr.mxu0 0.0
    %311 = vmatpush1.msra.mxu0 0.0
    %312 = vmatprep.subr.mxu0 0.0
    %313 = vmatpush1.msra.mxu0 0.0
    %314 = vmatprep.subr.mxu0 0.0
    %315 = vmatpush1.msra.mxu0 0.0
    %316 = vmatprep.subr.mxu0 0.0
    %317 = vmatpush1.msra.mxu0 0.0
    %318 = vmatprep.subr.mxu0 0.0
    %319 = vmatpush1.msra.mxu0 0.0
    %320 = vmatprep.subr.mxu0 0.0
    %321 = vmatpush1.msra.mxu0 0.0
    %322 = vmatprep.subr.mxu0 0.0
    %323 = vmatpush1.msra.mxu0 0.0
    %324 = vmatprep.subr.mxu0 0.0
    %325 = vmatpush1.msra.mxu0 0.0
    %326 = vmatprep.subr.mxu0 0.0
    %327 = vmatpush1.msra.mxu0 0.0
    %328 = vmatprep.subr.mxu0 0.0
    %329 = vmatpush1.msra.mxu0 0.0
    %330 = vmatprep.subr.mxu0 0.0
    %331 = vmatpush1.msra.mxu0 0.0
    %332 = vmatprep.subr.mxu0 0.0
    %333 = vmatpush1.msra.mxu0 0.0
    %334 = vmatprep.subr.mxu0 0.0
    %335 = vmatpush1.msra.mxu0 0.0
    %336 = vmatprep.subr.mxu0 0.0
    %337 = vmatpush1.msra.mxu0 0.0
    %338 = vmatprep.subr.mxu0 0.0
    %339 = vmatpush1.msra.mxu0 0.0
    %340 = vmatprep.subr.mxu0 0.0
    %341 = vmatpush1.msra.mxu0 0.0
    %342 = vmatprep.mubr.f32.mxu0 0.0
    %343 = vmatmul.mubr.f32.gmra.mrb[0].mxu0 %v205
    %v344 = vpop.f32.mrb[0].mxu0
    %v345 = vadd.f32 %v266, %v344
    %v346 = vpop.f32.mrb[0].mxu0
    %v347 = vadd.f32 %v270, %v346
    %348 = vmatprep.mubr.f32.mxu0 0.0
    %349 = vmatmul.mubr.f32.gmra.mrb[0].mxu0 %v206
    %v350 = vpop.f32.mrb[0].mxu0
    %v351 = vadd.f32 %v266, %v350
    %v352 = vpop.f32.mrb[0].mxu0
    %v353 = vadd.f32 %v270, %v352
    %354 = vmatprep.mubr.f32.mxu0 0.0
    %355 = vmatmul.mubr.f32.gmra.mrb[0].mxu0 %v207
    %v356 = vpop.f32.mrb[0].mxu0
    %v357 = vadd.f32 %v266, %v356
    %v358 = vpop.f32.mrb[0].mxu0
    %v359 = vadd.f32 %v270, %v358
    %360 = vmatprep.mubr.f32.mxu0 0.0
    %361 = vmatmul.mubr.f32.gmra.mrb[0].mxu0 %v208
    %v362 = vpop.f32.mrb[0].mxu0
    %v363 = vadd.f32 %v266, %v362
    %v364 = vpop.f32.mrb[0].mxu0
    %v365 = vadd.f32 %v270, %v364
    %366 = vmatprep.mubr.f32.mxu0 0.0
    %367 = vmatmul.mubr.f32.gmra.mrb[0].mxu0 %v209
    %v368 = vpop.f32.mrb[0].mxu0
    %v369 = vadd.f32 %v266, %v368
    %v370 = vpop.f32.mrb[0].mxu0
    %v371 = vadd.f32 %v270, %v370
    %372 = vmatprep.mubr.f32.mxu0 0.0
    %373 = vmatmul.mubr.f32.gmra.mrb[0].mxu0 %v210
    %v374 = vpop.f32.mrb[0].mxu0
    %v375 = vadd.f32 %v266, %v374
    %v376 = vpop.f32.mrb[0].mxu0
    %v377 = vadd.f32 %v270, %v376
    %378 = vmatprep.mubr.f32.mxu0 0.0
    %379 = vmatmul.mubr.f32.gmra.mrb[0].mxu0 %v211
    %v380 = vpop.f32.mrb[0].mxu0
    %v381 = vadd.f32 %v266, %v380
    %v382 = vpop.f32.mrb[0].mxu0
    %v383 = vadd.f32 %v270, %v382
    %384 = vmatprep.mubr.f32.mxu0 0.0
    %385 = vmatmul.mubr.f32.gmra.mrb[0].mxu0 %v212
    %v386 = vpop.f32.mrb[0].mxu0
    %v387 = vadd.f32 %v266, %v386
    %v388 = vpop.f32.mrb[0].mxu0
    %v389 = vadd.f32 %v270, %v388
    %390 = vdwg.mxu0
    %391 = vmatprep.subr.mxu0 0.0
    %392 = vmatpush1.msra.mxu0 %v215
    %393 = vmatprep.subr.mxu0 0.0
    %394 = vmatpush1.msra.mxu0 %v218
    %395 = vmatprep.subr.mxu0 0.0
    %396 = vmatpush1.msra.mxu0 %v221
    %397 = vmatprep.subr.mxu0 0.0
    %398 = vmatpush1.msra.mxu0 %v224
    %399 = vmatprep.subr.mxu0 0.0
    %400 = vmatpush1.msra.mxu0 %v227
    %401 = vmatprep.subr.mxu0 0.0
    %402 = vmatpush1.msra.mxu0 %v230
    %403 = vmatprep.subr.mxu0 0.0
    %404 = vmatpush1.msra.mxu0 %v233
    %405 = vmatprep.subr.mxu0 0.0
    %406 = vmatpush1.msra.mxu0 %v236
    %407 = vmatprep.subr.mxu0 0.0
    %408 = vmatpush1.msra.mxu0 %v239
    %409 = vmatprep.subr.mxu0 0.0
    %410 = vmatpush1.msra.mxu0 %v242
    %411 = vmatprep.subr.mxu0 0.0
    %412 = vmatpush1.msra.mxu0 %v245
    %413 = vmatprep.subr.mxu0 0.0
    %414 = vmatpush1.msra.mxu0 %v248
    %415 = vmatprep.subr.mxu0 0.0
    %416 = vmatpush1.msra.mxu0 %v251
    %417 = vmatprep.subr.mxu0 0.0
    %418 = vmatpush1.msra.mxu0 %v254
    %419 = vmatprep.subr.mxu0 0.0
    %420 = vmatpush1.msra.mxu0 %v257
    %421 = vmatprep.subr.mxu0 0.0
    %422 = vmatpush1.msra.mxu0 %v260
    %423 = vmatprep.subr.mxu0 0.0
    %424 = vmatpush1.msra.mxu0 0.0
    %425 = vmatprep.subr.mxu0 0.0
    %426 = vmatpush1.msra.mxu0 0.0
    %427 = vmatprep.subr.mxu0 0.0
    %428 = vmatpush1.msra.mxu0 0.0
    %429 = vmatprep.subr.mxu0 0.0
    %430 = vmatpush1.msra.mxu0 0.0
    %431 = vmatprep.subr.mxu0 0.0
    %432 = vmatpush1.msra.mxu0 0.0
    %433 = vmatprep.subr.mxu0 0.0
    %434 = vmatpush1.msra.mxu0 0.0
    %435 = vmatprep.subr.mxu0 0.0
    %436 = vmatpush1.msra.mxu0 0.0
    %437 = vmatprep.subr.mxu0 0.0
    %438 = vmatpush1.msra.mxu0 0.0
    %439 = vmatprep.subr.mxu0 0.0
    %440 = vmatpush1.msra.mxu0 0.0
    %441 = vmatprep.subr.mxu0 0.0
    %442 = vmatpush1.msra.mxu0 0.0
    %443 = vmatprep.subr.mxu0 0.0
    %444 = vmatpush1.msra.mxu0 0.0
    %445 = vmatprep.subr.mxu0 0.0
    %446 = vmatpush1.msra.mxu0 0.0
    %447 = vmatprep.subr.mxu0 0.0
    %448 = vmatpush1.msra.mxu0 0.0
    %449 = vmatprep.subr.mxu0 0.0
    %450 = vmatpush1.msra.mxu0 0.0
    %451 = vmatprep.subr.mxu0 0.0
    %452 = vmatpush1.msra.mxu0 0.0
    %453 = vmatprep.subr.mxu0 0.0
    %454 = vmatpush1.msra.mxu0 0.0
    %455 = vmatprep.mubr.f32.mxu0 0.0
    %456 = vmatmul.mubr.f32.gmra.mrb[0].mxu0 %v205
    %v457 = vpop.f32.mrb[0].mxu0
    %v458 = vadd.f32 %v274, %v457
    %v459 = vpop.f32.mrb[0].mxu0
    %460 = vmatprep.mubr.f32.mxu0 0.0
    %461 = vmatmul.mubr.f32.gmra.mrb[0].mxu0 %v206
    %v462 = vpop.f32.mrb[0].mxu0
    %v463 = vadd.f32 %v274, %v462
    %v464 = vpop.f32.mrb[0].mxu0
    %465 = vmatprep.mubr.f32.mxu0 0.0
    %466 = vmatmul.mubr.f32.gmra.mrb[0].mxu0 %v207
    %v467 = vpop.f32.mrb[0].mxu0
    %v468 = vadd.f32 %v274, %v467
    %v469 = vpop.f32.mrb[0].mxu0
    %470 = vmatprep.mubr.f32.mxu0 0.0
    %471 = vmatmul.mubr.f32.gmra.mrb[0].mxu0 %v208
    %v472 = vpop.f32.mrb[0].mxu0
    %v473 = vadd.f32 %v274, %v472
    %v474 = vpop.f32.mrb[0].mxu0
    %475 = vmatprep.mubr.f32.mxu0 0.0
    %476 = vmatmul.mubr.f32.gmra.mrb[0].mxu0 %v209
    %v477 = vpop.f32.mrb[0].mxu0
    %v478 = vadd.f32 %v274, %v477
    %v479 = vpop.f32.mrb[0].mxu0
    %480 = vmatprep.mubr.f32.mxu0 0.0
    %481 = vmatmul.mubr.f32.gmra.mrb[0].mxu0 %v210
    %v482 = vpop.f32.mrb[0].mxu0
    %v483 = vadd.f32 %v274, %v482
    %v484 = vpop.f32.mrb[0].mxu0
    %485 = vmatprep.mubr.f32.mxu0 0.0
    %486 = vmatmul.mubr.f32.gmra.mrb[0].mxu0 %v211
    %v487 = vpop.f32.mrb[0].mxu0
    %v488 = vadd.f32 %v274, %v487
    %v489 = vpop.f32.mrb[0].mxu0
    %490 = vmatprep.mubr.f32.mxu0 0.0
    %491 = vmatmul.mubr.f32.gmra.mrb[0].mxu0 %v212
    %v492 = vpop.f32.mrb[0].mxu0
    %v493 = vadd.f32 %v274, %v492
    %v494 = vpop.f32.mrb[0].mxu0
    %495 = vdwg.mxu0
    %v496 = vxor.u32 %v345, 2147483648
    %v497 = vxor.u32 %v351, 2147483648
    %v498 = vxor.u32 %v357, 2147483648
    %v499 = vxor.u32 %v363, 2147483648
    %v500 = vxor.u32 %v369, 2147483648
    %v501 = vxor.u32 %v375, 2147483648
    %v502 = vxor.u32 %v381, 2147483648
    %v503 = vxor.u32 %v387, 2147483648
    %v504 = vmul.f32 %v496, 1.442695
    %v505 = vpow.pop %v504
    %v506 = vmul.f32 %v497, 1.442695
    %v507 = vpow.pop %v506
    %v508 = vmul.f32 %v498, 1.442695
    %v509 = vpow.pop %v508
    %v510 = vmul.f32 %v499, 1.442695
    %v511 = vpow.pop %v510
    %v512 = vmul.f32 %v500, 1.442695
    %v513 = vpow.pop %v512
    %v514 = vmul.f32 %v501, 1.442695
    %v515 = vpow.pop %v514
    %v516 = vmul.f32 %v502, 1.442695
    %v517 = vpow.pop %v516
    %v518 = vmul.f32 %v503, 1.442695
    %v519 = vpow.pop %v518
    %v520 = vadd.f32 %v505, 1.0
    %v521 = vadd.f32 %v507, 1.0
    %v522 = vadd.f32 %v509, 1.0
    %v523 = vadd.f32 %v511, 1.0
    %v524 = vadd.f32 %v513, 1.0
    %v525 = vadd.f32 %v515, 1.0
    %v526 = vadd.f32 %v517, 1.0
    %v527 = vadd.f32 %v519, 1.0
    %v528 = vrcp.pop %v520
    %v529 = vmul.f32 1.0, %v528
    %v530 = vrcp.pop %v521
    %v531 = vmul.f32 1.0, %v530
    %v532 = vrcp.pop %v522
    %v533 = vmul.f32 1.0, %v532
    %v534 = vrcp.pop %v523
    %v535 = vmul.f32 1.0, %v534
    %v536 = vrcp.pop %v524
    %v537 = vmul.f32 1.0, %v536
    %v538 = vrcp.pop %v525
    %v539 = vmul.f32 1.0, %v538
    %v540 = vrcp.pop %v526
    %v541 = vmul.f32 1.0, %v540
    %v542 = vrcp.pop %v527
    %v543 = vmul.f32 1.0, %v542
    %v544 = vmul.f32 %v345, %v529
    %v545 = vmul.f32 %v351, %v531
    %v546 = vmul.f32 %v357, %v533
    %v547 = vmul.f32 %v363, %v535
    %v548 = vmul.f32 %v369, %v537
    %v549 = vmul.f32 %v375, %v539
    %v550 = vmul.f32 %v381, %v541
    %v551 = vmul.f32 %v387, %v543
    %v552 = vxor.u32 %v347, 2147483648
    %v553 = vxor.u32 %v353, 2147483648
    %v554 = vxor.u32 %v359, 2147483648
    %v555 = vxor.u32 %v365, 2147483648
    %v556 = vxor.u32 %v371, 2147483648
    %v557 = vxor.u32 %v377, 2147483648
    %v558 = vxor.u32 %v383, 2147483648
    %v559 = vxor.u32 %v389, 2147483648
    %v560 = vmul.f32 %v552, 1.442695
    %v561 = vpow.pop %v560
    %v562 = vmul.f32 %v553, 1.442695
    %v563 = vpow.pop %v562
    %v564 = vmul.f32 %v554, 1.442695
    %v565 = vpow.pop %v564
    %v566 = vmul.f32 %v555, 1.442695
    %v567 = vpow.pop %v566
    %v568 = vmul.f32 %v556, 1.442695
    %v569 = vpow.pop %v568
    %v570 = vmul.f32 %v557, 1.442695
    %v571 = vpow.pop %v570
    %v572 = vmul.f32 %v558, 1.442695
    %v573 = vpow.pop %v572
    %v574 = vmul.f32 %v559, 1.442695
    %v575 = vpow.pop %v574
    %v576 = vadd.f32 %v561, 1.0
    %v577 = vadd.f32 %v563, 1.0
    %v578 = vadd.f32 %v565, 1.0
    %v579 = vadd.f32 %v567, 1.0
    %v580 = vadd.f32 %v569, 1.0
    %v581 = vadd.f32 %v571, 1.0
    %v582 = vadd.f32 %v573, 1.0
    %v583 = vadd.f32 %v575, 1.0
    %v584 = vrcp.pop %v576
    %v585 = vmul.f32 1.0, %v584
    %v586 = vrcp.pop %v577
    %v587 = vmul.f32 1.0, %v586
    %v588 = vrcp.pop %v578
    %v589 = vmul.f32 1.0, %v588
    %v590 = vrcp.pop %v579
    %v591 = vmul.f32 1.0, %v590
    %v592 = vrcp.pop %v580
    %v593 = vmul.f32 1.0, %v592
    %v594 = vrcp.pop %v581
    %v595 = vmul.f32 1.0, %v594
    %v596 = vrcp.pop %v582
    %v597 = vmul.f32 1.0, %v596
    %v598 = vrcp.pop %v583
    %v599 = vmul.f32 1.0, %v598
    %v600 = vmul.f32 %v347, %v585
    %v601 = vmul.f32 %v353, %v587
    %v602 = vmul.f32 %v359, %v589
    %v603 = vmul.f32 %v365, %v591
    %v604 = vmul.f32 %v371, %v593
    %v605 = vmul.f32 %v377, %v595
    %v606 = vmul.f32 %v383, %v597
    %v607 = vmul.f32 %v389, %v599
    %v608 = vmax.f32 %v458, 0.0
    %v609 = vmax.f32 %v463, 0.0
    %v610 = vmax.f32 %v468, 0.0
    %v611 = vmax.f32 %v473, 0.0
    %v612 = vmax.f32 %v478, 0.0
    %v613 = vmax.f32 %v483, 0.0
    %v614 = vmax.f32 %v488, 0.0
    %v615 = vmax.f32 %v493, 0.0
    %vm616 = vcmp.ne.f32.partialorder %v458, %v458
    %vm617 = vcmp.ne.f32.partialorder %v463, %v463
    %vm618 = vcmp.ne.f32.partialorder %v468, %v468
    %vm619 = vcmp.ne.f32.partialorder %v473, %v473
    %vm620 = vcmp.ne.f32.partialorder %v478, %v478
    %vm621 = vcmp.ne.f32.partialorder %v483, %v483
    %vm622 = vcmp.ne.f32.partialorder %v488, %v488
    %vm623 = vcmp.ne.f32.partialorder %v493, %v493
    %v624 = vadd.f32 %v458, 0.0
    %v625 = vadd.f32 %v463, 0.0
    %v626 = vadd.f32 %v468, 0.0
    %v627 = vadd.f32 %v473, 0.0
    %v628 = vadd.f32 %v478, 0.0
    %v629 = vadd.f32 %v483, 0.0
    %v630 = vadd.f32 %v488, 0.0
    %v631 = vadd.f32 %v493, 0.0
    %v632 = vand.u32 2147483647, %v458
    %v633 = vand.u32 2147483647, %v463
    %v634 = vand.u32 2147483647, %v468
    %v635 = vand.u32 2147483647, %v473
    %v636 = vand.u32 2147483647, %v478
    %v637 = vand.u32 2147483647, %v483
    %v638 = vand.u32 2147483647, %v488
    %v639 = vand.u32 2147483647, %v493
    %v640 = vsub.f32 0.0, %v632
    %v641 = vsub.f32 0.0, %v633
    %v642 = vsub.f32 0.0, %v634
    %v643 = vsub.f32 0.0, %v635
    %v644 = vsub.f32 0.0, %v636
    %v645 = vsub.f32 0.0, %v637
    %v646 = vsub.f32 0.0, %v638
    %v647 = vsub.f32 0.0, %v639
    %v648 = vmul.f32 %v640, 1.442695
    %v649 = vpow.pop %v648
    %v650 = vmul.f32 %v641, 1.442695
    %v651 = vpow.pop %v650
    %v652 = vmul.f32 %v642, 1.442695
    %v653 = vpow.pop %v652
    %v654 = vmul.f32 %v643, 1.442695
    %v655 = vpow.pop %v654
    %v656 = vmul.f32 %v644, 1.442695
    %v657 = vpow.pop %v656
    %v658 = vmul.f32 %v645, 1.442695
    %v659 = vpow.pop %v658
    %v660 = vmul.f32 %v646, 1.442695
    %v661 = vpow.pop %v660
    %v662 = vmul.f32 %v647, 1.442695
    %v663 = vpow.pop %v662
    %v664 = vadd.f32 %v649, 1.0
    %v665 = vlog2.pop %v664
    %v666 = vmul.f32 %v665, 0.6931472
    %v667 = vmul.f32 -0.5, %v649
    %v668 = vadd.f32 %v667, 1.0
    %v669 = vmul.f32 %v668, %v649
    %v670 = vand.u32 2147483647, %v649
    %vm671 = vcmp.lt.f32.partialorder %v670, 0.0004427343
    %v672 = vsel %vm671, %v669, %v666
    %v673 = vadd.f32 %v651, 1.0
    %v674 = vlog2.pop %v673
    %v675 = vmul.f32 %v674, 0.6931472
    %v676 = vmul.f32 -0.5, %v651
    %v677 = vadd.f32 %v676, 1.0
    %v678 = vmul.f32 %v677, %v651
    %v679 = vand.u32 2147483647, %v651
    %vm680 = vcmp.lt.f32.partialorder %v679, 0.0004427343
    %v681 = vsel %vm680, %v678, %v675
    %v682 = vadd.f32 %v653, 1.0
    %v683 = vlog2.pop %v682
    %v684 = vmul.f32 %v683, 0.6931472
    %v685 = vmul.f32 -0.5, %v653
    %v686 = vadd.f32 %v685, 1.0
    %v687 = vmul.f32 %v686, %v653
    %v688 = vand.u32 2147483647, %v653
    %vm689 = vcmp.lt.f32.partialorder %v688, 0.0004427343
    %v690 = vsel %vm689, %v687, %v684
    %v691 = vadd.f32 %v655, 1.0
    %v692 = vlog2.pop %v691
    %v693 = vmul.f32 %v692, 0.6931472
    %v694 = vmul.f32 -0.5, %v655
    %v695 = vadd.f32 %v694, 1.0
    %v696 = vmul.f32 %v695, %v655
    %v697 = vand.u32 2147483647, %v655
    %vm698 = vcmp.lt.f32.partialorder %v697, 0.0004427343
    %v699 = vsel %vm698, %v696, %v693
    %v700 = vadd.f32 %v657, 1.0
    %v701 = vlog2.pop %v700
    %v702 = vmul.f32 %v701, 0.6931472
    %v703 = vmul.f32 -0.5, %v657
    %v704 = vadd.f32 %v703, 1.0
    %v705 = vmul.f32 %v704, %v657
    %v706 = vand.u32 2147483647, %v657
    %vm707 = vcmp.lt.f32.partialorder %v706, 0.0004427343
    %v708 = vsel %vm707, %v705, %v702
    %v709 = vadd.f32 %v659, 1.0
    %v710 = vlog2.pop %v709
    %v711 = vmul.f32 %v710, 0.6931472
    %v712 = vmul.f32 -0.5, %v659
    %v713 = vadd.f32 %v712, 1.0
    %v714 = vmul.f32 %v713, %v659
    %v715 = vand.u32 2147483647, %v659
    %vm716 = vcmp.lt.f32.partialorder %v715, 0.0004427343
    %v717 = vsel %vm716, %v714, %v711
    %v718 = vadd.f32 %v661, 1.0
    %v719 = vlog2.pop %v718
    %v720 = vmul.f32 %v719, 0.6931472
    %v721 = vmul.f32 -0.5, %v661
    %v722 = vadd.f32 %v721, 1.0
    %v723 = vmul.f32 %v722, %v661
    %v724 = vand.u32 2147483647, %v661
    %vm725 = vcmp.lt.f32.partialorder %v724, 0.0004427343
    %v726 = vsel %vm725, %v723, %v720
    %v727 = vadd.f32 %v663, 1.0
    %v728 = vlog2.pop %v727
    %v729 = vmul.f32 %v728, 0.6931472
    %v730 = vmul.f32 -0.5, %v663
    %v731 = vadd.f32 %v730, 1.0
    %v732 = vmul.f32 %v731, %v663
    %v733 = vand.u32 2147483647, %v663
    %vm734 = vcmp.lt.f32.partialorder %v733, 0.0004427343
    %v735 = vsel %vm734, %v732, %v729
    %v736 = vadd.f32 %v608, %v672
    %v737 = vadd.f32 %v609, %v681
    %v738 = vadd.f32 %v610, %v690
    %v739 = vadd.f32 %v611, %v699
    %v740 = vadd.f32 %v612, %v708
    %v741 = vadd.f32 %v613, %v717
    %v742 = vadd.f32 %v614, %v726
    %v743 = vadd.f32 %v615, %v735
    %v744 = vsel %vm616, %v624, %v736
    %v745 = vsel %vm617, %v625, %v737
    %v746 = vsel %vm618, %v626, %v738
    %v747 = vsel %vm619, %v627, %v739
    %v748 = vsel %vm620, %v628, %v740
    %v749 = vsel %vm621, %v629, %v741
    %v750 = vsel %vm622, %v630, %v742
    %v751 = vsel %vm623, %v631, %v743
    %752 = vst [vmem:[#allocation2] sm:$0xff] %v544
    %753 = vst [vmem:[#allocation2 + $0x8] sm:$0xff] %v545
    %754 = vst [vmem:[#allocation2 + $0x10] sm:$0xff] %v546
    %755 = vst [vmem:[#allocation2 + $0x18] sm:$0xff] %v547
    %756 = vst [vmem:[#allocation2 + $0x20] sm:$0xff] %v548
    %757 = vst [vmem:[#allocation2 + $0x28] sm:$0xff] %v549
    %758 = vst [vmem:[#allocation2 + $0x30] sm:$0xff] %v550
    %759 = vst [vmem:[#allocation2 + $0x38] sm:$0xff] %v551
    %760 = vst [vmem:[#allocation3] sm:$0xff] %v744
    %761 = vst [vmem:[#allocation3 + $0x8] sm:$0xff] %v745
    %762 = vst [vmem:[#allocation3 + $0x10] sm:$0xff] %v746
    %763 = vst [vmem:[#allocation3 + $0x18] sm:$0xff] %v747
    %764 = vst [vmem:[#allocation3 + $0x20] sm:$0xff] %v748
    %765 = vst [vmem:[#allocation3 + $0x28] sm:$0xff] %v749
    %766 = vst [vmem:[#allocation3 + $0x30] sm:$0xff] %v750
    %767 = vst [vmem:[#allocation3 + $0x38] sm:$0xff] %v751
    %v768 = vld [vmem:[%s5] sm:$0xff]
    %v769 = vld [vmem:[#allocation2] sm:$0xff]
    %v770 = vld [vmem:[#allocation2 + $0x10] sm:$0xff]
    %v771 = vld [vmem:[#allocation2 + $0x20] sm:$0xff]
    %v772 = vld [vmem:[#allocation2 + $0x30] sm:$0xff]
    %v773 = vld [vmem:[#allocation3] sm:$0xff]
    %v774 = vld [vmem:[#allocation3 + $0x10] sm:$0xff]
    %v775 = vld [vmem:[#allocation3 + $0x20] sm:$0xff]
    %v776 = vld [vmem:[#allocation3 + $0x30] sm:$0xff]
    %v781 = vcombine.high %v773, %v773
    %v783 = vunpack.c.l.s4 1966171168
    %v784 = vunpack.c.0.s8 %v783
    %v785 = vlaneseq
    %v786 = vshrl.u32 %v785, 7
    %v787 = vsub.s32 %v784, %v786
    %v788 = vrot.slane %v773, %v787
    %v790 = vunpack.c.l.s4 1966171168
    %v791 = vunpack.c.0.s8 %v790
    %v792 = vlaneseq
    %v793 = vshrl.u32 %v792, 7
    %v794 = vsub.s32 %v791, %v793
    %v795 = vrot.slane %v781, %v794
    %v796 = vcombine.high %v788, %v788
    %v797 = vcombine.high %v795, %v795
    %v799 = vunpack.c.l.s4 1966171168
    %v800 = vunpack.c.0.s8 %v799
    %v801 = vlaneseq
    %v802 = vshrl.u32 %v801, 7
    %v803 = vsub.s32 %v800, %v802
    %v804 = vrot.slane %v788, %v803
    %v806 = vunpack.c.l.s4 1966171168
    %v807 = vunpack.c.0.s8 %v806
    %v808 = vlaneseq
    %v809 = vshrl.u32 %v808, 7
    %v810 = vsub.s32 %v807, %v809
    %v811 = vrot.slane %v795, %v810
    %v813 = vunpack.c.l.s4 1966171168
    %v814 = vunpack.c.0.s8 %v813
    %v815 = vlaneseq
    %v816 = vshrl.u32 %v815, 7
    %v817 = vsub.s32 %v814, %v816
    %v818 = vrot.slane %v796, %v817
    %v820 = vunpack.c.l.s4 1966171168
    %v821 = vunpack.c.0.s8 %v820
    %v822 = vlaneseq
    %v823 = vshrl.u32 %v822, 7
    %v824 = vsub.s32 %v821, %v823
    %v825 = vrot.slane %v797, %v824
    %v826 = vcombine.high %v804, %v804
    %v827 = vcombine.high %v811, %v811
    %v828 = vcombine.high %v818, %v818
    %v829 = vcombine.high %v825, %v825
    %v830 = vcombine.high %v774, %v774
    %v832 = vunpack.c.l.s4 1966171168
    %v833 = vunpack.c.0.s8 %v832
    %v834 = vlaneseq
    %v835 = vshrl.u32 %v834, 7
    %v836 = vsub.s32 %v833, %v835
    %v837 = vrot.slane %v774, %v836
    %v839 = vunpack.c.l.s4 1966171168
    %v840 = vunpack.c.0.s8 %v839
    %v841 = vlaneseq
    %v842 = vshrl.u32 %v841, 7
    %v843 = vsub.s32 %v840, %v842
    %v844 = vrot.slane %v830, %v843
    %v845 = vcombine.high %v837, %v837
    %v846 = vcombine.high %v844, %v844
    %v848 = vunpack.c.l.s4 1966171168
    %v849 = vunpack.c.0.s8 %v848
    %v850 = vlaneseq
    %v851 = vshrl.u32 %v850, 7
    %v852 = vsub.s32 %v849, %v851
    %v853 = vrot.slane %v837, %v852
    %v855 = vunpack.c.l.s4 1966171168
    %v856 = vunpack.c.0.s8 %v855
    %v857 = vlaneseq
    %v858 = vshrl.u32 %v857, 7
    %v859 = vsub.s32 %v856, %v858
    %v860 = vrot.slane %v844, %v859
    %v862 = vunpack.c.l.s4 1966171168
    %v863 = vunpack.c.0.s8 %v862
    %v864 = vlaneseq
    %v865 = vshrl.u32 %v864, 7
    %v866 = vsub.s32 %v863, %v865
    %v867 = vrot.slane %v845, %v866
    %v869 = vunpack.c.l.s4 1966171168
    %v870 = vunpack.c.0.s8 %v869
    %v871 = vlaneseq
    %v872 = vshrl.u32 %v871, 7
    %v873 = vsub.s32 %v870, %v872
    %v874 = vrot.slane %v846, %v873
    %v875 = vcombine.high %v853, %v853
    %v876 = vcombine.high %v860, %v860
    %v877 = vcombine.high %v867, %v867
    %v878 = vcombine.high %v874, %v874
    %v879 = vcombine.high %v775, %v775
    %v881 = vunpack.c.l.s4 1966171168
    %v882 = vunpack.c.0.s8 %v881
    %v883 = vlaneseq
    %v884 = vshrl.u32 %v883, 7
    %v885 = vsub.s32 %v882, %v884
    %v886 = vrot.slane %v775, %v885
    %v888 = vunpack.c.l.s4 1966171168
    %v889 = vunpack.c.0.s8 %v888
    %v890 = vlaneseq
    %v891 = vshrl.u32 %v890, 7
    %v892 = vsub.s32 %v889, %v891
    %v893 = vrot.slane %v879, %v892
    %v894 = vcombine.high %v886, %v886
    %v895 = vcombine.high %v893, %v893
    %v897 = vunpack.c.l.s4 1966171168
    %v898 = vunpack.c.0.s8 %v897
    %v899 = vlaneseq
    %v900 = vshrl.u32 %v899, 7
    %v901 = vsub.s32 %v898, %v900
    %v902 = vrot.slane %v886, %v901
    %v904 = vunpack.c.l.s4 1966171168
    %v905 = vunpack.c.0.s8 %v904
    %v906 = vlaneseq
    %v907 = vshrl.u32 %v906, 7
    %v908 = vsub.s32 %v905, %v907
    %v909 = vrot.slane %v893, %v908
    %v911 = vunpack.c.l.s4 1966171168
    %v912 = vunpack.c.0.s8 %v911
    %v913 = vlaneseq
    %v914 = vshrl.u32 %v913, 7
    %v915 = vsub.s32 %v912, %v914
    %v916 = vrot.slane %v894, %v915
    %v918 = vunpack.c.l.s4 1966171168
    %v919 = vunpack.c.0.s8 %v918
    %v920 = vlaneseq
    %v921 = vshrl.u32 %v920, 7
    %v922 = vsub.s32 %v919, %v921
    %v923 = vrot.slane %v895, %v922
    %v924 = vcombine.high %v902, %v902
    %v925 = vcombine.high %v909, %v909
    %v926 = vcombine.high %v916, %v916
    %v927 = vcombine.high %v923, %v923
    %v928 = vcombine.high %v776, %v776
    %v930 = vunpack.c.l.s4 1966171168
    %v931 = vunpack.c.0.s8 %v930
    %v932 = vlaneseq
    %v933 = vshrl.u32 %v932, 7
    %v934 = vsub.s32 %v931, %v933
    %v935 = vrot.slane %v776, %v934
    %v937 = vunpack.c.l.s4 1966171168
    %v938 = vunpack.c.0.s8 %v937
    %v939 = vlaneseq
    %v940 = vshrl.u32 %v939, 7
    %v941 = vsub.s32 %v938, %v940
    %v942 = vrot.slane %v928, %v941
    %v943 = vcombine.high %v935, %v935
    %v944 = vcombine.high %v942, %v942
    %v946 = vunpack.c.l.s4 1966171168
    %v947 = vunpack.c.0.s8 %v946
    %v948 = vlaneseq
    %v949 = vshrl.u32 %v948, 7
    %v950 = vsub.s32 %v947, %v949
    %v951 = vrot.slane %v935, %v950
    %v953 = vunpack.c.l.s4 1966171168
    %v954 = vunpack.c.0.s8 %v953
    %v955 = vlaneseq
    %v956 = vshrl.u32 %v955, 7
    %v957 = vsub.s32 %v954, %v956
    %v958 = vrot.slane %v942, %v957
    %v960 = vunpack.c.l.s4 1966171168
    %v961 = vunpack.c.0.s8 %v960
    %v962 = vlaneseq
    %v963 = vshrl.u32 %v962, 7
    %v964 = vsub.s32 %v961, %v963
    %v965 = vrot.slane %v943, %v964
    %v967 = vunpack.c.l.s4 1966171168
    %v968 = vunpack.c.0.s8 %v967
    %v969 = vlaneseq
    %v970 = vshrl.u32 %v969, 7
    %v971 = vsub.s32 %v968, %v970
    %v972 = vrot.slane %v944, %v971
    %v973 = vcombine.high %v951, %v951
    %v974 = vcombine.high %v958, %v958
    %v975 = vcombine.high %v965, %v965
    %v976 = vcombine.high %v972, %v972
    %v977 = vlaneseq
    %v978 = vshrl.u32 %v977, 7
    %v979 = vsub.s32 0, %v978
    %v980 = vrot.slane %v804, %v979
    %v981 = vlaneseq
    %v982 = vshrl.u32 %v981, 7
    %v983 = vsub.s32 0, %v982
    %v984 = vrot.slane %v818, %v983
    %v985 = vlaneseq
    %v986 = vshrl.u32 %v985, 7
    %v987 = vsub.s32 0, %v986
    %v988 = vrot.slane %v826, %v987
    %v989 = vlaneseq
    %v990 = vshrl.u32 %v989, 7
    %v991 = vsub.s32 0, %v990
    %v992 = vrot.slane %v828, %v991
    %v993 = vlaneseq
    %v994 = vshrl.u32 %v993, 7
    %v995 = vsub.s32 0, %v994
    %v996 = vrot.slane %v811, %v995
    %v997 = vlaneseq
    %v998 = vshrl.u32 %v997, 7
    %v999 = vsub.s32 0, %v998
    %v1000 = vrot.slane %v825, %v999
    %v1001 = vlaneseq
    %v1002 = vshrl.u32 %v1001, 7
    %v1003 = vsub.s32 0, %v1002
    %v1004 = vrot.slane %v827, %v1003
    %v1005 = vlaneseq
    %v1006 = vshrl.u32 %v1005, 7
    %v1007 = vsub.s32 0, %v1006
    %v1008 = vrot.slane %v829, %v1007
    %v1009 = vlaneseq
    %v1010 = vshrl.u32 %v1009, 7
    %v1011 = vsub.s32 0, %v1010
    %v1012 = vrot.slane %v853, %v1011
    %v1013 = vlaneseq
    %v1014 = vshrl.u32 %v1013, 7
    %v1015 = vsub.s32 0, %v1014
    %v1016 = vrot.slane %v867, %v1015
    %v1017 = vlaneseq
    %v1018 = vshrl.u32 %v1017, 7
    %v1019 = vsub.s32 0, %v1018
    %v1020 = vrot.slane %v875, %v1019
    %v1021 = vlaneseq
    %v1022 = vshrl.u32 %v1021, 7
    %v1023 = vsub.s32 0, %v1022
    %v1024 = vrot.slane %v877, %v1023
    %v1025 = vlaneseq
    %v1026 = vshrl.u32 %v1025, 7
    %v1027 = vsub.s32 0, %v1026
    %v1028 = vrot.slane %v860, %v1027
    %v1029 = vlaneseq
    %v1030 = vshrl.u32 %v1029, 7
    %v1031 = vsub.s32 0, %v1030
    %v1032 = vrot.slane %v874, %v1031
    %v1033 = vlaneseq
    %v1034 = vshrl.u32 %v1033, 7
    %v1035 = vsub.s32 0, %v1034
    %v1036 = vrot.slane %v876, %v1035
    %v1037 = vlaneseq
    %v1038 = vshrl.u32 %v1037, 7
    %v1039 = vsub.s32 0, %v1038
    %v1040 = vrot.slane %v878, %v1039
    %v1041 = vlaneseq
    %v1042 = vshrl.u32 %v1041, 7
    %v1043 = vsub.s32 0, %v1042
    %v1044 = vrot.slane %v902, %v1043
    %v1045 = vlaneseq
    %v1046 = vshrl.u32 %v1045, 7
    %v1047 = vsub.s32 0, %v1046
    %v1048 = vrot.slane %v916, %v1047
    %v1049 = vlaneseq
    %v1050 = vshrl.u32 %v1049, 7
    %v1051 = vsub.s32 0, %v1050
    %v1052 = vrot.slane %v924, %v1051
    %v1053 = vlaneseq
    %v1054 = vshrl.u32 %v1053, 7
    %v1055 = vsub.s32 0, %v1054
    %v1056 = vrot.slane %v926, %v1055
    %v1057 = vlaneseq
    %v1058 = vshrl.u32 %v1057, 7
    %v1059 = vsub.s32 0, %v1058
    %v1060 = vrot.slane %v909, %v1059
    %v1061 = vlaneseq
    %v1062 = vshrl.u32 %v1061, 7
    %v1063 = vsub.s32 0, %v1062
    %v1064 = vrot.slane %v923, %v1063
    %v1065 = vlaneseq
    %v1066 = vshrl.u32 %v1065, 7
    %v1067 = vsub.s32 0, %v1066
    %v1068 = vrot.slane %v925, %v1067
    %v1069 = vlaneseq
    %v1070 = vshrl.u32 %v1069, 7
    %v1071 = vsub.s32 0, %v1070
    %v1072 = vrot.slane %v927, %v1071
    %v1073 = vlaneseq
    %v1074 = vshrl.u32 %v1073, 7
    %v1075 = vsub.s32 0, %v1074
    %v1076 = vrot.slane %v951, %v1075
    %v1077 = vlaneseq
    %v1078 = vshrl.u32 %v1077, 7
    %v1079 = vsub.s32 0, %v1078
    %v1080 = vrot.slane %v965, %v1079
    %v1081 = vlaneseq
    %v1082 = vshrl.u32 %v1081, 7
    %v1083 = vsub.s32 0, %v1082
    %v1084 = vrot.slane %v973, %v1083
    %v1085 = vlaneseq
    %v1086 = vshrl.u32 %v1085, 7
    %v1087 = vsub.s32 0, %v1086
    %v1088 = vrot.slane %v975, %v1087
    %v1089 = vlaneseq
    %v1090 = vshrl.u32 %v1089, 7
    %v1091 = vsub.s32 0, %v1090
    %v1092 = vrot.slane %v958, %v1091
    %v1093 = vlaneseq
    %v1094 = vshrl.u32 %v1093, 7
    %v1095 = vsub.s32 0, %v1094
    %v1096 = vrot.slane %v972, %v1095
    %v1097 = vlaneseq
    %v1098 = vshrl.u32 %v1097, 7
    %v1099 = vsub.s32 0, %v1098
    %v1100 = vrot.slane %v974, %v1099
    %v1101 = vlaneseq
    %v1102 = vshrl.u32 %v1101, 7
    %v1103 = vsub.s32 0, %v1102
    %v1104 = vrot.slane %v976, %v1103
    %v1137 = vmul.f32 %v768, %v980
    %v1138 = vmul.f32 %v768, %v984
    %v1139 = vmul.f32 %v768, %v988
    %v1140 = vmul.f32 %v768, %v992
    %v1141 = vmul.f32 %v768, %v996
    %v1142 = vmul.f32 %v768, %v1000
    %v1143 = vmul.f32 %v768, %v1004
    %v1144 = vmul.f32 %v768, %v1008
    %v1145 = vmul.f32 %v768, %v1012
    %v1146 = vmul.f32 %v768, %v1016
    %v1147 = vmul.f32 %v768, %v1020
    %v1148 = vmul.f32 %v768, %v1024
    %v1149 = vmul.f32 %v768, %v1028
    %v1150 = vmul.f32 %v768, %v1032
    %v1151 = vmul.f32 %v768, %v1036
    %v1152 = vmul.f32 %v768, %v1040
    %v1153 = vmul.f32 %v768, %v1044
    %v1154 = vmul.f32 %v768, %v1048
    %v1155 = vmul.f32 %v768, %v1052
    %v1156 = vmul.f32 %v768, %v1056
    %v1157 = vmul.f32 %v768, %v1060
    %v1158 = vmul.f32 %v768, %v1064
    %v1159 = vmul.f32 %v768, %v1068
    %v1160 = vmul.f32 %v768, %v1072
    %v1161 = vmul.f32 %v768, %v1076
    %v1162 = vmul.f32 %v768, %v1080
    %v1163 = vmul.f32 %v768, %v1084
    %v1164 = vmul.f32 %v768, %v1088
    %v1165 = vmul.f32 %v768, %v1092
    %v1166 = vmul.f32 %v768, %v1096
    %v1167 = vmul.f32 %v768, %v1100
    %v1168 = vmul.f32 %v768, %v1104
    %v1169 = vmul.f32 %v1137, 1.442695
    %v1170 = vpow.pop %v1169
    %v1171 = vmul.f32 %v1138, 1.442695
    %v1172 = vpow.pop %v1171
    %v1173 = vmul.f32 %v1139, 1.442695
    %v1174 = vpow.pop %v1173
    %v1175 = vmul.f32 %v1140, 1.442695
    %v1176 = vpow.pop %v1175
    %v1177 = vmul.f32 %v1141, 1.442695
    %v1178 = vpow.pop %v1177
    %v1179 = vmul.f32 %v1142, 1.442695
    %v1180 = vpow.pop %v1179
    %v1181 = vmul.f32 %v1143, 1.442695
    %v1182 = vpow.pop %v1181
    %v1183 = vmul.f32 %v1144, 1.442695
    %v1184 = vpow.pop %v1183
    %v1185 = vmul.f32 %v1145, 1.442695
    %v1186 = vpow.pop %v1185
    %v1187 = vmul.f32 %v1146, 1.442695
    %v1188 = vpow.pop %v1187
    %v1189 = vmul.f32 %v1147, 1.442695
    %v1190 = vpow.pop %v1189
    %v1191 = vmul.f32 %v1148, 1.442695
    %v1192 = vpow.pop %v1191
    %v1193 = vmul.f32 %v1149, 1.442695
    %v1194 = vpow.pop %v1193
    %v1195 = vmul.f32 %v1150, 1.442695
    %v1196 = vpow.pop %v1195
    %v1197 = vmul.f32 %v1151, 1.442695
    %v1198 = vpow.pop %v1197
    %v1199 = vmul.f32 %v1152, 1.442695
    %v1200 = vpow.pop %v1199
    %v1201 = vmul.f32 %v1153, 1.442695
    %v1202 = vpow.pop %v1201
    %v1203 = vmul.f32 %v1154, 1.442695
    %v1204 = vpow.pop %v1203
    %v1205 = vmul.f32 %v1155, 1.442695
    %v1206 = vpow.pop %v1205
    %v1207 = vmul.f32 %v1156, 1.442695
    %v1208 = vpow.pop %v1207
    %v1209 = vmul.f32 %v1157, 1.442695
    %v1210 = vpow.pop %v1209
    %v1211 = vmul.f32 %v1158, 1.442695
    %v1212 = vpow.pop %v1211
    %v1213 = vmul.f32 %v1159, 1.442695
    %v1214 = vpow.pop %v1213
    %v1215 = vmul.f32 %v1160, 1.442695
    %v1216 = vpow.pop %v1215
    %v1217 = vmul.f32 %v1161, 1.442695
    %v1218 = vpow.pop %v1217
    %v1219 = vmul.f32 %v1162, 1.442695
    %v1220 = vpow.pop %v1219
    %v1221 = vmul.f32 %v1163, 1.442695
    %v1222 = vpow.pop %v1221
    %v1223 = vmul.f32 %v1164, 1.442695
    %v1224 = vpow.pop %v1223
    %v1225 = vmul.f32 %v1165, 1.442695
    %v1226 = vpow.pop %v1225
    %v1227 = vmul.f32 %v1166, 1.442695
    %v1228 = vpow.pop %v1227
    %v1229 = vmul.f32 %v1167, 1.442695
    %v1230 = vpow.pop %v1229
    %v1231 = vmul.f32 %v1168, 1.442695
    %v1232 = vpow.pop %v1231
    %v1233 = vmul.f32 %v1170, 0.0
    %v1234 = vmul.f32 %v1186, 0.0
    %v1235 = vmul.f32 %v1202, 0.0
    %v1236 = vmul.f32 %v1218, 0.0
    %v1237 = vlaneseq
    %v1238 = vshrl.u32 %v1237, 7
    %v1239 = vsub.s32 0, %v1238
    %v1240 = vrot.slane %v769, %v1239
    %v1241 = vlaneseq
    %v1242 = vshrl.u32 %v1241, 7
    %v1243 = vsub.s32 0, %v1242
    %v1244 = vrot.slane %v770, %v1243
    %v1245 = vlaneseq
    %v1246 = vshrl.u32 %v1245, 7
    %v1247 = vsub.s32 0, %v1246
    %v1248 = vrot.slane %v771, %v1247
    %v1249 = vlaneseq
    %v1250 = vshrl.u32 %v1249, 7
    %v1251 = vsub.s32 0, %v1250
    %v1252 = vrot.slane %v772, %v1251
    %v1253 = vadd.f32 %v1233, %v1240
    %v1254 = vadd.f32 %v1234, %v1244
    %v1255 = vadd.f32 %v1235, %v1248
    %v1256 = vadd.f32 %v1236, %v1252
    %v1257 = vrot.slane %v1253, 4
    %v1258 = vadd.f32 %v1253, %v1257
    %v1259 = vrot.slane %v1258, 2
    %v1260 = vadd.f32 %v1258, %v1259
    %v1261 = vrot.slane %v1260, 1
    %v1262 = vadd.f32 %v1260, %v1261
    %v1263 = vrot.slane %v1254, 4
    %v1264 = vadd.f32 %v1254, %v1263
    %v1265 = vrot.slane %v1264, 2
    %v1266 = vadd.f32 %v1264, %v1265
    %v1267 = vrot.slane %v1266, 1
    %v1268 = vadd.f32 %v1266, %v1267
    %v1269 = vrot.slane %v1255, 4
    %v1270 = vadd.f32 %v1255, %v1269
    %v1271 = vrot.slane %v1270, 2
    %v1272 = vadd.f32 %v1270, %v1271
    %v1273 = vrot.slane %v1272, 1
    %v1274 = vadd.f32 %v1272, %v1273
    %v1275 = vrot.slane %v1256, 4
    %v1276 = vadd.f32 %v1256, %v1275
    %v1277 = vrot.slane %v1276, 2
    %v1278 = vadd.f32 %v1276, %v1277
    %v1279 = vrot.slane %v1278, 1
    %v1280 = vadd.f32 %v1278, %v1279
    %v1281 = vmul.f32 %v1253, %v1172
    %v1282 = vmul.f32 %v1254, %v1188
    %v1283 = vmul.f32 %v1255, %v1204
    %v1284 = vmul.f32 %v1256, %v1220
    %v1285 = vlaneseq
    %v1286 = vshrl.u32 %v1285, 7
    %v1287 = vsub.s32 1, %v1286
    %v1288 = vrot.slane %v769, %v1287
    %v1289 = vlaneseq
    %v1290 = vshrl.u32 %v1289, 7
    %v1291 = vsub.s32 1, %v1290
    %v1292 = vrot.slane %v770, %v1291
    %v1293 = vlaneseq
    %v1294 = vshrl.u32 %v1293, 7
    %v1295 = vsub.s32 1, %v1294
    %v1296 = vrot.slane %v771, %v1295
    %v1297 = vlaneseq
    %v1298 = vshrl.u32 %v1297, 7
    %v1299 = vsub.s32 1, %v1298
    %v1300 = vrot.slane %v772, %v1299
    %v1301 = vadd.f32 %v1281, %v1288
    %v1302 = vadd.f32 %v1282, %v1292
    %v1303 = vadd.f32 %v1283, %v1296
    %v1304 = vadd.f32 %v1284, %v1300
    %v1305 = vrot.slane %v1301, 4
    %v1306 = vadd.f32 %v1301, %v1305
    %v1307 = vrot.slane %v1306, 2
    %v1308 = vadd.f32 %v1306, %v1307
    %v1309 = vrot.slane %v1308, 1
    %v1310 = vadd.f32 %v1308, %v1309
    %v1311 = vrot.slane %v1302, 4
    %v1312 = vadd.f32 %v1302, %v1311
    %v1313 = vrot.slane %v1312, 2
    %v1314 = vadd.f32 %v1312, %v1313
    %v1315 = vrot.slane %v1314, 1
    %v1316 = vadd.f32 %v1314, %v1315
    %v1317 = vrot.slane %v1303, 4
    %v1318 = vadd.f32 %v1303, %v1317
    %v1319 = vrot.slane %v1318, 2
    %v1320 = vadd.f32 %v1318, %v1319
    %v1321 = vrot.slane %v1320, 1
    %v1322 = vadd.f32 %v1320, %v1321
    %v1323 = vrot.slane %v1304, 4
    %v1324 = vadd.f32 %v1304, %v1323
    %v1325 = vrot.slane %v1324, 2
    %v1326 = vadd.f32 %v1324, %v1325
    %v1327 = vrot.slane %v1326, 1
    %v1328 = vadd.f32 %v1326, %v1327
    %v1329 = vmul.f32 %v1301, %v1174
    %v1330 = vmul.f32 %v1302, %v1190
    %v1331 = vmul.f32 %v1303, %v1206
    %v1332 = vmul.f32 %v1304, %v1222
    %v1333 = vlaneseq
    %v1334 = vshrl.u32 %v1333, 7
    %v1335 = vsub.s32 2, %v1334
    %v1336 = vrot.slane %v769, %v1335
    %v1337 = vlaneseq
    %v1338 = vshrl.u32 %v1337, 7
    %v1339 = vsub.s32 2, %v1338
    %v1340 = vrot.slane %v770, %v1339
    %v1341 = vlaneseq
    %v1342 = vshrl.u32 %v1341, 7
    %v1343 = vsub.s32 2, %v1342
    %v1344 = vrot.slane %v771, %v1343
    %v1345 = vlaneseq
    %v1346 = vshrl.u32 %v1345, 7
    %v1347 = vsub.s32 2, %v1346
    %v1348 = vrot.slane %v772, %v1347
    %v1349 = vadd.f32 %v1329, %v1336
    %v1350 = vadd.f32 %v1330, %v1340
    %v1351 = vadd.f32 %v1331, %v1344
    %v1352 = vadd.f32 %v1332, %v1348
    %v1353 = vrot.slane %v1349, 4
    %v1354 = vadd.f32 %v1349, %v1353
    %v1355 = vrot.slane %v1354, 2
    %v1356 = vadd.f32 %v1354, %v1355
    %v1357 = vrot.slane %v1356, 1
    %v1358 = vadd.f32 %v1356, %v1357
    %v1359 = vrot.slane %v1350, 4
    %v1360 = vadd.f32 %v1350, %v1359
    %v1361 = vrot.slane %v1360, 2
    %v1362 = vadd.f32 %v1360, %v1361
    %v1363 = vrot.slane %v1362, 1
    %v1364 = vadd.f32 %v1362, %v1363
    %v1365 = vrot.slane %v1351, 4
    %v1366 = vadd.f32 %v1351, %v1365
    %v1367 = vrot.slane %v1366, 2
    %v1368 = vadd.f32 %v1366, %v1367
    %v1369 = vrot.slane %v1368, 1
    %v1370 = vadd.f32 %v1368, %v1369
    %v1371 = vrot.slane %v1352, 4
    %v1372 = vadd.f32 %v1352, %v1371
    %v1373 = vrot.slane %v1372, 2
    %v1374 = vadd.f32 %v1372, %v1373
    %v1375 = vrot.slane %v1374, 1
    %v1376 = vadd.f32 %v1374, %v1375
    %v1377 = vmul.f32 %v1349, %v1176
    %v1378 = vmul.f32 %v1350, %v1192
    %v1379 = vmul.f32 %v1351, %v1208
    %v1380 = vmul.f32 %v1352, %v1224
    %v1381 = vlaneseq
    %v1382 = vshrl.u32 %v1381, 7
    %v1383 = vsub.s32 3, %v1382
    %v1384 = vrot.slane %v769, %v1383
    %v1385 = vlaneseq
    %v1386 = vshrl.u32 %v1385, 7
    %v1387 = vsub.s32 3, %v1386
    %v1388 = vrot.slane %v770, %v1387
    %v1389 = vlaneseq
    %v1390 = vshrl.u32 %v1389, 7
    %v1391 = vsub.s32 3, %v1390
    %v1392 = vrot.slane %v771, %v1391
    %v1393 = vlaneseq
    %v1394 = vshrl.u32 %v1393, 7
    %v1395 = vsub.s32 3, %v1394
    %v1396 = vrot.slane %v772, %v1395
    %v1397 = vadd.f32 %v1377, %v1384
    %v1398 = vadd.f32 %v1378, %v1388
    %v1399 = vadd.f32 %v1379, %v1392
    %v1400 = vadd.f32 %v1380, %v1396
    %v1401 = vrot.slane %v1397, 4
    %v1402 = vadd.f32 %v1397, %v1401
    %v1403 = vrot.slane %v1402, 2
    %v1404 = vadd.f32 %v1402, %v1403
    %v1405 = vrot.slane %v1404, 1
    %v1406 = vadd.f32 %v1404, %v1405
    %v1407 = vrot.slane %v1398, 4
    %v1408 = vadd.f32 %v1398, %v1407
    %v1409 = vrot.slane %v1408, 2
    %v1410 = vadd.f32 %v1408, %v1409
    %v1411 = vrot.slane %v1410, 1
    %v1412 = vadd.f32 %v1410, %v1411
    %v1413 = vrot.slane %v1399, 4
    %v1414 = vadd.f32 %v1399, %v1413
    %v1415 = vrot.slane %v1414, 2
    %v1416 = vadd.f32 %v1414, %v1415
    %v1417 = vrot.slane %v1416, 1
    %v1418 = vadd.f32 %v1416, %v1417
    %v1419 = vrot.slane %v1400, 4
    %v1420 = vadd.f32 %v1400, %v1419
    %v1421 = vrot.slane %v1420, 2
    %v1422 = vadd.f32 %v1420, %v1421
    %v1423 = vrot.slane %v1422, 1
    %v1424 = vadd.f32 %v1422, %v1423
    %v1425 = vmul.f32 %v1397, %v1178
    %v1426 = vmul.f32 %v1398, %v1194
    %v1427 = vmul.f32 %v1399, %v1210
    %v1428 = vmul.f32 %v1400, %v1226
    %v1429 = vlaneseq
    %v1430 = vshrl.u32 %v1429, 7
    %v1431 = vsub.s32 4, %v1430
    %v1432 = vrot.slane %v769, %v1431
    %v1433 = vlaneseq
    %v1434 = vshrl.u32 %v1433, 7
    %v1435 = vsub.s32 4, %v1434
    %v1436 = vrot.slane %v770, %v1435
    %v1437 = vlaneseq
    %v1438 = vshrl.u32 %v1437, 7
    %v1439 = vsub.s32 4, %v1438
    %v1440 = vrot.slane %v771, %v1439
    %v1441 = vlaneseq
    %v1442 = vshrl.u32 %v1441, 7
    %v1443 = vsub.s32 4, %v1442
    %v1444 = vrot.slane %v772, %v1443
    %v1445 = vadd.f32 %v1425, %v1432
    %v1446 = vadd.f32 %v1426, %v1436
    %v1447 = vadd.f32 %v1427, %v1440
    %v1448 = vadd.f32 %v1428, %v1444
    %v1449 = vrot.slane %v1445, 4
    %v1450 = vadd.f32 %v1445, %v1449
    %v1451 = vrot.slane %v1450, 2
    %v1452 = vadd.f32 %v1450, %v1451
    %v1453 = vrot.slane %v1452, 1
    %v1454 = vadd.f32 %v1452, %v1453
    %v1455 = vrot.slane %v1446, 4
    %v1456 = vadd.f32 %v1446, %v1455
    %v1457 = vrot.slane %v1456, 2
    %v1458 = vadd.f32 %v1456, %v1457
    %v1459 = vrot.slane %v1458, 1
    %v1460 = vadd.f32 %v1458, %v1459
    %v1461 = vrot.slane %v1447, 4
    %v1462 = vadd.f32 %v1447, %v1461
    %v1463 = vrot.slane %v1462, 2
    %v1464 = vadd.f32 %v1462, %v1463
    %v1465 = vrot.slane %v1464, 1
    %v1466 = vadd.f32 %v1464, %v1465
    %v1467 = vrot.slane %v1448, 4
    %v1468 = vadd.f32 %v1448, %v1467
    %v1469 = vrot.slane %v1468, 2
    %v1470 = vadd.f32 %v1468, %v1469
    %v1471 = vrot.slane %v1470, 1
    %v1472 = vadd.f32 %v1470, %v1471
    %v1473 = vmul.f32 %v1445, %v1180
    %v1474 = vmul.f32 %v1446, %v1196
    %v1475 = vmul.f32 %v1447, %v1212
    %v1476 = vmul.f32 %v1448, %v1228
    %v1477 = vlaneseq
    %v1478 = vshrl.u32 %v1477, 7
    %v1479 = vsub.s32 5, %v1478
    %v1480 = vrot.slane %v769, %v1479
    %v1481 = vlaneseq
    %v1482 = vshrl.u32 %v1481, 7
    %v1483 = vsub.s32 5, %v1482
    %v1484 = vrot.slane %v770, %v1483
    %v1485 = vlaneseq
    %v1486 = vshrl.u32 %v1485, 7
    %v1487 = vsub.s32 5, %v1486
    %v1488 = vrot.slane %v771, %v1487
    %v1489 = vlaneseq
    %v1490 = vshrl.u32 %v1489, 7
    %v1491 = vsub.s32 5, %v1490
    %v1492 = vrot.slane %v772, %v1491
    %v1493 = vadd.f32 %v1473, %v1480
    %v1494 = vadd.f32 %v1474, %v1484
    %v1495 = vadd.f32 %v1475, %v1488
    %v1496 = vadd.f32 %v1476, %v1492
    %v1497 = vrot.slane %v1493, 4
    %v1498 = vadd.f32 %v1493, %v1497
    %v1499 = vrot.slane %v1498, 2
    %v1500 = vadd.f32 %v1498, %v1499
    %v1501 = vrot.slane %v1500, 1
    %v1502 = vadd.f32 %v1500, %v1501
    %v1503 = vrot.slane %v1494, 4
    %v1504 = vadd.f32 %v1494, %v1503
    %v1505 = vrot.slane %v1504, 2
    %v1506 = vadd.f32 %v1504, %v1505
    %v1507 = vrot.slane %v1506, 1
    %v1508 = vadd.f32 %v1506, %v1507
    %v1509 = vrot.slane %v1495, 4
    %v1510 = vadd.f32 %v1495, %v1509
    %v1511 = vrot.slane %v1510, 2
    %v1512 = vadd.f32 %v1510, %v1511
    %v1513 = vrot.slane %v1512, 1
    %v1514 = vadd.f32 %v1512, %v1513
    %v1515 = vrot.slane %v1496, 4
    %v1516 = vadd.f32 %v1496, %v1515
    %v1517 = vrot.slane %v1516, 2
    %v1518 = vadd.f32 %v1516, %v1517
    %v1519 = vrot.slane %v1518, 1
    %v1520 = vadd.f32 %v1518, %v1519
    %v1521 = vmul.f32 %v1493, %v1182
    %v1522 = vmul.f32 %v1494, %v1198
    %v1523 = vmul.f32 %v1495, %v1214
    %v1524 = vmul.f32 %v1496, %v1230
    %v1525 = vlaneseq
    %v1526 = vshrl.u32 %v1525, 7
    %v1527 = vsub.s32 6, %v1526
    %v1528 = vrot.slane %v769, %v1527
    %v1529 = vlaneseq
    %v1530 = vshrl.u32 %v1529, 7
    %v1531 = vsub.s32 6, %v1530
    %v1532 = vrot.slane %v770, %v1531
    %v1533 = vlaneseq
    %v1534 = vshrl.u32 %v1533, 7
    %v1535 = vsub.s32 6, %v1534
    %v1536 = vrot.slane %v771, %v1535
    %v1537 = vlaneseq
    %v1538 = vshrl.u32 %v1537, 7
    %v1539 = vsub.s32 6, %v1538
    %v1540 = vrot.slane %v772, %v1539
    %v1541 = vadd.f32 %v1521, %v1528
    %v1542 = vadd.f32 %v1522, %v1532
    %v1543 = vadd.f32 %v1523, %v1536
    %v1544 = vadd.f32 %v1524, %v1540
    %v1545 = vrot.slane %v1541, 4
    %v1546 = vadd.f32 %v1541, %v1545
    %v1547 = vrot.slane %v1546, 2
    %v1548 = vadd.f32 %v1546, %v1547
    %v1549 = vrot.slane %v1548, 1
    %v1550 = vadd.f32 %v1548, %v1549
    %v1551 = vrot.slane %v1542, 4
    %v1552 = vadd.f32 %v1542, %v1551
    %v1553 = vrot.slane %v1552, 2
    %v1554 = vadd.f32 %v1552, %v1553
    %v1555 = vrot.slane %v1554, 1
    %v1556 = vadd.f32 %v1554, %v1555
    %v1557 = vrot.slane %v1543, 4
    %v1558 = vadd.f32 %v1543, %v1557
    %v1559 = vrot.slane %v1558, 2
    %v1560 = vadd.f32 %v1558, %v1559
    %v1561 = vrot.slane %v1560, 1
    %v1562 = vadd.f32 %v1560, %v1561
    %v1563 = vrot.slane %v1544, 4
    %v1564 = vadd.f32 %v1544, %v1563
    %v1565 = vrot.slane %v1564, 2
    %v1566 = vadd.f32 %v1564, %v1565
    %v1567 = vrot.slane %v1566, 1
    %v1568 = vadd.f32 %v1566, %v1567
    %v1569 = vmul.f32 %v1541, %v1184
    %v1570 = vmul.f32 %v1542, %v1200
    %v1571 = vmul.f32 %v1543, %v1216
    %v1572 = vmul.f32 %v1544, %v1232
    %v1573 = vlaneseq
    %v1574 = vshrl.u32 %v1573, 7
    %v1575 = vsub.s32 7, %v1574
    %v1576 = vrot.slane %v769, %v1575
    %v1577 = vlaneseq
    %v1578 = vshrl.u32 %v1577, 7
    %v1579 = vsub.s32 7, %v1578
    %v1580 = vrot.slane %v770, %v1579
    %v1581 = vlaneseq
    %v1582 = vshrl.u32 %v1581, 7
    %v1583 = vsub.s32 7, %v1582
    %v1584 = vrot.slane %v771, %v1583
    %v1585 = vlaneseq
    %v1586 = vshrl.u32 %v1585, 7
    %v1587 = vsub.s32 7, %v1586
    %v1588 = vrot.slane %v772, %v1587
    %v1589 = vadd.f32 %v1569, %v1576
    %v1590 = vadd.f32 %v1570, %v1580
    %v1591 = vadd.f32 %v1571, %v1584
    %v1592 = vadd.f32 %v1572, %v1588
    %v1593 = vrot.slane %v1589, 4
    %v1594 = vadd.f32 %v1589, %v1593
    %v1595 = vrot.slane %v1594, 2
    %v1596 = vadd.f32 %v1594, %v1595
    %v1597 = vrot.slane %v1596, 1
    %v1598 = vadd.f32 %v1596, %v1597
    %v1599 = vrot.slane %v1590, 4
    %v1600 = vadd.f32 %v1590, %v1599
    %v1601 = vrot.slane %v1600, 2
    %v1602 = vadd.f32 %v1600, %v1601
    %v1603 = vrot.slane %v1602, 1
    %v1604 = vadd.f32 %v1602, %v1603
    %v1605 = vrot.slane %v1591, 4
    %v1606 = vadd.f32 %v1591, %v1605
    %v1607 = vrot.slane %v1606, 2
    %v1608 = vadd.f32 %v1606, %v1607
    %v1609 = vrot.slane %v1608, 1
    %v1610 = vadd.f32 %v1608, %v1609
    %v1611 = vrot.slane %v1592, 4
    %v1612 = vadd.f32 %v1592, %v1611
    %v1613 = vrot.slane %v1612, 2
    %v1614 = vadd.f32 %v1612, %v1613
    %v1615 = vrot.slane %v1614, 1
    %v1616 = vadd.f32 %v1614, %v1615
    %vm1617 = vcmask 1040384
    %v1618 = vsel %vm1617, %v1262, %v1310
    %v1619 = vsel %vm1617, %v1268, %v1316
    %v1620 = vsel %vm1617, %v1274, %v1322
    %v1621 = vsel %vm1617, %v1280, %v1328
    %vm1622 = vcmask 1041408
    %v1623 = vsel %vm1622, %v1618, %v1358
    %v1624 = vsel %vm1622, %v1619, %v1364
    %v1625 = vsel %vm1622, %v1620, %v1370
    %v1626 = vsel %vm1622, %v1621, %v1376
    %vm1627 = vcmask 1042432
    %v1628 = vsel %vm1627, %v1623, %v1406
    %v1629 = vsel %vm1627, %v1624, %v1412
    %v1630 = vsel %vm1627, %v1625, %v1418
    %v1631 = vsel %vm1627, %v1626, %v1424
    %vm1632 = vcmask 1043456
    %v1633 = vsel %vm1632, %v1628, %v1454
    %v1634 = vsel %vm1632, %v1629, %v1460
    %v1635 = vsel %vm1632, %v1630, %v1466
    %v1636 = vsel %vm1632, %v1631, %v1472
    %vm1637 = vcmask 1044480
    %v1638 = vsel %vm1637, %v1633, %v1502
    %v1639 = vsel %vm1637, %v1634, %v1508
    %v1640 = vsel %vm1637, %v1635, %v1514
    %v1641 = vsel %vm1637, %v1636, %v1520
    %vm1642 = vcmask 1045504
    %v1643 = vsel %vm1642, %v1638, %v1550
    %v1644 = vsel %vm1642, %v1639, %v1556
    %v1645 = vsel %vm1642, %v1640, %v1562
    %v1646 = vsel %vm1642, %v1641, %v1568
    %vm1647 = vcmask 1046528
    %v1648 = vsel %vm1647, %v1643, %v1598
    %v1649 = vsel %vm1647, %v1644, %v1604
    %v1650 = vsel %vm1647, %v1645, %v1610
    %v1651 = vsel %vm1647, %v1646, %v1616
    %1652 = vst [vmem:[#allocation3] sm:$0xff] %v1648
    %1653 = vst [vmem:[#allocation3 + $0x10] sm:$0xff] %v1649
    %1654 = vst [vmem:[#allocation3 + $0x20] sm:$0xff] %v1650
    %1655 = vst [vmem:[#allocation3 + $0x30] sm:$0xff] %v1651
    %s1656 = scalar_lea.vmem [#allocation2], 8
    %v1657 = vld [vmem:[%s1656] sm:$0xff]
    %v1658 = vld [vmem:[%s1656 + $0x10] sm:$0xff]
    %v1659 = vld [vmem:[%s1656 + $0x20] sm:$0xff]
    %v1660 = vld [vmem:[%s1656 + $0x30] sm:$0xff]
    %s1661 = scalar_lea.vmem [#allocation3], 8
    %v1662 = vld [vmem:[%s1661] sm:$0xff]
    %v1663 = vld [vmem:[%s1661 + $0x10] sm:$0xff]
    %v1664 = vld [vmem:[%s1661 + $0x20] sm:$0xff]
    %v1665 = vld [vmem:[%s1661 + $0x30] sm:$0xff]
    %v1670 = vcombine.high %v1662, %v1662
    %v1672 = vunpack.c.l.s4 1966171168
    %v1673 = vunpack.c.0.s8 %v1672
    %v1674 = vlaneseq
    %v1675 = vshrl.u32 %v1674, 7
    %v1676 = vsub.s32 %v1673, %v1675
    %v1677 = vrot.slane %v1662, %v1676
    %v1679 = vunpack.c.l.s4 1966171168
    %v1680 = vunpack.c.0.s8 %v1679
    %v1681 = vlaneseq
    %v1682 = vshrl.u32 %v1681, 7
    %v1683 = vsub.s32 %v1680, %v1682
    %v1684 = vrot.slane %v1670, %v1683
    %v1685 = vcombine.high %v1677, %v1677
    %v1686 = vcombine.high %v1684, %v1684
    %v1688 = vunpack.c.l.s4 1966171168
    %v1689 = vunpack.c.0.s8 %v1688
    %v1690 = vlaneseq
    %v1691 = vshrl.u32 %v1690, 7
    %v1692 = vsub.s32 %v1689, %v1691
    %v1693 = vrot.slane %v1677, %v1692
    %v1695 = vunpack.c.l.s4 1966171168
    %v1696 = vunpack.c.0.s8 %v1695
    %v1697 = vlaneseq
    %v1698 = vshrl.u32 %v1697, 7
    %v1699 = vsub.s32 %v1696, %v1698
    %v1700 = vrot.slane %v1684, %v1699
    %v1702 = vunpack.c.l.s4 1966171168
    %v1703 = vunpack.c.0.s8 %v1702
    %v1704 = vlaneseq
    %v1705 = vshrl.u32 %v1704, 7
    %v1706 = vsub.s32 %v1703, %v1705
    %v1707 = vrot.slane %v1685, %v1706
    %v1709 = vunpack.c.l.s4 1966171168
    %v1710 = vunpack.c.0.s8 %v1709
    %v1711 = vlaneseq
    %v1712 = vshrl.u32 %v1711, 7
    %v1713 = vsub.s32 %v1710, %v1712
    %v1714 = vrot.slane %v1686, %v1713
    %v1715 = vcombine.high %v1693, %v1693
    %v1716 = vcombine.high %v1700, %v1700
    %v1717 = vcombine.high %v1707, %v1707
    %v1718 = vcombine.high %v1714, %v1714
    %v1719 = vcombine.high %v1663, %v1663
    %v1721 = vunpack.c.l.s4 1966171168
    %v1722 = vunpack.c.0.s8 %v1721
    %v1723 = vlaneseq
    %v1724 = vshrl.u32 %v1723, 7
    %v1725 = vsub.s32 %v1722, %v1724
    %v1726 = vrot.slane %v1663, %v1725
    %v1728 = vunpack.c.l.s4 1966171168
    %v1729 = vunpack.c.0.s8 %v1728
    %v1730 = vlaneseq
    %v1731 = vshrl.u32 %v1730, 7
    %v1732 = vsub.s32 %v1729, %v1731
    %v1733 = vrot.slane %v1719, %v1732
    %v1734 = vcombine.high %v1726, %v1726
    %v1735 = vcombine.high %v1733, %v1733
    %v1737 = vunpack.c.l.s4 1966171168
    %v1738 = vunpack.c.0.s8 %v1737
    %v1739 = vlaneseq
    %v1740 = vshrl.u32 %v1739, 7
    %v1741 = vsub.s32 %v1738, %v1740
    %v1742 = vrot.slane %v1726, %v1741
    %v1744 = vunpack.c.l.s4 1966171168
    %v1745 = vunpack.c.0.s8 %v1744
    %v1746 = vlaneseq
    %v1747 = vshrl.u32 %v1746, 7
    %v1748 = vsub.s32 %v1745, %v1747
    %v1749 = vrot.slane %v1733, %v1748
    %v1751 = vunpack.c.l.s4 1966171168
    %v1752 = vunpack.c.0.s8 %v1751
    %v1753 = vlaneseq
    %v1754 = vshrl.u32 %v1753, 7
    %v1755 = vsub.s32 %v1752, %v1754
    %v1756 = vrot.slane %v1734, %v1755
    %v1758 = vunpack.c.l.s4 1966171168
    %v1759 = vunpack.c.0.s8 %v1758
    %v1760 = vlaneseq
    %v1761 = vshrl.u32 %v1760, 7
    %v1762 = vsub.s32 %v1759, %v1761
    %v1763 = vrot.slane %v1735, %v1762
    %v1764 = vcombine.high %v1742, %v1742
    %v1765 = vcombine.high %v1749, %v1749
    %v1766 = vcombine.high %v1756, %v1756
    %v1767 = vcombine.high %v1763, %v1763
    %v1768 = vcombine.high %v1664, %v1664
    %v1770 = vunpack.c.l.s4 1966171168
    %v1771 = vunpack.c.0.s8 %v1770
    %v1772 = vlaneseq
    %v1773 = vshrl.u32 %v1772, 7
    %v1774 = vsub.s32 %v1771, %v1773
    %v1775 = vrot.slane %v1664, %v1774
    %v1777 = vunpack.c.l.s4 1966171168
    %v1778 = vunpack.c.0.s8 %v1777
    %v1779 = vlaneseq
    %v1780 = vshrl.u32 %v1779, 7
    %v1781 = vsub.s32 %v1778, %v1780
    %v1782 = vrot.slane %v1768, %v1781
    %v1783 = vcombine.high %v1775, %v1775
    %v1784 = vcombine.high %v1782, %v1782
    %v1786 = vunpack.c.l.s4 1966171168
    %v1787 = vunpack.c.0.s8 %v1786
    %v1788 = vlaneseq
    %v1789 = vshrl.u32 %v1788, 7
    %v1790 = vsub.s32 %v1787, %v1789
    %v1791 = vrot.slane %v1775, %v1790
    %v1793 = vunpack.c.l.s4 1966171168
    %v1794 = vunpack.c.0.s8 %v1793
    %v1795 = vlaneseq
    %v1796 = vshrl.u32 %v1795, 7
    %v1797 = vsub.s32 %v1794, %v1796
    %v1798 = vrot.slane %v1782, %v1797
    %v1800 = vunpack.c.l.s4 1966171168
    %v1801 = vunpack.c.0.s8 %v1800
    %v1802 = vlaneseq
    %v1803 = vshrl.u32 %v1802, 7
    %v1804 = vsub.s32 %v1801, %v1803
    %v1805 = vrot.slane %v1783, %v1804
    %v1807 = vunpack.c.l.s4 1966171168
    %v1808 = vunpack.c.0.s8 %v1807
    %v1809 = vlaneseq
    %v1810 = vshrl.u32 %v1809, 7
    %v1811 = vsub.s32 %v1808, %v1810
    %v1812 = vrot.slane %v1784, %v1811
    %v1813 = vcombine.high %v1791, %v1791
    %v1814 = vcombine.high %v1798, %v1798
    %v1815 = vcombine.high %v1805, %v1805
    %v1816 = vcombine.high %v1812, %v1812
    %v1817 = vcombine.high %v1665, %v1665
    %v1819 = vunpack.c.l.s4 1966171168
    %v1820 = vunpack.c.0.s8 %v1819
    %v1821 = vlaneseq
    %v1822 = vshrl.u32 %v1821, 7
    %v1823 = vsub.s32 %v1820, %v1822
    %v1824 = vrot.slane %v1665, %v1823
    %v1826 = vunpack.c.l.s4 1966171168
    %v1827 = vunpack.c.0.s8 %v1826
    %v1828 = vlaneseq
    %v1829 = vshrl.u32 %v1828, 7
    %v1830 = vsub.s32 %v1827, %v1829
    %v1831 = vrot.slane %v1817, %v1830
    %v1832 = vcombine.high %v1824, %v1824
    %v1833 = vcombine.high %v1831, %v1831
    %v1835 = vunpack.c.l.s4 1966171168
    %v1836 = vunpack.c.0.s8 %v1835
    %v1837 = vlaneseq
    %v1838 = vshrl.u32 %v1837, 7
    %v1839 = vsub.s32 %v1836, %v1838
    %v1840 = vrot.slane %v1824, %v1839
    %v1842 = vunpack.c.l.s4 1966171168
    %v1843 = vunpack.c.0.s8 %v1842
    %v1844 = vlaneseq
    %v1845 = vshrl.u32 %v1844, 7
    %v1846 = vsub.s32 %v1843, %v1845
    %v1847 = vrot.slane %v1831, %v1846
    %v1849 = vunpack.c.l.s4 1966171168
    %v1850 = vunpack.c.0.s8 %v1849
    %v1851 = vlaneseq
    %v1852 = vshrl.u32 %v1851, 7
    %v1853 = vsub.s32 %v1850, %v1852
    %v1854 = vrot.slane %v1832, %v1853
    %v1856 = vunpack.c.l.s4 1966171168
    %v1857 = vunpack.c.0.s8 %v1856
    %v1858 = vlaneseq
    %v1859 = vshrl.u32 %v1858, 7
    %v1860 = vsub.s32 %v1857, %v1859
    %v1861 = vrot.slane %v1833, %v1860
    %v1862 = vcombine.high %v1840, %v1840
    %v1863 = vcombine.high %v1847, %v1847
    %v1864 = vcombine.high %v1854, %v1854
    %v1865 = vcombine.high %v1861, %v1861
    %v1866 = vlaneseq
    %v1867 = vshrl.u32 %v1866, 7
    %v1868 = vsub.s32 0, %v1867
    %v1869 = vrot.slane %v1693, %v1868
    %v1870 = vlaneseq
    %v1871 = vshrl.u32 %v1870, 7
    %v1872 = vsub.s32 0, %v1871
    %v1873 = vrot.slane %v1707, %v1872
    %v1874 = vlaneseq
    %v1875 = vshrl.u32 %v1874, 7
    %v1876 = vsub.s32 0, %v1875
    %v1877 = vrot.slane %v1715, %v1876
    %v1878 = vlaneseq
    %v1879 = vshrl.u32 %v1878, 7
    %v1880 = vsub.s32 0, %v1879
    %v1881 = vrot.slane %v1717, %v1880
    %v1882 = vlaneseq
    %v1883 = vshrl.u32 %v1882, 7
    %v1884 = vsub.s32 0, %v1883
    %v1885 = vrot.slane %v1700, %v1884
    %v1886 = vlaneseq
    %v1887 = vshrl.u32 %v1886, 7
    %v1888 = vsub.s32 0, %v1887
    %v1889 = vrot.slane %v1714, %v1888
    %v1890 = vlaneseq
    %v1891 = vshrl.u32 %v1890, 7
    %v1892 = vsub.s32 0, %v1891
    %v1893 = vrot.slane %v1716, %v1892
    %v1894 = vlaneseq
    %v1895 = vshrl.u32 %v1894, 7
    %v1896 = vsub.s32 0, %v1895
    %v1897 = vrot.slane %v1718, %v1896
    %v1898 = vlaneseq
    %v1899 = vshrl.u32 %v1898, 7
    %v1900 = vsub.s32 0, %v1899
    %v1901 = vrot.slane %v1742, %v1900
    %v1902 = vlaneseq
    %v1903 = vshrl.u32 %v1902, 7
    %v1904 = vsub.s32 0, %v1903
    %v1905 = vrot.slane %v1756, %v1904
    %v1906 = vlaneseq
    %v1907 = vshrl.u32 %v1906, 7
    %v1908 = vsub.s32 0, %v1907
    %v1909 = vrot.slane %v1764, %v1908
    %v1910 = vlaneseq
    %v1911 = vshrl.u32 %v1910, 7
    %v1912 = vsub.s32 0, %v1911
    %v1913 = vrot.slane %v1766, %v1912
    %v1914 = vlaneseq
    %v1915 = vshrl.u32 %v1914, 7
    %v1916 = vsub.s32 0, %v1915
    %v1917 = vrot.slane %v1749, %v1916
    %v1918 = vlaneseq
    %v1919 = vshrl.u32 %v1918, 7
    %v1920 = vsub.s32 0, %v1919
    %v1921 = vrot.slane %v1763, %v1920
    %v1922 = vlaneseq
    %v1923 = vshrl.u32 %v1922, 7
    %v1924 = vsub.s32 0, %v1923
    %v1925 = vrot.slane %v1765, %v1924
    %v1926 = vlaneseq
    %v1927 = vshrl.u32 %v1926, 7
    %v1928 = vsub.s32 0, %v1927
    %v1929 = vrot.slane %v1767, %v1928
    %v1930 = vlaneseq
    %v1931 = vshrl.u32 %v1930, 7
    %v1932 = vsub.s32 0, %v1931
    %v1933 = vrot.slane %v1791, %v1932
    %v1934 = vlaneseq
    %v1935 = vshrl.u32 %v1934, 7
    %v1936 = vsub.s32 0, %v1935
    %v1937 = vrot.slane %v1805, %v1936
    %v1938 = vlaneseq
    %v1939 = vshrl.u32 %v1938, 7
    %v1940 = vsub.s32 0, %v1939
    %v1941 = vrot.slane %v1813, %v1940
    %v1942 = vlaneseq
    %v1943 = vshrl.u32 %v1942, 7
    %v1944 = vsub.s32 0, %v1943
    %v1945 = vrot.slane %v1815, %v1944
    %v1946 = vlaneseq
    %v1947 = vshrl.u32 %v1946, 7
    %v1948 = vsub.s32 0, %v1947
    %v1949 = vrot.slane %v1798, %v1948
    %v1950 = vlaneseq
    %v1951 = vshrl.u32 %v1950, 7
    %v1952 = vsub.s32 0, %v1951
    %v1953 = vrot.slane %v1812, %v1952
    %v1954 = vlaneseq
    %v1955 = vshrl.u32 %v1954, 7
    %v1956 = vsub.s32 0, %v1955
    %v1957 = vrot.slane %v1814, %v1956
    %v1958 = vlaneseq
    %v1959 = vshrl.u32 %v1958, 7
    %v1960 = vsub.s32 0, %v1959
    %v1961 = vrot.slane %v1816, %v1960
    %v1962 = vlaneseq
    %v1963 = vshrl.u32 %v1962, 7
    %v1964 = vsub.s32 0, %v1963
    %v1965 = vrot.slane %v1840, %v1964
    %v1966 = vlaneseq
    %v1967 = vshrl.u32 %v1966, 7
    %v1968 = vsub.s32 0, %v1967
    %v1969 = vrot.slane %v1854, %v1968
    %v1970 = vlaneseq
    %v1971 = vshrl.u32 %v1970, 7
    %v1972 = vsub.s32 0, %v1971
    %v1973 = vrot.slane %v1862, %v1972
    %v1974 = vlaneseq
    %v1975 = vshrl.u32 %v1974, 7
    %v1976 = vsub.s32 0, %v1975
    %v1977 = vrot.slane %v1864, %v1976
    %v1978 = vlaneseq
    %v1979 = vshrl.u32 %v1978, 7
    %v1980 = vsub.s32 0, %v1979
    %v1981 = vrot.slane %v1847, %v1980
    %v1982 = vlaneseq
    %v1983 = vshrl.u32 %v1982, 7
    %v1984 = vsub.s32 0, %v1983
    %v1985 = vrot.slane %v1861, %v1984
    %v1986 = vlaneseq
    %v1987 = vshrl.u32 %v1986, 7
    %v1988 = vsub.s32 0, %v1987
    %v1989 = vrot.slane %v1863, %v1988
    %v1990 = vlaneseq
    %v1991 = vshrl.u32 %v1990, 7
    %v1992 = vsub.s32 0, %v1991
    %v1993 = vrot.slane %v1865, %v1992
    %v2026 = vmul.f32 %v768, %v1869
    %v2027 = vmul.f32 %v768, %v1873
    %v2028 = vmul.f32 %v768, %v1877
    %v2029 = vmul.f32 %v768, %v1881
    %v2030 = vmul.f32 %v768, %v1885
    %v2031 = vmul.f32 %v768, %v1889
    %v2032 = vmul.f32 %v768, %v1893
    %v2033 = vmul.f32 %v768, %v1897
    %v2034 = vmul.f32 %v768, %v1901
    %v2035 = vmul.f32 %v768, %v1905
    %v2036 = vmul.f32 %v768, %v1909
    %v2037 = vmul.f32 %v768, %v1913
    %v2038 = vmul.f32 %v768, %v1917
    %v2039 = vmul.f32 %v768, %v1921
    %v2040 = vmul.f32 %v768, %v1925
    %v2041 = vmul.f32 %v768, %v1929
    %v2042 = vmul.f32 %v768, %v1933
    %v2043 = vmul.f32 %v768, %v1937
    %v2044 = vmul.f32 %v768, %v1941
    %v2045 = vmul.f32 %v768, %v1945
    %v2046 = vmul.f32 %v768, %v1949
    %v2047 = vmul.f32 %v768, %v1953
    %v2048 = vmul.f32 %v768, %v1957
    %v2049 = vmul.f32 %v768, %v1961
    %v2050 = vmul.f32 %v768, %v1965
    %v2051 = vmul.f32 %v768, %v1969
    %v2052 = vmul.f32 %v768, %v1973
    %v2053 = vmul.f32 %v768, %v1977
    %v2054 = vmul.f32 %v768, %v1981
    %v2055 = vmul.f32 %v768, %v1985
    %v2056 = vmul.f32 %v768, %v1989
    %v2057 = vmul.f32 %v768, %v1993
    %v2058 = vmul.f32 %v2026, 1.442695
    %v2059 = vpow.pop %v2058
    %v2060 = vmul.f32 %v2027, 1.442695
    %v2061 = vpow.pop %v2060
    %v2062 = vmul.f32 %v2028, 1.442695
    %v2063 = vpow.pop %v2062
    %v2064 = vmul.f32 %v2029, 1.442695
    %v2065 = vpow.pop %v2064
    %v2066 = vmul.f32 %v2030, 1.442695
    %v2067 = vpow.pop %v2066
    %v2068 = vmul.f32 %v2031, 1.442695
    %v2069 = vpow.pop %v2068
    %v2070 = vmul.f32 %v2032, 1.442695
    %v2071 = vpow.pop %v2070
    %v2072 = vmul.f32 %v2033, 1.442695
    %v2073 = vpow.pop %v2072
    %v2074 = vmul.f32 %v2034, 1.442695
    %v2075 = vpow.pop %v2074
    %v2076 = vmul.f32 %v2035, 1.442695
    %v2077 = vpow.pop %v2076
    %v2078 = vmul.f32 %v2036, 1.442695
    %v2079 = vpow.pop %v2078
    %v2080 = vmul.f32 %v2037, 1.442695
    %v2081 = vpow.pop %v2080
    %v2082 = vmul.f32 %v2038, 1.442695
    %v2083 = vpow.pop %v2082
    %v2084 = vmul.f32 %v2039, 1.442695
    %v2085 = vpow.pop %v2084
    %v2086 = vmul.f32 %v2040, 1.442695
    %v2087 = vpow.pop %v2086
    %v2088 = vmul.f32 %v2041, 1.442695
    %v2089 = vpow.pop %v2088
    %v2090 = vmul.f32 %v2042, 1.442695
    %v2091 = vpow.pop %v2090
    %v2092 = vmul.f32 %v2043, 1.442695
    %v2093 = vpow.pop %v2092
    %v2094 = vmul.f32 %v2044, 1.442695
    %v2095 = vpow.pop %v2094
    %v2096 = vmul.f32 %v2045, 1.442695
    %v2097 = vpow.pop %v2096
    %v2098 = vmul.f32 %v2046, 1.442695
    %v2099 = vpow.pop %v2098
    %v2100 = vmul.f32 %v2047, 1.442695
    %v2101 = vpow.pop %v2100
    %v2102 = vmul.f32 %v2048, 1.442695
    %v2103 = vpow.pop %v2102
    %v2104 = vmul.f32 %v2049, 1.442695
    %v2105 = vpow.pop %v2104
    %v2106 = vmul.f32 %v2050, 1.442695
    %v2107 = vpow.pop %v2106
    %v2108 = vmul.f32 %v2051, 1.442695
    %v2109 = vpow.pop %v2108
    %v2110 = vmul.f32 %v2052, 1.442695
    %v2111 = vpow.pop %v2110
    %v2112 = vmul.f32 %v2053, 1.442695
    %v2113 = vpow.pop %v2112
    %v2114 = vmul.f32 %v2054, 1.442695
    %v2115 = vpow.pop %v2114
    %v2116 = vmul.f32 %v2055, 1.442695
    %v2117 = vpow.pop %v2116
    %v2118 = vmul.f32 %v2056, 1.442695
    %v2119 = vpow.pop %v2118
    %v2120 = vmul.f32 %v2057, 1.442695
    %v2121 = vpow.pop %v2120
    %v2122 = vmul.f32 %v1589, %v2059
    %v2123 = vmul.f32 %v1590, %v2075
    %v2124 = vmul.f32 %v1591, %v2091
    %v2125 = vmul.f32 %v1592, %v2107
    %v2126 = vlaneseq
    %v2127 = vshrl.u32 %v2126, 7
    %v2128 = vsub.s32 0, %v2127
    %v2129 = vrot.slane %v1657, %v2128
    %v2130 = vlaneseq
    %v2131 = vshrl.u32 %v2130, 7
    %v2132 = vsub.s32 0, %v2131
    %v2133 = vrot.slane %v1658, %v2132
    %v2134 = vlaneseq
    %v2135 = vshrl.u32 %v2134, 7
    %v2136 = vsub.s32 0, %v2135
    %v2137 = vrot.slane %v1659, %v2136
    %v2138 = vlaneseq
    %v2139 = vshrl.u32 %v2138, 7
    %v2140 = vsub.s32 0, %v2139
    %v2141 = vrot.slane %v1660, %v2140
    %v2142 = vadd.f32 %v2122, %v2129
    %v2143 = vadd.f32 %v2123, %v2133
    %v2144 = vadd.f32 %v2124, %v2137
    %v2145 = vadd.f32 %v2125, %v2141
    %v2146 = vrot.slane %v2142, 4
    %v2147 = vadd.f32 %v2142, %v2146
    %v2148 = vrot.slane %v2147, 2
    %v2149 = vadd.f32 %v2147, %v2148
    %v2150 = vrot.slane %v2149, 1
    %v2151 = vadd.f32 %v2149, %v2150
    %v2152 = vrot.slane %v2143, 4
    %v2153 = vadd.f32 %v2143, %v2152
    %v2154 = vrot.slane %v2153, 2
    %v2155 = vadd.f32 %v2153, %v2154
    %v2156 = vrot.slane %v2155, 1
    %v2157 = vadd.f32 %v2155, %v2156
    %v2158 = vrot.slane %v2144, 4
    %v2159 = vadd.f32 %v2144, %v2158
    %v2160 = vrot.slane %v2159, 2
    %v2161 = vadd.f32 %v2159, %v2160
    %v2162 = vrot.slane %v2161, 1
    %v2163 = vadd.f32 %v2161, %v2162
    %v2164 = vrot.slane %v2145, 4
    %v2165 = vadd.f32 %v2145, %v2164
    %v2166 = vrot.slane %v2165, 2
    %v2167 = vadd.f32 %v2165, %v2166
    %v2168 = vrot.slane %v2167, 1
    %v2169 = vadd.f32 %v2167, %v2168
    %v2170 = vmul.f32 %v2142, %v2061
    %v2171 = vmul.f32 %v2143, %v2077
    %v2172 = vmul.f32 %v2144, %v2093
    %v2173 = vmul.f32 %v2145, %v2109
    %v2174 = vlaneseq
    %v2175 = vshrl.u32 %v2174, 7
    %v2176 = vsub.s32 1, %v2175
    %v2177 = vrot.slane %v1657, %v2176
    %v2178 = vlaneseq
    %v2179 = vshrl.u32 %v2178, 7
    %v2180 = vsub.s32 1, %v2179
    %v2181 = vrot.slane %v1658, %v2180
    %v2182 = vlaneseq
    %v2183 = vshrl.u32 %v2182, 7
    %v2184 = vsub.s32 1, %v2183
    %v2185 = vrot.slane %v1659, %v2184
    %v2186 = vlaneseq
    %v2187 = vshrl.u32 %v2186, 7
    %v2188 = vsub.s32 1, %v2187
    %v2189 = vrot.slane %v1660, %v2188
    %v2190 = vadd.f32 %v2170, %v2177
    %v2191 = vadd.f32 %v2171, %v2181
    %v2192 = vadd.f32 %v2172, %v2185
    %v2193 = vadd.f32 %v2173, %v2189
    %v2194 = vrot.slane %v2190, 4
    %v2195 = vadd.f32 %v2190, %v2194
    %v2196 = vrot.slane %v2195, 2
    %v2197 = vadd.f32 %v2195, %v2196
    %v2198 = vrot.slane %v2197, 1
    %v2199 = vadd.f32 %v2197, %v2198
    %v2200 = vrot.slane %v2191, 4
    %v2201 = vadd.f32 %v2191, %v2200
    %v2202 = vrot.slane %v2201, 2
    %v2203 = vadd.f32 %v2201, %v2202
    %v2204 = vrot.slane %v2203, 1
    %v2205 = vadd.f32 %v2203, %v2204
    %v2206 = vrot.slane %v2192, 4
    %v2207 = vadd.f32 %v2192, %v2206
    %v2208 = vrot.slane %v2207, 2
    %v2209 = vadd.f32 %v2207, %v2208
    %v2210 = vrot.slane %v2209, 1
    %v2211 = vadd.f32 %v2209, %v2210
    %v2212 = vrot.slane %v2193, 4
    %v2213 = vadd.f32 %v2193, %v2212
    %v2214 = vrot.slane %v2213, 2
    %v2215 = vadd.f32 %v2213, %v2214
    %v2216 = vrot.slane %v2215, 1
    %v2217 = vadd.f32 %v2215, %v2216
    %v2218 = vmul.f32 %v2190, %v2063
    %v2219 = vmul.f32 %v2191, %v2079
    %v2220 = vmul.f32 %v2192, %v2095
    %v2221 = vmul.f32 %v2193, %v2111
    %v2222 = vlaneseq
    %v2223 = vshrl.u32 %v2222, 7
    %v2224 = vsub.s32 2, %v2223
    %v2225 = vrot.slane %v1657, %v2224
    %v2226 = vlaneseq
    %v2227 = vshrl.u32 %v2226, 7
    %v2228 = vsub.s32 2, %v2227
    %v2229 = vrot.slane %v1658, %v2228
    %v2230 = vlaneseq
    %v2231 = vshrl.u32 %v2230, 7
    %v2232 = vsub.s32 2, %v2231
    %v2233 = vrot.slane %v1659, %v2232
    %v2234 = vlaneseq
    %v2235 = vshrl.u32 %v2234, 7
    %v2236 = vsub.s32 2, %v2235
    %v2237 = vrot.slane %v1660, %v2236
    %v2238 = vadd.f32 %v2218, %v2225
    %v2239 = vadd.f32 %v2219, %v2229
    %v2240 = vadd.f32 %v2220, %v2233
    %v2241 = vadd.f32 %v2221, %v2237
    %v2242 = vrot.slane %v2238, 4
    %v2243 = vadd.f32 %v2238, %v2242
    %v2244 = vrot.slane %v2243, 2
    %v2245 = vadd.f32 %v2243, %v2244
    %v2246 = vrot.slane %v2245, 1
    %v2247 = vadd.f32 %v2245, %v2246
    %v2248 = vrot.slane %v2239, 4
    %v2249 = vadd.f32 %v2239, %v2248
    %v2250 = vrot.slane %v2249, 2
    %v2251 = vadd.f32 %v2249, %v2250
    %v2252 = vrot.slane %v2251, 1
    %v2253 = vadd.f32 %v2251, %v2252
    %v2254 = vrot.slane %v2240, 4
    %v2255 = vadd.f32 %v2240, %v2254
    %v2256 = vrot.slane %v2255, 2
    %v2257 = vadd.f32 %v2255, %v2256
    %v2258 = vrot.slane %v2257, 1
    %v2259 = vadd.f32 %v2257, %v2258
    %v2260 = vrot.slane %v2241, 4
    %v2261 = vadd.f32 %v2241, %v2260
    %v2262 = vrot.slane %v2261, 2
    %v2263 = vadd.f32 %v2261, %v2262
    %v2264 = vrot.slane %v2263, 1
    %v2265 = vadd.f32 %v2263, %v2264
    %v2266 = vmul.f32 %v2238, %v2065
    %v2267 = vmul.f32 %v2239, %v2081
    %v2268 = vmul.f32 %v2240, %v2097
    %v2269 = vmul.f32 %v2241, %v2113
    %v2270 = vlaneseq
    %v2271 = vshrl.u32 %v2270, 7
    %v2272 = vsub.s32 3, %v2271
    %v2273 = vrot.slane %v1657, %v2272
    %v2274 = vlaneseq
    %v2275 = vshrl.u32 %v2274, 7
    %v2276 = vsub.s32 3, %v2275
    %v2277 = vrot.slane %v1658, %v2276
    %v2278 = vlaneseq
    %v2279 = vshrl.u32 %v2278, 7
    %v2280 = vsub.s32 3, %v2279
    %v2281 = vrot.slane %v1659, %v2280
    %v2282 = vlaneseq
    %v2283 = vshrl.u32 %v2282, 7
    %v2284 = vsub.s32 3, %v2283
    %v2285 = vrot.slane %v1660, %v2284
    %v2286 = vadd.f32 %v2266, %v2273
    %v2287 = vadd.f32 %v2267, %v2277
    %v2288 = vadd.f32 %v2268, %v2281
    %v2289 = vadd.f32 %v2269, %v2285
    %v2290 = vrot.slane %v2286, 4
    %v2291 = vadd.f32 %v2286, %v2290
    %v2292 = vrot.slane %v2291, 2
    %v2293 = vadd.f32 %v2291, %v2292
    %v2294 = vrot.slane %v2293, 1
    %v2295 = vadd.f32 %v2293, %v2294
    %v2296 = vrot.slane %v2287, 4
    %v2297 = vadd.f32 %v2287, %v2296
    %v2298 = vrot.slane %v2297, 2
    %v2299 = vadd.f32 %v2297, %v2298
    %v2300 = vrot.slane %v2299, 1
    %v2301 = vadd.f32 %v2299, %v2300
    %v2302 = vrot.slane %v2288, 4
    %v2303 = vadd.f32 %v2288, %v2302
    %v2304 = vrot.slane %v2303, 2
    %v2305 = vadd.f32 %v2303, %v2304
    %v2306 = vrot.slane %v2305, 1
    %v2307 = vadd.f32 %v2305, %v2306
    %v2308 = vrot.slane %v2289, 4
    %v2309 = vadd.f32 %v2289, %v2308
    %v2310 = vrot.slane %v2309, 2
    %v2311 = vadd.f32 %v2309, %v2310
    %v2312 = vrot.slane %v2311, 1
    %v2313 = vadd.f32 %v2311, %v2312
    %v2314 = vmul.f32 %v2286, %v2067
    %v2315 = vmul.f32 %v2287, %v2083
    %v2316 = vmul.f32 %v2288, %v2099
    %v2317 = vmul.f32 %v2289, %v2115
    %v2318 = vlaneseq
    %v2319 = vshrl.u32 %v2318, 7
    %v2320 = vsub.s32 4, %v2319
    %v2321 = vrot.slane %v1657, %v2320
    %v2322 = vlaneseq
    %v2323 = vshrl.u32 %v2322, 7
    %v2324 = vsub.s32 4, %v2323
    %v2325 = vrot.slane %v1658, %v2324
    %v2326 = vlaneseq
    %v2327 = vshrl.u32 %v2326, 7
    %v2328 = vsub.s32 4, %v2327
    %v2329 = vrot.slane %v1659, %v2328
    %v2330 = vlaneseq
    %v2331 = vshrl.u32 %v2330, 7
    %v2332 = vsub.s32 4, %v2331
    %v2333 = vrot.slane %v1660, %v2332
    %v2334 = vadd.f32 %v2314, %v2321
    %v2335 = vadd.f32 %v2315, %v2325
    %v2336 = vadd.f32 %v2316, %v2329
    %v2337 = vadd.f32 %v2317, %v2333
    %v2338 = vrot.slane %v2334, 4
    %v2339 = vadd.f32 %v2334, %v2338
    %v2340 = vrot.slane %v2339, 2
    %v2341 = vadd.f32 %v2339, %v2340
    %v2342 = vrot.slane %v2341, 1
    %v2343 = vadd.f32 %v2341, %v2342
    %v2344 = vrot.slane %v2335, 4
    %v2345 = vadd.f32 %v2335, %v2344
    %v2346 = vrot.slane %v2345, 2
    %v2347 = vadd.f32 %v2345, %v2346
    %v2348 = vrot.slane %v2347, 1
    %v2349 = vadd.f32 %v2347, %v2348
    %v2350 = vrot.slane %v2336, 4
    %v2351 = vadd.f32 %v2336, %v2350
    %v2352 = vrot.slane %v2351, 2
    %v2353 = vadd.f32 %v2351, %v2352
    %v2354 = vrot.slane %v2353, 1
    %v2355 = vadd.f32 %v2353, %v2354
    %v2356 = vrot.slane %v2337, 4
    %v2357 = vadd.f32 %v2337, %v2356
    %v2358 = vrot.slane %v2357, 2
    %v2359 = vadd.f32 %v2357, %v2358
    %v2360 = vrot.slane %v2359, 1
    %v2361 = vadd.f32 %v2359, %v2360
    %v2362 = vmul.f32 %v2334, %v2069
    %v2363 = vmul.f32 %v2335, %v2085
    %v2364 = vmul.f32 %v2336, %v2101
    %v2365 = vmul.f32 %v2337, %v2117
    %v2366 = vlaneseq
    %v2367 = vshrl.u32 %v2366, 7
    %v2368 = vsub.s32 5, %v2367
    %v2369 = vrot.slane %v1657, %v2368
    %v2370 = vlaneseq
    %v2371 = vshrl.u32 %v2370, 7
    %v2372 = vsub.s32 5, %v2371
    %v2373 = vrot.slane %v1658, %v2372
    %v2374 = vlaneseq
    %v2375 = vshrl.u32 %v2374, 7
    %v2376 = vsub.s32 5, %v2375
    %v2377 = vrot.slane %v1659, %v2376
    %v2378 = vlaneseq
    %v2379 = vshrl.u32 %v2378, 7
    %v2380 = vsub.s32 5, %v2379
    %v2381 = vrot.slane %v1660, %v2380
    %v2382 = vadd.f32 %v2362, %v2369
    %v2383 = vadd.f32 %v2363, %v2373
    %v2384 = vadd.f32 %v2364, %v2377
    %v2385 = vadd.f32 %v2365, %v2381
    %v2386 = vrot.slane %v2382, 4
    %v2387 = vadd.f32 %v2382, %v2386
    %v2388 = vrot.slane %v2387, 2
    %v2389 = vadd.f32 %v2387, %v2388
    %v2390 = vrot.slane %v2389, 1
    %v2391 = vadd.f32 %v2389, %v2390
    %v2392 = vrot.slane %v2383, 4
    %v2393 = vadd.f32 %v2383, %v2392
    %v2394 = vrot.slane %v2393, 2
    %v2395 = vadd.f32 %v2393, %v2394
    %v2396 = vrot.slane %v2395, 1
    %v2397 = vadd.f32 %v2395, %v2396
    %v2398 = vrot.slane %v2384, 4
    %v2399 = vadd.f32 %v2384, %v2398
    %v2400 = vrot.slane %v2399, 2
    %v2401 = vadd.f32 %v2399, %v2400
    %v2402 = vrot.slane %v2401, 1
    %v2403 = vadd.f32 %v2401, %v2402
    %v2404 = vrot.slane %v2385, 4
    %v2405 = vadd.f32 %v2385, %v2404
    %v2406 = vrot.slane %v2405, 2
    %v2407 = vadd.f32 %v2405, %v2406
    %v2408 = vrot.slane %v2407, 1
    %v2409 = vadd.f32 %v2407, %v2408
    %v2410 = vmul.f32 %v2382, %v2071
    %v2411 = vmul.f32 %v2383, %v2087
    %v2412 = vmul.f32 %v2384, %v2103
    %v2413 = vmul.f32 %v2385, %v2119
    %v2414 = vlaneseq
    %v2415 = vshrl.u32 %v2414, 7
    %v2416 = vsub.s32 6, %v2415
    %v2417 = vrot.slane %v1657, %v2416
    %v2418 = vlaneseq
    %v2419 = vshrl.u32 %v2418, 7
    %v2420 = vsub.s32 6, %v2419
    %v2421 = vrot.slane %v1658, %v2420
    %v2422 = vlaneseq
    %v2423 = vshrl.u32 %v2422, 7
    %v2424 = vsub.s32 6, %v2423
    %v2425 = vrot.slane %v1659, %v2424
    %v2426 = vlaneseq
    %v2427 = vshrl.u32 %v2426, 7
    %v2428 = vsub.s32 6, %v2427
    %v2429 = vrot.slane %v1660, %v2428
    %v2430 = vadd.f32 %v2410, %v2417
    %v2431 = vadd.f32 %v2411, %v2421
    %v2432 = vadd.f32 %v2412, %v2425
    %v2433 = vadd.f32 %v2413, %v2429
    %v2434 = vrot.slane %v2430, 4
    %v2435 = vadd.f32 %v2430, %v2434
    %v2436 = vrot.slane %v2435, 2
    %v2437 = vadd.f32 %v2435, %v2436
    %v2438 = vrot.slane %v2437, 1
    %v2439 = vadd.f32 %v2437, %v2438
    %v2440 = vrot.slane %v2431, 4
    %v2441 = vadd.f32 %v2431, %v2440
    %v2442 = vrot.slane %v2441, 2
    %v2443 = vadd.f32 %v2441, %v2442
    %v2444 = vrot.slane %v2443, 1
    %v2445 = vadd.f32 %v2443, %v2444
    %v2446 = vrot.slane %v2432, 4
    %v2447 = vadd.f32 %v2432, %v2446
    %v2448 = vrot.slane %v2447, 2
    %v2449 = vadd.f32 %v2447, %v2448
    %v2450 = vrot.slane %v2449, 1
    %v2451 = vadd.f32 %v2449, %v2450
    %v2452 = vrot.slane %v2433, 4
    %v2453 = vadd.f32 %v2433, %v2452
    %v2454 = vrot.slane %v2453, 2
    %v2455 = vadd.f32 %v2453, %v2454
    %v2456 = vrot.slane %v2455, 1
    %v2457 = vadd.f32 %v2455, %v2456
    %v2458 = vmul.f32 %v2430, %v2073
    %v2459 = vmul.f32 %v2431, %v2089
    %v2460 = vmul.f32 %v2432, %v2105
    %v2461 = vmul.f32 %v2433, %v2121
    %v2462 = vlaneseq
    %v2463 = vshrl.u32 %v2462, 7
    %v2464 = vsub.s32 7, %v2463
    %v2465 = vrot.slane %v1657, %v2464
    %v2466 = vlaneseq
    %v2467 = vshrl.u32 %v2466, 7
    %v2468 = vsub.s32 7, %v2467
    %v2469 = vrot.slane %v1658, %v2468
    %v2470 = vlaneseq
    %v2471 = vshrl.u32 %v2470, 7
    %v2472 = vsub.s32 7, %v2471
    %v2473 = vrot.slane %v1659, %v2472
    %v2474 = vlaneseq
    %v2475 = vshrl.u32 %v2474, 7
    %v2476 = vsub.s32 7, %v2475
    %v2477 = vrot.slane %v1660, %v2476
    %v2478 = vadd.f32 %v2458, %v2465
    %v2479 = vadd.f32 %v2459, %v2469
    %v2480 = vadd.f32 %v2460, %v2473
    %v2481 = vadd.f32 %v2461, %v2477
    %v2482 = vrot.slane %v2478, 4
    %v2483 = vadd.f32 %v2478, %v2482
    %v2484 = vrot.slane %v2483, 2
    %v2485 = vadd.f32 %v2483, %v2484
    %v2486 = vrot.slane %v2485, 1
    %v2487 = vadd.f32 %v2485, %v2486
    %v2488 = vrot.slane %v2479, 4
    %v2489 = vadd.f32 %v2479, %v2488
    %v2490 = vrot.slane %v2489, 2
    %v2491 = vadd.f32 %v2489, %v2490
    %v2492 = vrot.slane %v2491, 1
    %v2493 = vadd.f32 %v2491, %v2492
    %v2494 = vrot.slane %v2480, 4
    %v2495 = vadd.f32 %v2480, %v2494
    %v2496 = vrot.slane %v2495, 2
    %v2497 = vadd.f32 %v2495, %v2496
    %v2498 = vrot.slane %v2497, 1
    %v2499 = vadd.f32 %v2497, %v2498
    %v2500 = vrot.slane %v2481, 4
    %v2501 = vadd.f32 %v2481, %v2500
    %v2502 = vrot.slane %v2501, 2
    %v2503 = vadd.f32 %v2501, %v2502
    %v2504 = vrot.slane %v2503, 1
    %v2505 = vadd.f32 %v2503, %v2504
    %v2506 = vsel %vm1617, %v2151, %v2199
    %v2507 = vsel %vm1617, %v2157, %v2205
    %v2508 = vsel %vm1617, %v2163, %v2211
    %v2509 = vsel %vm1617, %v2169, %v2217
    %v2510 = vsel %vm1622, %v2506, %v2247
    %v2511 = vsel %vm1622, %v2507, %v2253
    %v2512 = vsel %vm1622, %v2508, %v2259
    %v2513 = vsel %vm1622, %v2509, %v2265
    %v2514 = vsel %vm1627, %v2510, %v2295
    %v2515 = vsel %vm1627, %v2511, %v2301
    %v2516 = vsel %vm1627, %v2512, %v2307
    %v2517 = vsel %vm1627, %v2513, %v2313
    %v2518 = vsel %vm1632, %v2514, %v2343
    %v2519 = vsel %vm1632, %v2515, %v2349
    %v2520 = vsel %vm1632, %v2516, %v2355
    %v2521 = vsel %vm1632, %v2517, %v2361
    %v2522 = vsel %vm1637, %v2518, %v2391
    %v2523 = vsel %vm1637, %v2519, %v2397
    %v2524 = vsel %vm1637, %v2520, %v2403
    %v2525 = vsel %vm1637, %v2521, %v2409
    %v2526 = vsel %vm1642, %v2522, %v2439
    %v2527 = vsel %vm1642, %v2523, %v2445
    %v2528 = vsel %vm1642, %v2524, %v2451
    %v2529 = vsel %vm1642, %v2525, %v2457
    %v2530 = vsel %vm1647, %v2526, %v2487
    %v2531 = vsel %vm1647, %v2527, %v2493
    %v2532 = vsel %vm1647, %v2528, %v2499
    %v2533 = vsel %vm1647, %v2529, %v2505
    %2534 = vst [vmem:[%s1661] sm:$0xff] %v2530
    %2535 = vst [vmem:[%s1661 + $0x10] sm:$0xff] %v2531
    %2536 = vst [vmem:[%s1661 + $0x20] sm:$0xff] %v2532
    %2537 = vst [vmem:[%s1661 + $0x30] sm:$0xff] %v2533
    %v2538 = vld [vmem:[#allocation3] sm:$0xff]
    %v2539 = vld [vmem:[#allocation3 + $0x8] sm:$0xff]
    %v2540 = vld [vmem:[#allocation3 + $0x10] sm:$0xff]
    %v2541 = vld [vmem:[#allocation3 + $0x18] sm:$0xff]
    %v2542 = vld [vmem:[#allocation3 + $0x20] sm:$0xff]
    %v2543 = vld [vmem:[#allocation3 + $0x28] sm:$0xff]
    %v2544 = vld [vmem:[#allocation3 + $0x30] sm:$0xff]
    %v2545 = vld [vmem:[#allocation3 + $0x38] sm:$0xff]
    %v2546 = vld [vmem:[#allocation2] sm:$0xff]
    %v2547 = vld [vmem:[#allocation2 + $0x8] sm:$0xff]
    %v2548 = vld [vmem:[#allocation2 + $0x10] sm:$0xff]
    %v2549 = vld [vmem:[#allocation2 + $0x18] sm:$0xff]
    %v2550 = vld [vmem:[#allocation2 + $0x20] sm:$0xff]
    %v2551 = vld [vmem:[#allocation2 + $0x28] sm:$0xff]
    %v2552 = vld [vmem:[#allocation2 + $0x30] sm:$0xff]
    %v2553 = vld [vmem:[#allocation2 + $0x38] sm:$0xff]
    %v2554 = vmul.f32 %v2538, %v600
    %v2555 = vmul.f32 %v2539, %v601
    %v2556 = vmul.f32 %v2540, %v602
    %v2557 = vmul.f32 %v2541, %v603
    %v2558 = vmul.f32 %v2542, %v604
    %v2559 = vmul.f32 %v2543, %v605
    %v2560 = vmul.f32 %v2544, %v606
    %v2561 = vmul.f32 %v2545, %v607
    %v2562 = vld [vmem:[%s6] sm:$0x1]
    %v2564 = vlaneseq
    %v2565 = vshrl.u32 %v2564, 7
    %v2566 = vsub.s32 0, %v2565
    %v2567 = vrot.slane %v2562, %v2566
    %v2569 = vmul.f32 %v2546, %v2567
    %v2570 = vmul.f32 %v2547, %v2567
    %v2571 = vmul.f32 %v2548, %v2567
    %v2572 = vmul.f32 %v2549, %v2567
    %v2573 = vmul.f32 %v2550, %v2567
    %v2574 = vmul.f32 %v2551, %v2567
    %v2575 = vmul.f32 %v2552, %v2567
    %v2576 = vmul.f32 %v2553, %v2567
    %v2577 = vadd.f32 %v2554, %v2569
    %v2578 = vadd.f32 %v2555, %v2570
    %v2579 = vadd.f32 %v2556, %v2571
    %v2580 = vadd.f32 %v2557, %v2572
    %v2581 = vadd.f32 %v2558, %v2573
    %v2582 = vadd.f32 %v2559, %v2574
    %v2583 = vadd.f32 %v2560, %v2575
    %v2584 = vadd.f32 %v2561, %v2576
    %v2585 = vld [vmem:[#allocation9] sm:$0xff]
    %v2586 = vld [vmem:[#allocation9 + $0x8] sm:$0xff]
    %v2587 = vld [vmem:[#allocation9 + $0x10] sm:$0xff]
    %v2588 = vld [vmem:[#allocation9 + $0x18] sm:$0xff]
    %v2589 = vld [vmem:[#allocation9 + $0x20] sm:$0xff]
    %v2590 = vld [vmem:[#allocation9 + $0x28] sm:$0xff]
    %v2591 = vld [vmem:[#allocation9 + $0x30] sm:$0xff]
    %v2592 = vld [vmem:[#allocation9 + $0x38] sm:$0xff]
    %v2593 = vld [vmem:[#allocation9 + $0x40] sm:$0xff]
    %v2594 = vld [vmem:[#allocation9 + $0x48] sm:$0xff]
    %v2595 = vld [vmem:[#allocation9 + $0x50] sm:$0xff]
    %v2596 = vld [vmem:[#allocation9 + $0x58] sm:$0xff]
    %v2597 = vld [vmem:[#allocation9 + $0x60] sm:$0xff]
    %v2598 = vld [vmem:[#allocation9 + $0x68] sm:$0xff]
    %v2599 = vld [vmem:[#allocation9 + $0x70] sm:$0xff]
    %v2600 = vld [vmem:[#allocation9 + $0x78] sm:$0xff]
    %v2601 = vld [vmem:[%s8] sm:$0x1]
    %v2603 = vlaneseq
    %v2604 = vshrl.u32 %v2603, 7
    %v2605 = vsub.s32 0, %v2604
    %v2606 = vrot.slane %v2601, %v2605
    %2608 = vmatprep.subr.mxu0 0.0
    %2609 = vmatpush1.msra.mxu0 %v2585
    %2610 = vmatprep.subr.mxu0 0.0
    %2611 = vmatpush1.msra.mxu0 %v2586
    %2612 = vmatprep.subr.mxu0 0.0
    %2613 = vmatpush1.msra.mxu0 %v2587
    %2614 = vmatprep.subr.mxu0 0.0
    %2615 = vmatpush1.msra.mxu0 %v2588
    %2616 = vmatprep.subr.mxu0 0.0
    %2617 = vmatpush1.msra.mxu0 %v2589
    %2618 = vmatprep.subr.mxu0 0.0
    %2619 = vmatpush1.msra.mxu0 %v2590
    %2620 = vmatprep.subr.mxu0 0.0
    %2621 = vmatpush1.msra.mxu0 %v2591
    %2622 = vmatprep.subr.mxu0 0.0
    %2623 = vmatpush1.msra.mxu0 %v2592
    %2624 = vmatprep.subr.mxu0 0.0
    %2625 = vmatpush1.msra.mxu0 %v2593
    %2626 = vmatprep.subr.mxu0 0.0
    %2627 = vmatpush1.msra.mxu0 %v2594
    %2628 = vmatprep.subr.mxu0 0.0
    %2629 = vmatpush1.msra.mxu0 %v2595
    %2630 = vmatprep.subr.mxu0 0.0
    %2631 = vmatpush1.msra.mxu0 %v2596
    %2632 = vmatprep.subr.mxu0 0.0
    %2633 = vmatpush1.msra.mxu0 %v2597
    %2634 = vmatprep.subr.mxu0 0.0
    %2635 = vmatpush1.msra.mxu0 %v2598
    %2636 = vmatprep.subr.mxu0 0.0
    %2637 = vmatpush1.msra.mxu0 %v2599
    %2638 = vmatprep.subr.mxu0 0.0
    %2639 = vmatpush1.msra.mxu0 %v2600
    %2640 = vmatprep.subr.mxu0 0.0
    %2641 = vmatpush1.msra.mxu0 0.0
    %2642 = vmatprep.subr.mxu0 0.0
    %2643 = vmatpush1.msra.mxu0 0.0
    %2644 = vmatprep.subr.mxu0 0.0
    %2645 = vmatpush1.msra.mxu0 0.0
    %2646 = vmatprep.subr.mxu0 0.0
    %2647 = vmatpush1.msra.mxu0 0.0
    %2648 = vmatprep.subr.mxu0 0.0
    %2649 = vmatpush1.msra.mxu0 0.0
    %2650 = vmatprep.subr.mxu0 0.0
    %2651 = vmatpush1.msra.mxu0 0.0
    %2652 = vmatprep.subr.mxu0 0.0
    %2653 = vmatpush1.msra.mxu0 0.0
    %2654 = vmatprep.subr.mxu0 0.0
    %2655 = vmatpush1.msra.mxu0 0.0
    %2656 = vmatprep.subr.mxu0 0.0
    %2657 = vmatpush1.msra.mxu0 0.0
    %2658 = vmatprep.subr.mxu0 0.0
    %2659 = vmatpush1.msra.mxu0 0.0
    %2660 = vmatprep.subr.mxu0 0.0
    %2661 = vmatpush1.msra.mxu0 0.0
    %2662 = vmatprep.subr.mxu0 0.0
    %2663 = vmatpush1.msra.mxu0 0.0
    %2664 = vmatprep.subr.mxu0 0.0
    %2665 = vmatpush1.msra.mxu0 0.0
    %2666 = vmatprep.subr.mxu0 0.0
    %2667 = vmatpush1.msra.mxu0 0.0
    %2668 = vmatprep.subr.mxu0 0.0
    %2669 = vmatpush1.msra.mxu0 0.0
    %2670 = vmatprep.subr.mxu0 0.0
    %2671 = vmatpush1.msra.mxu0 0.0
    %2672 = vmatprep.mubr.f32.mxu0 0.0
    %2673 = vmatmul.mubr.f32.gmra.mrb[0].mxu0 %v2577
    %v2674 = vpop.f32.mrb[0].mxu0
    %v2675 = vadd.f32 %v2606, %v2674
    %v2676 = vpop.f32.mrb[0].mxu0
    %2677 = vmatprep.mubr.f32.mxu0 0.0
    %2678 = vmatmul.mubr.f32.gmra.mrb[0].mxu0 %v2578
    %v2679 = vpop.f32.mrb[0].mxu0
    %v2680 = vadd.f32 %v2606, %v2679
    %v2681 = vpop.f32.mrb[0].mxu0
    %2682 = vmatprep.mubr.f32.mxu0 0.0
    %2683 = vmatmul.mubr.f32.gmra.mrb[0].mxu0 %v2579
    %v2684 = vpop.f32.mrb[0].mxu0
    %v2685 = vadd.f32 %v2606, %v2684
    %v2686 = vpop.f32.mrb[0].mxu0
    %2687 = vmatprep.mubr.f32.mxu0 0.0
    %2688 = vmatmul.mubr.f32.gmra.mrb[0].mxu0 %v2580
    %v2689 = vpop.f32.mrb[0].mxu0
    %v2690 = vadd.f32 %v2606, %v2689
    %v2691 = vpop.f32.mrb[0].mxu0
    %2692 = vmatprep.mubr.f32.mxu0 0.0
    %2693 = vmatmul.mubr.f32.gmra.mrb[0].mxu0 %v2581
    %v2694 = vpop.f32.mrb[0].mxu0
    %v2695 = vadd.f32 %v2606, %v2694
    %v2696 = vpop.f32.mrb[0].mxu0
    %2697 = vmatprep.mubr.f32.mxu0 0.0
    %2698 = vmatmul.mubr.f32.gmra.mrb[0].mxu0 %v2582
    %v2699 = vpop.f32.mrb[0].mxu0
    %v2700 = vadd.f32 %v2606, %v2699
    %v2701 = vpop.f32.mrb[0].mxu0
    %2702 = vmatprep.mubr.f32.mxu0 0.0
    %2703 = vmatmul.mubr.f32.gmra.mrb[0].mxu0 %v2583
    %v2704 = vpop.f32.mrb[0].mxu0
    %v2705 = vadd.f32 %v2606, %v2704
    %v2706 = vpop.f32.mrb[0].mxu0
    %2707 = vmatprep.mubr.f32.mxu0 0.0
    %2708 = vmatmul.mubr.f32.gmra.mrb[0].mxu0 %v2584
    %v2709 = vpop.f32.mrb[0].mxu0
    %v2710 = vadd.f32 %v2606, %v2709
    %v2711 = vpop.f32.mrb[0].mxu0
    %2712 = vdwg.mxu0
    %v2713 = vld [vmem:[#allocation4] sm:$0xff]
    %v2714 = vld [vmem:[#allocation4 + $0x8] sm:$0xff]
    %v2715 = vld [vmem:[#allocation4 + $0x10] sm:$0xff]
    %v2716 = vld [vmem:[#allocation4 + $0x18] sm:$0xff]
    %v2717 = vld [vmem:[#allocation4 + $0x20] sm:$0xff]
    %v2718 = vld [vmem:[#allocation4 + $0x28] sm:$0xff]
    %v2719 = vld [vmem:[#allocation4 + $0x30] sm:$0xff]
    %v2720 = vld [vmem:[#allocation4 + $0x38] sm:$0xff]
    %v2721 = vadd.f32 %v2675, %v2713
    %v2722 = vadd.f32 %v2680, %v2714
    %v2723 = vadd.f32 %v2685, %v2715
    %v2724 = vadd.f32 %v2690, %v2716
    %v2725 = vadd.f32 %v2695, %v2717
    %v2726 = vadd.f32 %v2700, %v2718
    %v2727 = vadd.f32 %v2705, %v2719
    %v2728 = vadd.f32 %v2710, %v2720
    %2729 = vst [vmem:[#allocation10] sm:$0xff] %v2721
    %2730 = vst [vmem:[#allocation10 + $0x8] sm:$0xff] %v2722
    %2731 = vst [vmem:[#allocation10 + $0x10] sm:$0xff] %v2723
    %2732 = vst [vmem:[#allocation10 + $0x18] sm:$0xff] %v2724
    %2733 = vst [vmem:[#allocation10 + $0x20] sm:$0xff] %v2725
    %2734 = vst [vmem:[#allocation10 + $0x28] sm:$0xff] %v2726
    %2735 = vst [vmem:[#allocation10 + $0x30] sm:$0xff] %v2727
    %2736 = vst [vmem:[#allocation10 + $0x38] sm:$0xff] %v2728
    // Predicated region
    $region50: #{tpu_custom_call.1} parent=1 // pred_check
      _
    $region51: #{tpu_custom_call.1} parent=1 // pred_check_branch
      %2738 = sbr.rel (0) target = $region53
    $region52: #{tpu_custom_call.1} parent=1 // pred_region
      %s2740 = ssub.s32 1024, 1024
      %2741 = vsyncadd [#allocation6], %s2740
      %s2742 = sshll.u32 [#allocation10], 4
      %s2743 = int_to_ptr.vmem [resolvable:$true] %s2742
      %2748 = dma.vmem_to_hbm [thread:$0]  %s2743, 1024, %s9, [#allocation6], 128, 128, 8
    $region53: #{tpu_custom_call.1} parent=1 // pred_fallthru
      _
    // Predicated region
    $region54: #{tpu_custom_call.1} parent=1 // pred_check
      _
    $region55: #{tpu_custom_call.1} parent=1 // pred_check_branch
      %2750 = sbr.rel (0) target = $region57
    $region56: #{tpu_custom_call.1} parent=1 // pred_region
      %2751 = dma.done [#allocation6], 1024
    $region57: #{tpu_custom_call.1} parent=1 // pred_fallthru
      _
    %2752 = vsyncpa [#allocation5], 1
    %2753 = vsyncpa [#allocation8], 1
    %2754 = vsyncpa [#allocation6], 1

</llo_original>
